<compile_context>
chip_gen: v5e
topology: v5e:2x2
jax: 0.10.0
libtpu: 0.0.40
codegen_flags: <defaults>
</compile_context>

<pallas_src>
import functools
import math

import jax
import jax.numpy as jnp
from jax import lax
from jax.experimental import pallas as pl
from jax.experimental.pallas import tpu as pltpu

NUM_HEADS = 4
LN_EPS = 1e-5


def block_kernel(q_ref, k_ref, m_ref,
                 wq_ref, wk_ref, wv_ref, he_ref,
                 w1_ref, b1_ref, w2_ref, b2_ref,
                 gamma_ref, beta_ref, alpha_ref,
                 o_ref, *, h_true):
    # q_ref: (TB, HP) bf16   k_ref: (TB, S, HP) bf16   m_ref: (TB, 1, S) f32
    # o_ref: (TB, HP) f32    HP/FP are 128-padded; columns >= h_true are zero.
    TB, HP = q_ref.shape
    S = k_ref.shape[1]
    n_pad_h = HP - h_true
    inv_h = 1.0 / float(h_true)

    qv = q_ref[...]                                     # (TB, HP) bf16
    kk = k_ref[...].reshape(TB * S, HP)                 # (TB*S, HP) bf16, free collapse (S%8==0)

    # --- projections: bf16 MXU matmuls, f32 accumulate (Wq pre-scaled) -------
    Q = jnp.dot(qv, wq_ref[...], preferred_element_type=jnp.float32)   # (TB, HP)
    K = jnp.dot(kk, wk_ref[...], preferred_element_type=jnp.float32)   # (TB*S, HP)
    V = jnp.dot(kk, wv_ref[...], preferred_element_type=jnp.float32)   # (TB*S, HP)
    K3 = K.reshape(TB, S, HP).astype(jnp.bfloat16)
    V3 = V.reshape(TB, S, HP).astype(jnp.bfloat16)

    # --- per-head scores in (TB, heads, S) layout: S on lanes ----------------
    he = he_ref[...]                                    # (heads, HP) one-hot head mask, f32
    q_heads = (Q[:, None, :] * he[None, :, :]).astype(jnp.bfloat16)     # (TB, heads, HP)
    scores = jnp.einsum('bhd,bsd->bhs', q_heads, K3,
                        preferred_element_type=jnp.float32)             # (TB, heads, S)

    msk = m_ref[...]                                    # (TB, 1, S), 1.0 == masked
    scores = jnp.where(msk > 0.5, -jnp.inf, scores)     # broadcasts over heads
    scores = scores - jnp.max(scores, axis=-1, keepdims=True)
    p = jnp.exp(scores)
    p = p * pl.reciprocal(jnp.sum(p, axis=-1, keepdims=True), approx=True)
    # TODO(synk): attention dropout (F.dropout) and self.drop are identity at inference.

    # --- attention output: batched matmul + head-select reduce ---------------
    att_h = jnp.einsum('bhs,bsd->bhd', p.astype(jnp.bfloat16), V3,
                       preferred_element_type=jnp.float32)              # (TB, heads, HP)
    attn = jnp.sum(att_h * he[None, :, :], axis=1)                      # (TB, HP), pad cols 0

    # --- LayerNorm (ln_1, reused twice) over the TRUE h_true columns ---------
    gamma = gamma_ref[...]                              # (1, HP), pad cols 0
    beta = beta_ref[...]                                # (1, HP), pad cols 0

    def layer_norm(x):                                  # x: (TB, HP), pad cols exactly 0
        mu = jnp.sum(x, axis=-1, keepdims=True) * inv_h
        c = x - mu
        # padded cols contribute n_pad_h * mu^2 to sum(c^2); subtract it exactly.
        var = (jnp.sum(c * c, axis=-1, keepdims=True) - n_pad_h * (mu * mu)) * inv_h
        return c * lax.rsqrt(var + LN_EPS) * gamma + beta

    t = layer_norm(attn)                                                 # (TB, HP)
    h1 = jnp.dot(t.astype(jnp.bfloat16), w1_ref[...],
                 preferred_element_type=jnp.float32) + b1_ref[...]       # (TB, FP)
    h1 = jnp.where(h1 >= 0.0, h1, alpha_ref[...] * h1)                   # PReLU(4*hsz)
    ff = jnp.dot(h1.astype(jnp.bfloat16), w2_ref[...],
                 preferred_element_type=jnp.float32) + b2_ref[...]       # (TB, HP)

    o_ref[...] = layer_norm(ff + t)


def _round_up(x, m):
    return (x + m - 1) // m * m


def _vmem_bytes(tb, s_pad, h_pad, f_pad):
    """Rough per-grid-step VMEM working-set estimate (bytes)."""
    bf16, f32 = 2, 4
    weights = (3 * h_pad * h_pad + 2 * h_pad * f_pad) * bf16 \
        + (NUM_HEADS * h_pad + 3 * h_pad + 2 * f_pad) * f32
    # double-buffered activation blocks (q, k, mask, out)
    io = 2 * tb * (h_pad * bf16 + s_pad * h_pad * bf16 + s_pad * f32 + h_pad * f32)
    # live temporaries
    tmp = tb * (2 * s_pad * h_pad * bf16                 # K3, V3
                + 3 * NUM_HEADS * s_pad * f32            # scores / p / exp temp
                + 2 * NUM_HEADS * h_pad * f32            # q_heads, att_h
                + 2 * f_pad * f32                        # h1 pre/post PReLU
                + 5 * h_pad * f32)                       # Q, attn, t, ff, out temp
    return weights + io + tmp


def block_forward(q, k, m, params, *, tb_request=256, vmem_budget=24 * 2**20):
    """q: (B,1,H), k: (B,S,H), m: (B,1,S) float (1.0 == masked). Returns (B, H) f32."""
    B, _, H = q.shape
    S = k.shape[1]
    F = 4 * H
    assert H % NUM_HEADS == 0

    h_pad = _round_up(H, 128)
    f_pad = _round_up(F, 128)
    s_pad = _round_up(S, 8)

    wq, wk, wv, w1, b1, w2, b2, gamma, beta, alpha = params

    def pad2(a, r, c):
        return jnp.pad(a, ((0, r - a.shape[0]), (0, c - a.shape[1])))

    # One-time param prep (in production: do once, not per call):
    # fold 1/sqrt(hsz) into Wq, zero-pad to lane-dense shapes, bf16-cast weights.
    wq_p = pad2(wq / math.sqrt(H), h_pad, h_pad).astype(jnp.bfloat16)
    wk_p = pad2(wk, h_pad, h_pad).astype(jnp.bfloat16)
    wv_p = pad2(wv, h_pad, h_pad).astype(jnp.bfloat16)
    w1_p = pad2(w1, h_pad, f_pad).astype(jnp.bfloat16)
    w2_p = pad2(w2, f_pad, h_pad).astype(jnp.bfloat16)
    b1_p = pad2(b1, 1, f_pad)
    b2_p = pad2(b2, 1, h_pad)
    gamma_p = pad2(gamma, 1, h_pad)
    beta_p = pad2(beta, 1, h_pad)
    alpha_p = pad2(alpha, 1, f_pad)

    dh = H // NUM_HEADS
    he = jnp.repeat(jnp.eye(NUM_HEADS, dtype=jnp.float32), dh, axis=1)   # (heads, H)
    he = pad2(he, NUM_HEADS, h_pad)                                      # (heads, HP)

    # Batch tile: cap at ceil(B/2) (>=2 grid steps when possible -> v7x two
    # TensorCores both get work), then shrink to the VMEM budget.
    tb = min(tb_request, max(8, _round_up(-(-B // 2), 8)))
    tb = _round_up(tb, 8)
    while tb > 8 and _vmem_bytes(tb, s_pad, h_pad, f_pad) > vmem_budget:
        tb = max(8, _round_up(tb // 2, 8))
    b_pad = _round_up(B, tb)

    # Activations: pad + cast MXU operands to bf16 in the wrapper (halves DMA).
    # Padded key positions are masked (1.0); padded batch rows are unmasked
    # (stay finite, sliced off afterwards).
    q2 = jnp.pad(q[:, 0, :], ((0, b_pad - B), (0, h_pad - H))).astype(jnp.bfloat16)
    k_p = jnp.pad(k, ((0, b_pad - B), (0, s_pad - S), (0, h_pad - H))).astype(jnp.bfloat16)
    m_p = jnp.pad(m.astype(jnp.float32), ((0, 0), (0, 0), (0, s_pad - S)),
                  constant_values=1.0)
    m_p = jnp.pad(m_p, ((0, b_pad - B), (0, 0), (0, 0)), constant_values=0.0)

    kernel = functools.partial(block_kernel, h_true=H)
    vmem_limit = int(min(100 * 2**20,
                         max(32 * 2**20, 2 * _vmem_bytes(tb, s_pad, h_pad, f_pad))))

    def build(single_buffer_weights):
        def const_spec(shape):
            zeros = (0,) * len(shape)
            idx = lambda b, _z=zeros: _z
            if single_buffer_weights:
                # constant index -> no re-DMA; single buffer halves weight VMEM
                return pl.BlockSpec(shape, idx, pipeline_mode=pl.Buffered(1))
            return pl.BlockSpec(shape, idx)

        return pl.pallas_call(
            kernel,
            out_shape=jax.ShapeDtypeStruct((b_pad, h_pad), jnp.float32),
            grid_spec=pltpu.PrefetchScalarGridSpec(
                num_scalar_prefetch=0,
                grid=(b_pad // tb,),
                in_specs=[
                    pl.BlockSpec((tb, h_pad), lambda b: (b, 0)),            # q
                    pl.BlockSpec((tb, s_pad, h_pad), lambda b: (b, 0, 0)),  # k
                    pl.BlockSpec((tb, 1, s_pad), lambda b: (b, 0, 0)),      # mask
                    const_spec((h_pad, h_pad)),                             # Wq (pre-scaled)
                    const_spec((h_pad, h_pad)),                             # Wk
                    const_spec((h_pad, h_pad)),                             # Wv
                    const_spec((NUM_HEADS, h_pad)),                         # head one-hot
                    const_spec((h_pad, f_pad)), const_spec((1, f_pad)),     # l1
                    const_spec((f_pad, h_pad)), const_spec((1, h_pad)),     # l2
                    const_spec((1, h_pad)), const_spec((1, h_pad)),         # ln_1 gamma/beta
                    const_spec((1, f_pad)),                                 # PReLU alpha
                ],
                out_specs=pl.BlockSpec((tb, h_pad), lambda b: (b, 0)),
            ),
            compiler_params=pltpu.CompilerParams(
                dimension_semantics=("parallel",),
                vmem_limit_bytes=vmem_limit),
        )

    args = (q2, k_p, m_p, wq_p, wk_p, wv_p, he,
            w1_p, b1_p, w2_p, b2_p, gamma_p, beta_p, alpha_p)
    try:
        out = build(True)(*args)
    except Exception:
        # pl.Buffered(1) not supported by this JAX build -> default buffering.
        out = build(False)(*args)
    return out[:B, :H]


def block_reference(q, k, m, params):
    """Pure-JAX f32 reference mirroring the PyTorch forward (inference)."""
    wq, wk, wv, w1, b1, w2, b2, gamma, beta, alpha = params
    B, _, H = q.shape
    dh = H // NUM_HEADS

    Q = q[:, 0, :] @ wq                                   # (B, H)
    K = jnp.einsum('bsh,hd->bsd', k, wk)                  # (B, S, H)
    V = jnp.einsum('bsh,hd->bsd', k, wv)

    Qh = Q.reshape(B, NUM_HEADS, dh)
    Kh = K.reshape(B, -1, NUM_HEADS, dh)
    Vh = V.reshape(B, -1, NUM_HEADS, dh)

    scores = jnp.einsum('bhd,bshd->bhs', Qh, Kh) / math.sqrt(H)
    scores = jnp.where(m[:, 0, :][:, None, :] > 0.5, -jnp.inf, scores)
    p = jax.nn.softmax(scores, axis=-1)
    attn = jnp.einsum('bhs,bshd->bhd', p, Vh).reshape(B, H)

    def layer_norm(x):
        mu = jnp.mean(x, axis=-1, keepdims=True)
        var = jnp.mean(jnp.square(x - mu), axis=-1, keepdims=True)
        return (x - mu) * lax.rsqrt(var + LN_EPS) * gamma + beta

    t = layer_norm(attn)
    h1 = t @ w1 + b1
    h1 = jnp.where(h1 >= 0.0, h1, alpha * h1)
    ff = h1 @ w2 + b2
    return layer_norm(ff + t)


if __name__ == "__main__":
    B, S, H = 2, 8, 32        # batch, key length, hsz (query length is 1, as in Block)
    F = 4 * H

    key = jax.random.PRNGKey(0)
    ks = jax.random.split(key, 12)

    q = jax.random.normal(ks[0], (B, 1, H), dtype=jnp.float32)
    k = jax.random.normal(ks[1], (B, S, H), dtype=jnp.float32)
    m_bool = jax.random.uniform(ks[2], (B, 1, S)) > 0.6
    m_bool = m_bool.at[:, :, 0].set(False)    # keep at least one attendable key per row
    m = m_bool.astype(jnp.float32)

    scale = 0.1
    wq = scale * jax.random.normal(ks[3], (H, H), dtype=jnp.float32)
    wk = scale * jax.random.normal(ks[4], (H, H), dtype=jnp.float32)
    wv = scale * jax.random.normal(ks[5], (H, H), dtype=jnp.float32)
    w1 = scale * jax.random.normal(ks[6], (H, F), dtype=jnp.float32)
    b1 = scale * jax.random.normal(ks[7], (1, F), dtype=jnp.float32)
    w2 = scale * jax.random.normal(ks[8], (F, H), dtype=jnp.float32)
    b2 = scale * jax.random.normal(ks[9], (1, H), dtype=jnp.float32)
    gamma = 1.0 + 0.05 * jax.random.normal(ks[10], (1, H), dtype=jnp.float32)
    beta = 0.05 * jax.random.normal(ks[11], (1, H), dtype=jnp.float32)
    alpha = jnp.full((1, F), 0.25, dtype=jnp.float32)   # PyTorch PReLU default init

    params = (wq, wk, wv, w1, b1, w2, b2, gamma, beta, alpha)

    out = jax.block_until_ready(block_forward(q, k, m, params))
    ref = block_reference(q, k, m, params)

    assert out.shape == (B, H), out.shape
    assert bool(jnp.all(jnp.isfinite(out)))
    # bf16 MXU operands + approx reciprocal -> looser tolerance than pure f32.
    assert jnp.allclose(out, ref, atol=2e-2, rtol=2e-2), float(jnp.max(jnp.abs(out - ref)))

    print("KERNEL_OK")
</pallas_src>

<mosaic_0001>
module attributes {stable_mosaic.version = 11 : i64} {
  func.func @block_kernel(%arg0: i32, %arg1: memref<8x128xbf16, #tpu.memory_space<vmem>>, %arg2: memref<8x8x128xbf16, #tpu.memory_space<vmem>>, %arg3: memref<8x1x8xf32, #tpu.memory_space<vmem>>, %arg4: memref<128x128xbf16, #tpu.memory_space<vmem>>, %arg5: memref<128x128xbf16, #tpu.memory_space<vmem>>, %arg6: memref<128x128xbf16, #tpu.memory_space<vmem>>, %arg7: memref<4x128xf32, #tpu.memory_space<vmem>>, %arg8: memref<128x128xbf16, #tpu.memory_space<vmem>>, %arg9: memref<1x128xf32, #tpu.memory_space<vmem>>, %arg10: memref<128x128xbf16, #tpu.memory_space<vmem>>, %arg11: memref<1x128xf32, #tpu.memory_space<vmem>>, %arg12: memref<1x128xf32, #tpu.memory_space<vmem>>, %arg13: memref<1x128xf32, #tpu.memory_space<vmem>>, %arg14: memref<1x128xf32, #tpu.memory_space<vmem>>, %arg15: memref<8x128xf32, #tpu.memory_space<vmem>>) attributes {dimension_semantics = [#tpu.dimension_semantics<parallel>], iteration_bounds = array<i64: 1>, scalar_prefetch = 0 : i64, scratch_operands = 0 : i64, tpu.core_type = #tpu.core_type<tc>, window_params = [{transform_indices = @transform_0, window_bounds = array<i64: 8, 128>}, {transform_indices = @transform_1, window_bounds = array<i64: 8, 8, 128>}, {transform_indices = @transform_2, window_bounds = array<i64: 8, 1, 8>}, {pipeline_mode = #tpu.pipeline_mode<synchronous>, transform_indices = @transform_3, window_bounds = array<i64: 128, 128>}, {pipeline_mode = #tpu.pipeline_mode<synchronous>, transform_indices = @transform_4, window_bounds = array<i64: 128, 128>}, {pipeline_mode = #tpu.pipeline_mode<synchronous>, transform_indices = @transform_5, window_bounds = array<i64: 128, 128>}, {pipeline_mode = #tpu.pipeline_mode<synchronous>, transform_indices = @transform_6, window_bounds = array<i64: 4, 128>}, {pipeline_mode = #tpu.pipeline_mode<synchronous>, transform_indices = @transform_7, window_bounds = array<i64: 128, 128>}, {pipeline_mode = #tpu.pipeline_mode<synchronous>, transform_indices = @transform_8, window_bounds = array<i64: 1, 128>}, {pipeline_mode = #tpu.pipeline_mode<synchronous>, transform_indices = @transform_9, window_bounds = array<i64: 128, 128>}, {pipeline_mode = #tpu.pipeline_mode<synchronous>, transform_indices = @transform_10, window_bounds = array<i64: 1, 128>}, {pipeline_mode = #tpu.pipeline_mode<synchronous>, transform_indices = @transform_11, window_bounds = array<i64: 1, 128>}, {pipeline_mode = #tpu.pipeline_mode<synchronous>, transform_indices = @transform_12, window_bounds = array<i64: 1, 128>}, {pipeline_mode = #tpu.pipeline_mode<synchronous>, transform_indices = @transform_13, window_bounds = array<i64: 1, 128>}, {transform_indices = @transform_14, window_bounds = array<i64: 8, 128>}]} {
    %c0 = arith.constant 0 : index
    %c0_0 = arith.constant 0 : index
    %0 = vector.load %arg1[%c0, %c0_0] : memref<8x128xbf16, #tpu.memory_space<vmem>>, vector<8x128xbf16>
    %c0_1 = arith.constant 0 : index
    %c0_2 = arith.constant 0 : index
    %c0_3 = arith.constant 0 : index
    %1 = vector.load %arg2[%c0_1, %c0_2, %c0_3] : memref<8x8x128xbf16, #tpu.memory_space<vmem>>, vector<8x8x128xbf16>
    %2 = vector.shape_cast %1 : vector<8x8x128xbf16> to vector<64x128xbf16>
    %c0_4 = arith.constant 0 : index
    %c0_5 = arith.constant 0 : index
    %3 = vector.load %arg4[%c0_4, %c0_5] : memref<128x128xbf16, #tpu.memory_space<vmem>>, vector<128x128xbf16>
    %cst = arith.constant dense<0.000000e+00> : vector<8x128xf32>
    %4 = tpu.matmul %0, %3, %cst {dimension_numbers = #tpu.dot_dimension_numbers<[1], [0], [0], [1], [0, 0, 1, 1], [], []>} : vector<8x128xbf16>, vector<128x128xbf16>, vector<8x128xf32> -> vector<8x128xf32>
    %c0_6 = arith.constant 0 : index
    %c0_7 = arith.constant 0 : index
    %5 = vector.load %arg5[%c0_6, %c0_7] : memref<128x128xbf16, #tpu.memory_space<vmem>>, vector<128x128xbf16>
    %cst_8 = arith.constant dense<0.000000e+00> : vector<64x128xf32>
    %6 = tpu.matmul %2, %5, %cst_8 {dimension_numbers = #tpu.dot_dimension_numbers<[1], [0], [0], [1], [0, 0, 1, 1], [], []>} : vector<64x128xbf16>, vector<128x128xbf16>, vector<64x128xf32> -> vector<64x128xf32>
    %c0_9 = arith.constant 0 : index
    %c0_10 = arith.constant 0 : index
    %7 = vector.load %arg6[%c0_9, %c0_10] : memref<128x128xbf16, #tpu.memory_space<vmem>>, vector<128x128xbf16>
    %cst_11 = arith.constant dense<0.000000e+00> : vector<64x128xf32>
    %8 = tpu.matmul %2, %7, %cst_11 {dimension_numbers = #tpu.dot_dimension_numbers<[1], [0], [0], [1], [0, 0, 1, 1], [], []>} : vector<64x128xbf16>, vector<128x128xbf16>, vector<64x128xf32> -> vector<64x128xf32>
    %9 = vector.shape_cast %6 : vector<64x128xf32> to vector<8x8x128xf32>
    %10 = arith.truncf %9 : vector<8x8x128xf32> to vector<8x8x128xbf16>
    %11 = vector.shape_cast %8 : vector<64x128xf32> to vector<8x8x128xf32>
    %12 = arith.truncf %11 : vector<8x8x128xf32> to vector<8x8x128xbf16>
    %c0_12 = arith.constant 0 : index
    %c0_13 = arith.constant 0 : index
    %13 = vector.load %arg7[%c0_12, %c0_13] : memref<4x128xf32, #tpu.memory_space<vmem>>, vector<4x128xf32>
    %14 = vector.shape_cast %4 : vector<8x128xf32> to vector<8x1x128xf32>
    %15 = vector.shape_cast %13 : vector<4x128xf32> to vector<1x4x128xf32>
    %16 = vector.broadcast %14 : vector<8x1x128xf32> to vector<8x4x128xf32>
    %17 = vector.broadcast %15 : vector<1x4x128xf32> to vector<8x4x128xf32>
    %18 = arith.mulf %16, %17 : vector<8x4x128xf32>
    %19 = arith.truncf %18 : vector<8x4x128xf32> to vector<8x4x128xbf16>
    "tpu.trace_start"() <{level = 10 : i32, message = "bhd,bsd->bhs"}> : () -> ()
    %cst_14 = arith.constant dense<0.000000e+00> : vector<8x4x8xf32>
    %20 = tpu.matmul %19, %10, %cst_14 {dimension_numbers = #tpu.dot_dimension_numbers<[2], [2], [1], [1], [0, 0, 0, 1, 1, 1], [0], [0]>} : vector<8x4x128xbf16>, vector<8x8x128xbf16>, vector<8x4x8xf32> -> vector<8x4x8xf32>
    "tpu.trace_stop"() : () -> ()
    %c0_15 = arith.constant 0 : index
    %c0_16 = arith.constant 0 : index
    %c0_17 = arith.constant 0 : index
    %21 = vector.load %arg3[%c0_15, %c0_16, %c0_17] : memref<8x1x8xf32, #tpu.memory_space<vmem>>, vector<8x1x8xf32>
    %cst_18 = arith.constant 5.000000e-01 : f32
    %22 = vector.broadcast %cst_18 : f32 to vector<8x1x8xf32>
    %23 = arith.cmpf ogt, %21, %22 : vector<8x1x8xf32>
    %cst_19 = arith.constant 0xFF800000 : f32
    %24 = vector.shape_cast %23 : vector<8x1x8xi1> to vector<8x1x8xi1>
    %25 = vector.broadcast %24 : vector<8x1x8xi1> to vector<8x4x8xi1>
    %26 = vector.broadcast %cst_19 : f32 to vector<8x4x8xf32>
    %27 = arith.select %25, %26, %20 : vector<8x4x8xi1>, vector<8x4x8xf32>
    %cst_20 = arith.constant dense<0xFF800000> : vector<8x4xf32>
    %28 = vector.multi_reduction <maximumf>, %27, %cst_20 [2] : vector<8x4x8xf32> to vector<8x4xf32>
    %29 = vector.shape_cast %28 : vector<8x4xf32> to vector<8x4x1xf32>
    %30 = vector.broadcast %29 : vector<8x4x1xf32> to vector<8x4x8xf32>
    %31 = arith.subf %27, %30 : vector<8x4x8xf32>
    %32 = math.exp %31 : vector<8x4x8xf32>
    %cst_21 = arith.constant dense<0.000000e+00> : vector<8x4xf32>
    %33 = vector.multi_reduction <add>, %32, %cst_21 [2] : vector<8x4x8xf32> to vector<8x4xf32>
    %34 = vector.shape_cast %33 : vector<8x4xf32> to vector<8x4x1xf32>
    %35 = tpu.reciprocal %34 {approx = true} : vector<8x4x1xf32> -> vector<8x4x1xf32>
    %36 = vector.broadcast %35 : vector<8x4x1xf32> to vector<8x4x8xf32>
    %37 = arith.mulf %32, %36 : vector<8x4x8xf32>
    %38 = arith.truncf %37 : vector<8x4x8xf32> to vector<8x4x8xbf16>
    "tpu.trace_start"() <{level = 10 : i32, message = "bhs,bsd->bhd"}> : () -> ()
    %cst_22 = arith.constant dense<0.000000e+00> : vector<8x4x128xf32>
    %39 = tpu.matmul %38, %12, %cst_22 {dimension_numbers = #tpu.dot_dimension_numbers<[2], [1], [1], [2], [0, 0, 0, 1, 1, 2], [0], [0]>} : vector<8x4x8xbf16>, vector<8x8x128xbf16>, vector<8x4x128xf32> -> vector<8x4x128xf32>
    "tpu.trace_stop"() : () -> ()
    %40 = vector.shape_cast %13 : vector<4x128xf32> to vector<1x4x128xf32>
    %41 = vector.broadcast %40 : vector<1x4x128xf32> to vector<8x4x128xf32>
    %42 = arith.mulf %39, %41 : vector<8x4x128xf32>
    %cst_23 = arith.constant dense<0.000000e+00> : vector<8x128xf32>
    %43 = vector.multi_reduction <add>, %42, %cst_23 [1] : vector<8x4x128xf32> to vector<8x128xf32>
    %c0_24 = arith.constant 0 : index
    %c0_25 = arith.constant 0 : index
    %44 = vector.load %arg12[%c0_24, %c0_25] : memref<1x128xf32, #tpu.memory_space<vmem>>, vector<1x128xf32>
    %c0_26 = arith.constant 0 : index
    %c0_27 = arith.constant 0 : index
    %45 = vector.load %arg13[%c0_26, %c0_27] : memref<1x128xf32, #tpu.memory_space<vmem>>, vector<1x128xf32>
    %cst_28 = arith.constant dense<0.000000e+00> : vector<8xf32>
    %46 = vector.multi_reduction <add>, %43, %cst_28 [1] : vector<8x128xf32> to vector<8xf32>
    %47 = vector.shape_cast %46 : vector<8xf32> to vector<8x1xf32>
    %cst_29 = arith.constant 3.125000e-02 : f32
    %48 = vector.broadcast %cst_29 : f32 to vector<8x1xf32>
    %49 = arith.mulf %47, %48 : vector<8x1xf32>
    %50 = vector.broadcast %49 : vector<8x1xf32> to vector<8x128xf32>
    %51 = arith.subf %43, %50 : vector<8x128xf32>
    %52 = arith.mulf %51, %51 : vector<8x128xf32>
    %cst_30 = arith.constant dense<0.000000e+00> : vector<8xf32>
    %53 = vector.multi_reduction <add>, %52, %cst_30 [1] : vector<8x128xf32> to vector<8xf32>
    %54 = vector.shape_cast %53 : vector<8xf32> to vector<8x1xf32>
    %55 = arith.mulf %49, %49 : vector<8x1xf32>
    %cst_31 = arith.constant 9.600000e+01 : f32
    %56 = vector.broadcast %cst_31 : f32 to vector<8x1xf32>
    %57 = arith.mulf %56, %55 : vector<8x1xf32>
    %58 = arith.subf %54, %57 : vector<8x1xf32>
    %cst_32 = arith.constant 3.125000e-02 : f32
    %59 = vector.broadcast %cst_32 : f32 to vector<8x1xf32>
    %60 = arith.mulf %58, %59 : vector<8x1xf32>
    %cst_33 = arith.constant 9.99999974E-6 : f32
    %61 = vector.broadcast %cst_33 : f32 to vector<8x1xf32>
    %62 = arith.addf %60, %61 : vector<8x1xf32>
    %63 = math.rsqrt %62 : vector<8x1xf32>
    %64 = vector.broadcast %63 : vector<8x1xf32> to vector<8x128xf32>
    %65 = arith.mulf %51, %64 : vector<8x128xf32>
    %66 = vector.broadcast %44 : vector<1x128xf32> to vector<8x128xf32>
    %67 = arith.mulf %65, %66 : vector<8x128xf32>
    %68 = vector.broadcast %45 : vector<1x128xf32> to vector<8x128xf32>
    %69 = arith.addf %67, %68 : vector<8x128xf32>
    %70 = arith.truncf %69 : vector<8x128xf32> to vector<8x128xbf16>
    %c0_34 = arith.constant 0 : index
    %c0_35 = arith.constant 0 : index
    %71 = vector.load %arg8[%c0_34, %c0_35] : memref<128x128xbf16, #tpu.memory_space<vmem>>, vector<128x128xbf16>
    %cst_36 = arith.constant dense<0.000000e+00> : vector<8x128xf32>
    %72 = tpu.matmul %70, %71, %cst_36 {dimension_numbers = #tpu.dot_dimension_numbers<[1], [0], [0], [1], [0, 0, 1, 1], [], []>} : vector<8x128xbf16>, vector<128x128xbf16>, vector<8x128xf32> -> vector<8x128xf32>
    %c0_37 = arith.constant 0 : index
    %c0_38 = arith.constant 0 : index
    %73 = vector.load %arg9[%c0_37, %c0_38] : memref<1x128xf32, #tpu.memory_space<vmem>>, vector<1x128xf32>
    %74 = vector.broadcast %73 : vector<1x128xf32> to vector<8x128xf32>
    %75 = arith.addf %72, %74 : vector<8x128xf32>
    %cst_39 = arith.constant 0.000000e+00 : f32
    %76 = vector.broadcast %cst_39 : f32 to vector<8x128xf32>
    %77 = arith.cmpf oge, %75, %76 : vector<8x128xf32>
    %c0_40 = arith.constant 0 : index
    %c0_41 = arith.constant 0 : index
    %78 = vector.load %arg14[%c0_40, %c0_41] : memref<1x128xf32, #tpu.memory_space<vmem>>, vector<1x128xf32>
    %79 = vector.broadcast %78 : vector<1x128xf32> to vector<8x128xf32>
    %80 = arith.mulf %79, %75 : vector<8x128xf32>
    %81 = arith.select %77, %75, %80 : vector<8x128xi1>, vector<8x128xf32>
    %82 = arith.truncf %81 : vector<8x128xf32> to vector<8x128xbf16>
    %c0_42 = arith.constant 0 : index
    %c0_43 = arith.constant 0 : index
    %83 = vector.load %arg10[%c0_42, %c0_43] : memref<128x128xbf16, #tpu.memory_space<vmem>>, vector<128x128xbf16>
    %cst_44 = arith.constant dense<0.000000e+00> : vector<8x128xf32>
    %84 = tpu.matmul %82, %83, %cst_44 {dimension_numbers = #tpu.dot_dimension_numbers<[1], [0], [0], [1], [0, 0, 1, 1], [], []>} : vector<8x128xbf16>, vector<128x128xbf16>, vector<8x128xf32> -> vector<8x128xf32>
    %c0_45 = arith.constant 0 : index
    %c0_46 = arith.constant 0 : index
    %85 = vector.load %arg11[%c0_45, %c0_46] : memref<1x128xf32, #tpu.memory_space<vmem>>, vector<1x128xf32>
    %86 = vector.broadcast %85 : vector<1x128xf32> to vector<8x128xf32>
    %87 = arith.addf %84, %86 : vector<8x128xf32>
    %88 = arith.addf %87, %69 : vector<8x128xf32>
    %cst_47 = arith.constant dense<0.000000e+00> : vector<8xf32>
    %89 = vector.multi_reduction <add>, %88, %cst_47 [1] : vector<8x128xf32> to vector<8xf32>
    %90 = vector.shape_cast %89 : vector<8xf32> to vector<8x1xf32>
    %cst_48 = arith.constant 3.125000e-02 : f32
    %91 = vector.broadcast %cst_48 : f32 to vector<8x1xf32>
    %92 = arith.mulf %90, %91 : vector<8x1xf32>
    %93 = vector.broadcast %92 : vector<8x1xf32> to vector<8x128xf32>
    %94 = arith.subf %88, %93 : vector<8x128xf32>
    %95 = arith.mulf %94, %94 : vector<8x128xf32>
    %cst_49 = arith.constant dense<0.000000e+00> : vector<8xf32>
    %96 = vector.multi_reduction <add>, %95, %cst_49 [1] : vector<8x128xf32> to vector<8xf32>
    %97 = vector.shape_cast %96 : vector<8xf32> to vector<8x1xf32>
    %98 = arith.mulf %92, %92 : vector<8x1xf32>
    %cst_50 = arith.constant 9.600000e+01 : f32
    %99 = vector.broadcast %cst_50 : f32 to vector<8x1xf32>
    %100 = arith.mulf %99, %98 : vector<8x1xf32>
    %101 = arith.subf %97, %100 : vector<8x1xf32>
    %cst_51 = arith.constant 3.125000e-02 : f32
    %102 = vector.broadcast %cst_51 : f32 to vector<8x1xf32>
    %103 = arith.mulf %101, %102 : vector<8x1xf32>
    %cst_52 = arith.constant 9.99999974E-6 : f32
    %104 = vector.broadcast %cst_52 : f32 to vector<8x1xf32>
    %105 = arith.addf %103, %104 : vector<8x1xf32>
    %106 = math.rsqrt %105 : vector<8x1xf32>
    %107 = vector.broadcast %106 : vector<8x1xf32> to vector<8x128xf32>
    %108 = arith.mulf %94, %107 : vector<8x128xf32>
    %109 = vector.broadcast %44 : vector<1x128xf32> to vector<8x128xf32>
    %110 = arith.mulf %108, %109 : vector<8x128xf32>
    %111 = vector.broadcast %45 : vector<1x128xf32> to vector<8x128xf32>
    %112 = arith.addf %110, %111 : vector<8x128xf32>
    %c0_53 = arith.constant 0 : index
    %c0_54 = arith.constant 0 : index
    %113 = vector.load %arg15[%c0_53, %c0_54] : memref<8x128xf32, #tpu.memory_space<vmem>>, vector<8x128xf32>
    tpu.vector_store %arg15[%c0_53, %c0_54], %112 {strides = array<i32>} : memref<8x128xf32, #tpu.memory_space<vmem>>, vector<8x128xf32>,
    return
  }
  func.func @transform_0(%arg0: i32) -> (i32, i32) {
    %c0_i32 = arith.constant 0 : i32
    %c0_i32_0 = arith.constant 0 : i32
    return %arg0, %c0_i32 : i32, i32
  }
  func.func @transform_1(%arg0: i32) -> (i32, i32, i32) {
    %c0_i32 = arith.constant 0 : i32
    %c0_i32_0 = arith.constant 0 : i32
    %c0_i32_1 = arith.constant 0 : i32
    return %arg0, %c0_i32, %c0_i32_0 : i32, i32, i32
  }
  func.func @transform_2(%arg0: i32) -> (i32, i32, i32) {
    %c0_i32 = arith.constant 0 : i32
    %c0_i32_0 = arith.constant 0 : i32
    %c0_i32_1 = arith.constant 0 : i32
    return %arg0, %c0_i32, %c0_i32_0 : i32, i32, i32
  }
  func.func @transform_3(%arg0: i32) -> (i32, i32) {
    %c0_i32 = arith.constant 0 : i32
    %c0_i32_0 = arith.constant 0 : i32
    %c0_i32_1 = arith.constant 0 : i32
    return %c0_i32, %c0_i32_0 : i32, i32
  }
  func.func @transform_4(%arg0: i32) -> (i32, i32) {
    %c0_i32 = arith.constant 0 : i32
    %c0_i32_0 = arith.constant 0 : i32
    %c0_i32_1 = arith.constant 0 : i32
    return %c0_i32, %c0_i32_0 : i32, i32
  }
  func.func @transform_5(%arg0: i32) -> (i32, i32) {
    %c0_i32 = arith.constant 0 : i32
    %c0_i32_0 = arith.constant 0 : i32
    %c0_i32_1 = arith.constant 0 : i32
    return %c0_i32, %c0_i32_0 : i32, i32
  }
  func.func @transform_6(%arg0: i32) -> (i32, i32) {
    %c0_i32 = arith.constant 0 : i32
    %c0_i32_0 = arith.constant 0 : i32
    %c0_i32_1 = arith.constant 0 : i32
    return %c0_i32, %c0_i32_0 : i32, i32
  }
  func.func @transform_7(%arg0: i32) -> (i32, i32) {
    %c0_i32 = arith.constant 0 : i32
    %c0_i32_0 = arith.constant 0 : i32
    %c0_i32_1 = arith.constant 0 : i32
    return %c0_i32, %c0_i32_0 : i32, i32
  }
  func.func @transform_8(%arg0: i32) -> (i32, i32) {
    %c0_i32 = arith.constant 0 : i32
    %c0_i32_0 = arith.constant 0 : i32
    %c0_i32_1 = arith.constant 0 : i32
    return %c0_i32, %c0_i32_0 : i32, i32
  }
  func.func @transform_9(%arg0: i32) -> (i32, i32) {
    %c0_i32 = arith.constant 0 : i32
    %c0_i32_0 = arith.constant 0 : i32
    %c0_i32_1 = arith.constant 0 : i32
    return %c0_i32, %c0_i32_0 : i32, i32
  }
  func.func @transform_10(%arg0: i32) -> (i32, i32) {
    %c0_i32 = arith.constant 0 : i32
    %c0_i32_0 = arith.constant 0 : i32
    %c0_i32_1 = arith.constant 0 : i32
    return %c0_i32, %c0_i32_0 : i32, i32
  }
  func.func @transform_11(%arg0: i32) -> (i32, i32) {
    %c0_i32 = arith.constant 0 : i32
    %c0_i32_0 = arith.constant 0 : i32
    %c0_i32_1 = arith.constant 0 : i32
    return %c0_i32, %c0_i32_0 : i32, i32
  }
  func.func @transform_12(%arg0: i32) -> (i32, i32) {
    %c0_i32 = arith.constant 0 : i32
    %c0_i32_0 = arith.constant 0 : i32
    %c0_i32_1 = arith.constant 0 : i32
    return %c0_i32, %c0_i32_0 : i32, i32
  }
  func.func @transform_13(%arg0: i32) -> (i32, i32) {
    %c0_i32 = arith.constant 0 : i32
    %c0_i32_0 = arith.constant 0 : i32
    %c0_i32_1 = arith.constant 0 : i32
    return %c0_i32, %c0_i32_0 : i32, i32
  }
  func.func @transform_14(%arg0: i32) -> (i32, i32) {
    %c0_i32 = arith.constant 0 : i32
    %c0_i32_0 = arith.constant 0 : i32
    return %arg0, %c0_i32 : i32, i32
  }
}

module attributes {stable_mosaic.version = 11 : i64} {
  func.func @block_kernel(%arg0: i32, %arg1: memref<8x128xbf16, #tpu.memory_space<vmem>>, %arg2: memref<8x8x128xbf16, #tpu.memory_space<vmem>>, %arg3: memref<8x1x8xf32, #tpu.memory_space<vmem>>, %arg4: memref<128x128xbf16, #tpu.memory_space<vmem>>, %arg5: memref<128x128xbf16, #tpu.memory_space<vmem>>, %arg6: memref<128x128xbf16, #tpu.memory_space<vmem>>, %arg7: memref<4x128xf32, #tpu.memory_space<vmem>>, %arg8: memref<128x128xbf16, #tpu.memory_space<vmem>>, %arg9: memref<1x128xf32, #tpu.memory_space<vmem>>, %arg10: memref<128x128xbf16, #tpu.memory_space<vmem>>, %arg11: memref<1x128xf32, #tpu.memory_space<vmem>>, %arg12: memref<1x128xf32, #tpu.memory_space<vmem>>, %arg13: memref<1x128xf32, #tpu.memory_space<vmem>>, %arg14: memref<1x128xf32, #tpu.memory_space<vmem>>, %arg15: memref<8x128xf32, #tpu.memory_space<vmem>>) attributes {dimension_semantics = [#tpu.dimension_semantics<parallel>], iteration_bounds = array<i64: 1>, scalar_prefetch = 0 : i64, scratch_operands = 0 : i64, tpu.core_type = #tpu.core_type<tc>, window_params = [{transform_indices = @transform_0, window_bounds = array<i64: 8, 128>}, {transform_indices = @transform_1, window_bounds = array<i64: 8, 8, 128>}, {transform_indices = @transform_2, window_bounds = array<i64: 8, 1, 8>}, {pipeline_mode = #tpu.pipeline_mode<synchronous>, transform_indices = @transform_3, window_bounds = array<i64: 128, 128>}, {pipeline_mode = #tpu.pipeline_mode<synchronous>, transform_indices = @transform_4, window_bounds = array<i64: 128, 128>}, {pipeline_mode = #tpu.pipeline_mode<synchronous>, transform_indices = @transform_5, window_bounds = array<i64: 128, 128>}, {pipeline_mode = #tpu.pipeline_mode<synchronous>, transform_indices = @transform_6, window_bounds = array<i64: 4, 128>}, {pipeline_mode = #tpu.pipeline_mode<synchronous>, transform_indices = @transform_7, window_bounds = array<i64: 128, 128>}, {pipeline_mode = #tpu.pipeline_mode<synchronous>, transform_indices = @transform_8, window_bounds = array<i64: 1, 128>}, {pipeline_mode = #tpu.pipeline_mode<synchronous>, transform_indices = @transform_9, window_bounds = array<i64: 128, 128>}, {pipeline_mode = #tpu.pipeline_mode<synchronous>, transform_indices = @transform_10, window_bounds = array<i64: 1, 128>}, {pipeline_mode = #tpu.pipeline_mode<synchronous>, transform_indices = @transform_11, window_bounds = array<i64: 1, 128>}, {pipeline_mode = #tpu.pipeline_mode<synchronous>, transform_indices = @transform_12, window_bounds = array<i64: 1, 128>}, {pipeline_mode = #tpu.pipeline_mode<synchronous>, transform_indices = @transform_13, window_bounds = array<i64: 1, 128>}, {transform_indices = @transform_14, window_bounds = array<i64: 8, 128>}]} {
    %c0 = arith.constant 0 : index
    %c0_0 = arith.constant 0 : index
    %0 = vector.load %arg1[%c0, %c0_0] : memref<8x128xbf16, #tpu.memory_space<vmem>>, vector<8x128xbf16>
    %c0_1 = arith.constant 0 : index
    %c0_2 = arith.constant 0 : index
    %c0_3 = arith.constant 0 : index
    %1 = vector.load %arg2[%c0_1, %c0_2, %c0_3] : memref<8x8x128xbf16, #tpu.memory_space<vmem>>, vector<8x8x128xbf16>
    %2 = vector.shape_cast %1 : vector<8x8x128xbf16> to vector<64x128xbf16>
    %c0_4 = arith.constant 0 : index
    %c0_5 = arith.constant 0 : index
    %3 = vector.load %arg4[%c0_4, %c0_5] : memref<128x128xbf16, #tpu.memory_space<vmem>>, vector<128x128xbf16>
    %cst = arith.constant dense<0.000000e+00> : vector<8x128xf32>
    %4 = tpu.matmul %0, %3, %cst {dimension_numbers = #tpu.dot_dimension_numbers<[1], [0], [0], [1], [0, 0, 1, 1], [], []>} : vector<8x128xbf16>, vector<128x128xbf16>, vector<8x128xf32> -> vector<8x128xf32>
    %c0_6 = arith.constant 0 : index
    %c0_7 = arith.constant 0 : index
    %5 = vector.load %arg5[%c0_6, %c0_7] : memref<128x128xbf16, #tpu.memory_space<vmem>>, vector<128x128xbf16>
    %cst_8 = arith.constant dense<0.000000e+00> : vector<64x128xf32>
    %6 = tpu.matmul %2, %5, %cst_8 {dimension_numbers = #tpu.dot_dimension_numbers<[1], [0], [0], [1], [0, 0, 1, 1], [], []>} : vector<64x128xbf16>, vector<128x128xbf16>, vector<64x128xf32> -> vector<64x128xf32>
    %c0_9 = arith.constant 0 : index
    %c0_10 = arith.constant 0 : index
    %7 = vector.load %arg6[%c0_9, %c0_10] : memref<128x128xbf16, #tpu.memory_space<vmem>>, vector<128x128xbf16>
    %cst_11 = arith.constant dense<0.000000e+00> : vector<64x128xf32>
    %8 = tpu.matmul %2, %7, %cst_11 {dimension_numbers = #tpu.dot_dimension_numbers<[1], [0], [0], [1], [0, 0, 1, 1], [], []>} : vector<64x128xbf16>, vector<128x128xbf16>, vector<64x128xf32> -> vector<64x128xf32>
    %9 = vector.shape_cast %6 : vector<64x128xf32> to vector<8x8x128xf32>
    %10 = arith.truncf %9 : vector<8x8x128xf32> to vector<8x8x128xbf16>
    %11 = vector.shape_cast %8 : vector<64x128xf32> to vector<8x8x128xf32>
    %12 = arith.truncf %11 : vector<8x8x128xf32> to vector<8x8x128xbf16>
    %c0_12 = arith.constant 0 : index
    %c0_13 = arith.constant 0 : index
    %13 = vector.load %arg7[%c0_12, %c0_13] : memref<4x128xf32, #tpu.memory_space<vmem>>, vector<4x128xf32>
    %14 = vector.shape_cast %4 : vector<8x128xf32> to vector<8x1x128xf32>
    %15 = vector.shape_cast %13 : vector<4x128xf32> to vector<1x4x128xf32>
    %16 = vector.broadcast %14 : vector<8x1x128xf32> to vector<8x4x128xf32>
    %17 = vector.broadcast %15 : vector<1x4x128xf32> to vector<8x4x128xf32>
    %18 = arith.mulf %16, %17 : vector<8x4x128xf32>
    %19 = arith.truncf %18 : vector<8x4x128xf32> to vector<8x4x128xbf16>
    "tpu.trace_start"() <{level = 10 : i32, message = "bhd,bsd->bhs"}> : () -> ()
    %cst_14 = arith.constant dense<0.000000e+00> : vector<8x4x8xf32>
    %20 = tpu.matmul %19, %10, %cst_14 {dimension_numbers = #tpu.dot_dimension_numbers<[2], [2], [1], [1], [0, 0, 0, 1, 1, 1], [0], [0]>} : vector<8x4x128xbf16>, vector<8x8x128xbf16>, vector<8x4x8xf32> -> vector<8x4x8xf32>
    "tpu.trace_stop"() : () -> ()
    %c0_15 = arith.constant 0 : index
    %c0_16 = arith.constant 0 : index
    %c0_17 = arith.constant 0 : index
    %21 = vector.load %arg3[%c0_15, %c0_16, %c0_17] : memref<8x1x8xf32, #tpu.memory_space<vmem>>, vector<8x1x8xf32>
    %cst_18 = arith.constant 5.000000e-01 : f32
    %22 = vector.broadcast %cst_18 : f32 to vector<8x1x8xf32>
    %23 = arith.cmpf ogt, %21, %22 : vector<8x1x8xf32>
    %cst_19 = arith.constant 0xFF800000 : f32
    %24 = vector.shape_cast %23 : vector<8x1x8xi1> to vector<8x1x8xi1>
    %25 = vector.broadcast %24 : vector<8x1x8xi1> to vector<8x4x8xi1>
    %26 = vector.broadcast %cst_19 : f32 to vector<8x4x8xf32>
    %27 = arith.select %25, %26, %20 : vector<8x4x8xi1>, vector<8x4x8xf32>
    %cst_20 = arith.constant dense<0xFF800000> : vector<8x4xf32>
    %28 = vector.multi_reduction <maximumf>, %27, %cst_20 [2] : vector<8x4x8xf32> to vector<8x4xf32>
    %29 = vector.shape_cast %28 : vector<8x4xf32> to vector<8x4x1xf32>
    %30 = vector.broadcast %29 : vector<8x4x1xf32> to vector<8x4x8xf32>
    %31 = arith.subf %27, %30 : vector<8x4x8xf32>
    %32 = math.exp %31 : vector<8x4x8xf32>
    %cst_21 = arith.constant dense<0.000000e+00> : vector<8x4xf32>
    %33 = vector.multi_reduction <add>, %32, %cst_21 [2] : vector<8x4x8xf32> to vector<8x4xf32>
    %34 = vector.shape_cast %33 : vector<8x4xf32> to vector<8x4x1xf32>
    %35 = tpu.reciprocal %34 {approx = true} : vector<8x4x1xf32> -> vector<8x4x1xf32>
    %36 = vector.broadcast %35 : vector<8x4x1xf32> to vector<8x4x8xf32>
    %37 = arith.mulf %32, %36 : vector<8x4x8xf32>
    %38 = arith.truncf %37 : vector<8x4x8xf32> to vector<8x4x8xbf16>
    "tpu.trace_start"() <{level = 10 : i32, message = "bhs,bsd->bhd"}> : () -> ()
    %cst_22 = arith.constant dense<0.000000e+00> : vector<8x4x128xf32>
    %39 = tpu.matmul %38, %12, %cst_22 {dimension_numbers = #tpu.dot_dimension_numbers<[2], [1], [1], [2], [0, 0, 0, 1, 1, 2], [0], [0]>} : vector<8x4x8xbf16>, vector<8x8x128xbf16>, vector<8x4x128xf32> -> vector<8x4x128xf32>
    "tpu.trace_stop"() : () -> ()
    %40 = vector.shape_cast %13 : vector<4x128xf32> to vector<1x4x128xf32>
    %41 = vector.broadcast %40 : vector<1x4x128xf32> to vector<8x4x128xf32>
    %42 = arith.mulf %39, %41 : vector<8x4x128xf32>
    %cst_23 = arith.constant dense<0.000000e+00> : vector<8x128xf32>
    %43 = vector.multi_reduction <add>, %42, %cst_23 [1] : vector<8x4x128xf32> to vector<8x128xf32>
    %c0_24 = arith.constant 0 : index
    %c0_25 = arith.constant 0 : index
    %44 = vector.load %arg12[%c0_24, %c0_25] : memref<1x128xf32, #tpu.memory_space<vmem>>, vector<1x128xf32>
    %c0_26 = arith.constant 0 : index
    %c0_27 = arith.constant 0 : index
    %45 = vector.load %arg13[%c0_26, %c0_27] : memref<1x128xf32, #tpu.memory_space<vmem>>, vector<1x128xf32>
    %cst_28 = arith.constant dense<0.000000e+00> : vector<8xf32>
    %46 = vector.multi_reduction <add>, %43, %cst_28 [1] : vector<8x128xf32> to vector<8xf32>
    %47 = vector.shape_cast %46 : vector<8xf32> to vector<8x1xf32>
    %cst_29 = arith.constant 3.125000e-02 : f32
    %48 = vector.broadcast %cst_29 : f32 to vector<8x1xf32>
    %49 = arith.mulf %47, %48 : vector<8x1xf32>
    %50 = vector.broadcast %49 : vector<8x1xf32> to vector<8x128xf32>
    %51 = arith.subf %43, %50 : vector<8x128xf32>
    %52 = arith.mulf %51, %51 : vector<8x128xf32>
    %cst_30 = arith.constant dense<0.000000e+00> : vector<8xf32>
    %53 = vector.multi_reduction <add>, %52, %cst_30 [1] : vector<8x128xf32> to vector<8xf32>
    %54 = vector.shape_cast %53 : vector<8xf32> to vector<8x1xf32>
    %55 = arith.mulf %49, %49 : vector<8x1xf32>
    %cst_31 = arith.constant 9.600000e+01 : f32
    %56 = vector.broadcast %cst_31 : f32 to vector<8x1xf32>
    %57 = arith.mulf %56, %55 : vector<8x1xf32>
    %58 = arith.subf %54, %57 : vector<8x1xf32>
    %cst_32 = arith.constant 3.125000e-02 : f32
    %59 = vector.broadcast %cst_32 : f32 to vector<8x1xf32>
    %60 = arith.mulf %58, %59 : vector<8x1xf32>
    %cst_33 = arith.constant 9.99999974E-6 : f32
    %61 = vector.broadcast %cst_33 : f32 to vector<8x1xf32>
    %62 = arith.addf %60, %61 : vector<8x1xf32>
    %63 = math.rsqrt %62 : vector<8x1xf32>
    %64 = vector.broadcast %63 : vector<8x1xf32> to vector<8x128xf32>
    %65 = arith.mulf %51, %64 : vector<8x128xf32>
    %66 = vector.broadcast %44 : vector<1x128xf32> to vector<8x128xf32>
    %67 = arith.mulf %65, %66 : vector<8x128xf32>
    %68 = vector.broadcast %45 : vector<1x128xf32> to vector<8x128xf32>
    %69 = arith.addf %67, %68 : vector<8x128xf32>
    %70 = arith.truncf %69 : vector<8x128xf32> to vector<8x128xbf16>
    %c0_34 = arith.constant 0 : index
    %c0_35 = arith.constant 0 : index
    %71 = vector.load %arg8[%c0_34, %c0_35] : memref<128x128xbf16, #tpu.memory_space<vmem>>, vector<128x128xbf16>
    %cst_36 = arith.constant dense<0.000000e+00> : vector<8x128xf32>
    %72 = tpu.matmul %70, %71, %cst_36 {dimension_numbers = #tpu.dot_dimension_numbers<[1], [0], [0], [1], [0, 0, 1, 1], [], []>} : vector<8x128xbf16>, vector<128x128xbf16>, vector<8x128xf32> -> vector<8x128xf32>
    %c0_37 = arith.constant 0 : index
    %c0_38 = arith.constant 0 : index
    %73 = vector.load %arg9[%c0_37, %c0_38] : memref<1x128xf32, #tpu.memory_space<vmem>>, vector<1x128xf32>
    %74 = vector.broadcast %73 : vector<1x128xf32> to vector<8x128xf32>
    %75 = arith.addf %72, %74 : vector<8x128xf32>
    %cst_39 = arith.constant 0.000000e+00 : f32
    %76 = vector.broadcast %cst_39 : f32 to vector<8x128xf32>
    %77 = arith.cmpf oge, %75, %76 : vector<8x128xf32>
    %c0_40 = arith.constant 0 : index
    %c0_41 = arith.constant 0 : index
    %78 = vector.load %arg14[%c0_40, %c0_41] : memref<1x128xf32, #tpu.memory_space<vmem>>, vector<1x128xf32>
    %79 = vector.broadcast %78 : vector<1x128xf32> to vector<8x128xf32>
    %80 = arith.mulf %79, %75 : vector<8x128xf32>
    %81 = arith.select %77, %75, %80 : vector<8x128xi1>, vector<8x128xf32>
    %82 = arith.truncf %81 : vector<8x128xf32> to vector<8x128xbf16>
    %c0_42 = arith.constant 0 : index
    %c0_43 = arith.constant 0 : index
    %83 = vector.load %arg10[%c0_42, %c0_43] : memref<128x128xbf16, #tpu.memory_space<vmem>>, vector<128x128xbf16>
    %cst_44 = arith.constant dense<0.000000e+00> : vector<8x128xf32>
    %84 = tpu.matmul %82, %83, %cst_44 {dimension_numbers = #tpu.dot_dimension_numbers<[1], [0], [0], [1], [0, 0, 1, 1], [], []>} : vector<8x128xbf16>, vector<128x128xbf16>, vector<8x128xf32> -> vector<8x128xf32>
    %c0_45 = arith.constant 0 : index
    %c0_46 = arith.constant 0 : index
    %85 = vector.load %arg11[%c0_45, %c0_46] : memref<1x128xf32, #tpu.memory_space<vmem>>, vector<1x128xf32>
    %86 = vector.broadcast %85 : vector<1x128xf32> to vector<8x128xf32>
    %87 = arith.addf %84, %86 : vector<8x128xf32>
    %88 = arith.addf %87, %69 : vector<8x128xf32>
    %cst_47 = arith.constant dense<0.000000e+00> : vector<8xf32>
    %89 = vector.multi_reduction <add>, %88, %cst_47 [1] : vector<8x128xf32> to vector<8xf32>
    %90 = vector.shape_cast %89 : vector<8xf32> to vector<8x1xf32>
    %cst_48 = arith.constant 3.125000e-02 : f32
    %91 = vector.broadcast %cst_48 : f32 to vector<8x1xf32>
    %92 = arith.mulf %90, %91 : vector<8x1xf32>
    %93 = vector.broadcast %92 : vector<8x1xf32> to vector<8x128xf32>
    %94 = arith.subf %88, %93 : vector<8x128xf32>
    %95 = arith.mulf %94, %94 : vector<8x128xf32>
    %cst_49 = arith.constant dense<0.000000e+00> : vector<8xf32>
    %96 = vector.multi_reduction <add>, %95, %cst_49 [1] : vector<8x128xf32> to vector<8xf32>
    %97 = vector.shape_cast %96 : vector<8xf32> to vector<8x1xf32>
    %98 = arith.mulf %92, %92 : vector<8x1xf32>
    %cst_50 = arith.constant 9.600000e+01 : f32
    %99 = vector.broadcast %cst_50 : f32 to vector<8x1xf32>
    %100 = arith.mulf %99, %98 : vector<8x1xf32>
    %101 = arith.subf %97, %100 : vector<8x1xf32>
    %cst_51 = arith.constant 3.125000e-02 : f32
    %102 = vector.broadcast %cst_51 : f32 to vector<8x1xf32>
    %103 = arith.mulf %101, %102 : vector<8x1xf32>
    %cst_52 = arith.constant 9.99999974E-6 : f32
    %104 = vector.broadcast %cst_52 : f32 to vector<8x1xf32>
    %105 = arith.addf %103, %104 : vector<8x1xf32>
    %106 = math.rsqrt %105 : vector<8x1xf32>
    %107 = vector.broadcast %106 : vector<8x1xf32> to vector<8x128xf32>
    %108 = arith.mulf %94, %107 : vector<8x128xf32>
    %109 = vector.broadcast %44 : vector<1x128xf32> to vector<8x128xf32>
    %110 = arith.mulf %108, %109 : vector<8x128xf32>
    %111 = vector.broadcast %45 : vector<1x128xf32> to vector<8x128xf32>
    %112 = arith.addf %110, %111 : vector<8x128xf32>
    %c0_53 = arith.constant 0 : index
    %c0_54 = arith.constant 0 : index
    %113 = vector.load %arg15[%c0_53, %c0_54] : memref<8x128xf32, #tpu.memory_space<vmem>>, vector<8x128xf32>
    tpu.vector_store %arg15[%c0_53, %c0_54], %112 {strides = array<i32>} : memref<8x128xf32, #tpu.memory_space<vmem>>, vector<8x128xf32>,
    return
  }
  func.func @transform_0(%arg0: i32) -> (i32, i32) {
    %c0_i32 = arith.constant 0 : i32
    %c0_i32_0 = arith.constant 0 : i32
    return %arg0, %c0_i32 : i32, i32
  }
  func.func @transform_1(%arg0: i32) -> (i32, i32, i32) {
    %c0_i32 = arith.constant 0 : i32
    %c0_i32_0 = arith.constant 0 : i32
    %c0_i32_1 = arith.constant 0 : i32
    return %arg0, %c0_i32, %c0_i32_0 : i32, i32, i32
  }
  func.func @transform_2(%arg0: i32) -> (i32, i32, i32) {
    %c0_i32 = arith.constant 0 : i32
    %c0_i32_0 = arith.constant 0 : i32
    %c0_i32_1 = arith.constant 0 : i32
    return %arg0, %c0_i32, %c0_i32_0 : i32, i32, i32
  }
  func.func @transform_3(%arg0: i32) -> (i32, i32) {
    %c0_i32 = arith.constant 0 : i32
    %c0_i32_0 = arith.constant 0 : i32
    %c0_i32_1 = arith.constant 0 : i32
    return %c0_i32, %c0_i32_0 : i32, i32
  }
  func.func @transform_4(%arg0: i32) -> (i32, i32) {
    %c0_i32 = arith.constant 0 : i32
    %c0_i32_0 = arith.constant 0 : i32
    %c0_i32_1 = arith.constant 0 : i32
    return %c0_i32, %c0_i32_0 : i32, i32
  }
  func.func @transform_5(%arg0: i32) -> (i32, i32) {
    %c0_i32 = arith.constant 0 : i32
    %c0_i32_0 = arith.constant 0 : i32
    %c0_i32_1 = arith.constant 0 : i32
    return %c0_i32, %c0_i32_0 : i32, i32
  }
  func.func @transform_6(%arg0: i32) -> (i32, i32) {
    %c0_i32 = arith.constant 0 : i32
    %c0_i32_0 = arith.constant 0 : i32
    %c0_i32_1 = arith.constant 0 : i32
    return %c0_i32, %c0_i32_0 : i32, i32
  }
  func.func @transform_7(%arg0: i32) -> (i32, i32) {
    %c0_i32 = arith.constant 0 : i32
    %c0_i32_0 = arith.constant 0 : i32
    %c0_i32_1 = arith.constant 0 : i32
    return %c0_i32, %c0_i32_0 : i32, i32
  }
  func.func @transform_8(%arg0: i32) -> (i32, i32) {
    %c0_i32 = arith.constant 0 : i32
    %c0_i32_0 = arith.constant 0 : i32
    %c0_i32_1 = arith.constant 0 : i32
    return %c0_i32, %c0_i32_0 : i32, i32
  }
  func.func @transform_9(%arg0: i32) -> (i32, i32) {
    %c0_i32 = arith.constant 0 : i32
    %c0_i32_0 = arith.constant 0 : i32
    %c0_i32_1 = arith.constant 0 : i32
    return %c0_i32, %c0_i32_0 : i32, i32
  }
  func.func @transform_10(%arg0: i32) -> (i32, i32) {
    %c0_i32 = arith.constant 0 : i32
    %c0_i32_0 = arith.constant 0 : i32
    %c0_i32_1 = arith.constant 0 : i32
    return %c0_i32, %c0_i32_0 : i32, i32
  }
  func.func @transform_11(%arg0: i32) -> (i32, i32) {
    %c0_i32 = arith.constant 0 : i32
    %c0_i32_0 = arith.constant 0 : i32
    %c0_i32_1 = arith.constant 0 : i32
    return %c0_i32, %c0_i32_0 : i32, i32
  }
  func.func @transform_12(%arg0: i32) -> (i32, i32) {
    %c0_i32 = arith.constant 0 : i32
    %c0_i32_0 = arith.constant 0 : i32
    %c0_i32_1 = arith.constant 0 : i32
    return %c0_i32, %c0_i32_0 : i32, i32
  }
  func.func @transform_13(%arg0: i32) -> (i32, i32) {
    %c0_i32 = arith.constant 0 : i32
    %c0_i32_0 = arith.constant 0 : i32
    %c0_i32_1 = arith.constant 0 : i32
    return %c0_i32, %c0_i32_0 : i32, i32
  }
  func.func @transform_14(%arg0: i32) -> (i32, i32) {
    %c0_i32 = arith.constant 0 : i32
    %c0_i32_0 = arith.constant 0 : i32
    return %arg0, %c0_i32 : i32, i32
  }
}

</mosaic_0001>

<llo_original>
// kernel: tpu_custom_call.1
$region0: #{tpu_custom_call.1}
  #allocation0 [shape = 'u32[]', space=smem, size = 0x4, offset = 0x4, fixed_abs, tag = 'smem constant byte address 0x4 - core index']
  #allocation1 [shape = 'u32[72,128]{1,0:T(1,128)}', space=vmem, size = 0x9000, scoped, tag = 'internal scratch']
  %s0 = inlined_call_operand.hbm [shape: bf16[8,128], index: 0, kind: input, shape index: {}]
  %s1 = inlined_call_operand.hbm [shape: bf16[8,8,128], index: 1, kind: input, shape index: {}]
  %s2 = inlined_call_operand.hbm [shape: f32[8,1,8], index: 2, kind: input, shape index: {}]
  %s3 = inlined_call_operand.hbm [shape: bf16[128,128], index: 3, kind: input, shape index: {}]
  %s4 = inlined_call_operand.hbm [shape: bf16[128,128], index: 4, kind: input, shape index: {}]
  %s5 = inlined_call_operand.hbm [shape: bf16[128,128], index: 5, kind: input, shape index: {}]
  %s6 = inlined_call_operand.vmem [shape: f32[4,128], index: 6, kind: input, shape index: {}]
  %s7 = inlined_call_operand.hbm [shape: bf16[128,128], index: 7, kind: input, shape index: {}]
  %s8 = inlined_call_operand.vmem [shape: f32[1,128], index: 8, kind: input, shape index: {}]
  %s9 = inlined_call_operand.hbm [shape: bf16[128,128], index: 9, kind: input, shape index: {}]
  %s10 = inlined_call_operand.vmem [shape: f32[1,128], index: 10, kind: input, shape index: {}]
  %s11 = inlined_call_operand.vmem [shape: f32[1,128], index: 11, kind: input, shape index: {}]
  %s12 = inlined_call_operand.vmem [shape: f32[1,128], index: 12, kind: input, shape index: {}]
  %s13 = inlined_call_operand.vmem [shape: f32[1,128], index: 13, kind: input, shape index: {}]
  %s14 = inlined_call_operand.hbm [shape: f32[8,128], index: 14, kind: output, shape index: {}]
  %s15 = sld [smem:[#allocation0]]
  $region98: #{tpu_custom_call.1} parent=0
    _
  %s17 = ssub.s32 1, %s15
  %s18 = scalar_select 0, %s17, %s15
  $region1: #{tpu_custom_call.1} parent=0
    #allocation2 [shape = 'u8[2048]{0}', space=vmem, size = 0x800, scoped, tag = 'input window, operand 0, single buffered']
    #allocation3 [shape = 's32[1]{0}', space=sflag, size = 0x4, scoped, tag = 'scoped memory for tpu_custom_call.1']
    #allocation4 [shape = 's32[1]{0}', space=sflag, size = 0x4, scoped, tag = 'scoped memory for tpu_custom_call.1']
    #allocation5 [shape = 'u8[16384]{0}', space=vmem, size = 0x4000, scoped, tag = 'input window, operand 1, single buffered']
    #allocation6 [shape = 's32[1]{0}', space=sflag, size = 0x4, scoped, tag = 'scoped memory for tpu_custom_call.1']
    #allocation7 [shape = 'u8[4096]{0}', space=vmem, size = 0x1000, scoped, tag = 'input window, operand 2, single buffered']
    #allocation8 [shape = 'u8[32768]{0}', space=vmem, size = 0x8000, scoped, tag = 'input window, operand 3, single buffered']
    #allocation9 [shape = 's32[1]{0}', space=sflag, size = 0x4, scoped, tag = 'scoped memory for tpu_custom_call.1']
    #allocation10 [shape = 'u8[32768]{0}', space=vmem, size = 0x8000, scoped, tag = 'input window, operand 4, single buffered']
    #allocation11 [shape = 'u8[32768]{0}', space=vmem, size = 0x8000, scoped, tag = 'input window, operand 5, single buffered']
    #allocation12 [shape = 's32[1]{0}', space=sflag, size = 0x4, scoped, tag = 'scoped memory for tpu_custom_call.1']
    #allocation13 [shape = 'u8[32768]{0}', space=vmem, size = 0x8000, scoped, tag = 'input window, operand 7, single buffered']
    #allocation14 [shape = 'u8[32768]{0}', space=vmem, size = 0x8000, scoped, tag = 'input window, operand 9, single buffered']
    #allocation15 [shape = 's32[1]{0}', space=sflag, size = 0x4, scoped, tag = 'scoped memory for tpu_custom_call.1']
    #allocation16 [shape = 'u8[4096]{0}', space=vmem, size = 0x1000, scoped, tag = 'output window, operand 0, single buffered']
    %19 = vsyncpa [#allocation3], 0
    %20 = vsyncpa [#allocation6], 0
    %21 = vsyncpa [#allocation9], 0
    %22 = vsyncpa [#allocation12], 0
    %23 = vsyncpa [#allocation15], 0
    %24 = vsyncpa [#allocation4], 0
    // Predicated region
    $region2: #{tpu_custom_call.1} parent=1 // pred_check
      _
    $region3: #{tpu_custom_call.1} parent=1 // pred_check_branch
      %26 = sbr.rel (0) target = $region5
    $region4: #{tpu_custom_call.1} parent=1 // pred_region
      %28 = vsyncadd [#allocation3], 0
      %s30 = sshll.u32 %s0, 4
      %s31 = int_to_ptr.hbm [resolvable:$true] %s30
      %s32 = sshll.u32 [#allocation2], 4
      %s33 = int_to_ptr.vmem [resolvable:$true] %s32
      %35 = dma.hbm_to_vmem [thread:$0]  %s31, 64, %s33, [#allocation3]
    $region5: #{tpu_custom_call.1} parent=1 // pred_fallthru
      _
    // Predicated region
    $region6: #{tpu_custom_call.1} parent=1 // pred_check
      _
    $region7: #{tpu_custom_call.1} parent=1 // pred_check_branch
      %37 = sbr.rel (0) target = $region9
    $region8: #{tpu_custom_call.1} parent=1 // pred_region
      %39 = vsyncadd [#allocation6], 0
      %s40 = sshll.u32 %s1, 4
      %s41 = int_to_ptr.hbm [resolvable:$true] %s40
      %s42 = sshll.u32 [#allocation5], 4
      %s43 = int_to_ptr.vmem [resolvable:$true] %s42
      %48 = dma.hbm_to_vmem [thread:$0]  %s41, 512, %s43, [#allocation6], 64, 64, 4
    $region9: #{tpu_custom_call.1} parent=1 // pred_fallthru
      _
    // Predicated region
    $region10: #{tpu_custom_call.1} parent=1 // pred_check
      _
    $region11: #{tpu_custom_call.1} parent=1 // pred_check_branch
      %50 = sbr.rel (0) target = $region13
    $region12: #{tpu_custom_call.1} parent=1 // pred_region
      %52 = vsyncadd [#allocation6], 0
      %s53 = sshll.u32 %s2, 4
      %s54 = int_to_ptr.hbm [resolvable:$true] %s53
      %s55 = sshll.u32 [#allocation7], 4
      %s56 = int_to_ptr.vmem [resolvable:$true] %s55
      %61 = dma.hbm_to_vmem [thread:$0]  %s54, 128, %s56, [#allocation6], 16, 16, 1
    $region13: #{tpu_custom_call.1} parent=1 // pred_fallthru
      _
    // Predicated region
    $region14: #{tpu_custom_call.1} parent=1 // pred_check
      _
    $region15: #{tpu_custom_call.1} parent=1 // pred_check_branch
      %63 = sbr.rel (0) target = $region17
    $region16: #{tpu_custom_call.1} parent=1 // pred_region
      %65 = vsyncadd [#allocation9], 0
      %s66 = sshll.u32 %s3, 4
      %s67 = int_to_ptr.hbm [resolvable:$true] %s66
      %s68 = sshll.u32 [#allocation8], 4
      %s69 = int_to_ptr.vmem [resolvable:$true] %s68
      %74 = dma.hbm_to_vmem [thread:$0]  %s67, 1024, %s69, [#allocation9], 64, 64, 4
    $region17: #{tpu_custom_call.1} parent=1 // pred_fallthru
      _
    // Predicated region
    $region18: #{tpu_custom_call.1} parent=1 // pred_check
      _
    $region19: #{tpu_custom_call.1} parent=1 // pred_check_branch
      %76 = sbr.rel (0) target = $region21
    $region20: #{tpu_custom_call.1} parent=1 // pred_region
      %78 = vsyncadd [#allocation9], 0
      %s79 = sshll.u32 %s4, 4
      %s80 = int_to_ptr.hbm [resolvable:$true] %s79
      %s81 = sshll.u32 [#allocation10], 4
      %s82 = int_to_ptr.vmem [resolvable:$true] %s81
      %87 = dma.hbm_to_vmem [thread:$0]  %s80, 1024, %s82, [#allocation9], 64, 64, 4
    $region21: #{tpu_custom_call.1} parent=1 // pred_fallthru
      _
    // Predicated region
    $region22: #{tpu_custom_call.1} parent=1 // pred_check
      _
    $region23: #{tpu_custom_call.1} parent=1 // pred_check_branch
      %89 = sbr.rel (0) target = $region25
    $region24: #{tpu_custom_call.1} parent=1 // pred_region
      %91 = vsyncadd [#allocation12], 0
      %s92 = sshll.u32 %s5, 4
      %s93 = int_to_ptr.hbm [resolvable:$true] %s92
      %s94 = sshll.u32 [#allocation11], 4
      %s95 = int_to_ptr.vmem [resolvable:$true] %s94
      %100 = dma.hbm_to_vmem [thread:$0]  %s93, 1024, %s95, [#allocation12], 64, 64, 4
    $region25: #{tpu_custom_call.1} parent=1 // pred_fallthru
      _
    // Predicated region
    $region26: #{tpu_custom_call.1} parent=1 // pred_check
      _
    $region27: #{tpu_custom_call.1} parent=1 // pred_check_branch
      %102 = sbr.rel (0) target = $region29
    $region28: #{tpu_custom_call.1} parent=1 // pred_region
      _
    $region29: #{tpu_custom_call.1} parent=1 // pred_fallthru
      _
    // Predicated region
    $region30: #{tpu_custom_call.1} parent=1 // pred_check
      _
    $region31: #{tpu_custom_call.1} parent=1 // pred_check_branch
      %104 = sbr.rel (0) target = $region33
    $region32: #{tpu_custom_call.1} parent=1 // pred_region
      %106 = vsyncadd [#allocation12], 0
      %s107 = sshll.u32 %s7, 4
      %s108 = int_to_ptr.hbm [resolvable:$true] %s107
      %s109 = sshll.u32 [#allocation13], 4
      %s110 = int_to_ptr.vmem [resolvable:$true] %s109
      %115 = dma.hbm_to_vmem [thread:$0]  %s108, 1024, %s110, [#allocation12], 64, 64, 4
    $region33: #{tpu_custom_call.1} parent=1 // pred_fallthru
      _
    // Predicated region
    $region34: #{tpu_custom_call.1} parent=1 // pred_check
      _
    $region35: #{tpu_custom_call.1} parent=1 // pred_check_branch
      %117 = sbr.rel (0) target = $region37
    $region36: #{tpu_custom_call.1} parent=1 // pred_region
      _
    $region37: #{tpu_custom_call.1} parent=1 // pred_fallthru
      _
    // Predicated region
    $region38: #{tpu_custom_call.1} parent=1 // pred_check
      _
    $region39: #{tpu_custom_call.1} parent=1 // pred_check_branch
      %119 = sbr.rel (0) target = $region41
    $region40: #{tpu_custom_call.1} parent=1 // pred_region
      %121 = vsyncadd [#allocation15], 0
      %s122 = sshll.u32 %s9, 4
      %s123 = int_to_ptr.hbm [resolvable:$true] %s122
      %s124 = sshll.u32 [#allocation14], 4
      %s125 = int_to_ptr.vmem [resolvable:$true] %s124
      %130 = dma.hbm_to_vmem [thread:$0]  %s123, 1024, %s125, [#allocation15], 64, 64, 4
    $region41: #{tpu_custom_call.1} parent=1 // pred_fallthru
      _
    // Predicated region
    $region42: #{tpu_custom_call.1} parent=1 // pred_check
      _
    $region43: #{tpu_custom_call.1} parent=1 // pred_check_branch
      %132 = sbr.rel (0) target = $region45
    $region44: #{tpu_custom_call.1} parent=1 // pred_region
      _
    $region45: #{tpu_custom_call.1} parent=1 // pred_fallthru
      _
    // Predicated region
    $region46: #{tpu_custom_call.1} parent=1 // pred_check
      _
    $region47: #{tpu_custom_call.1} parent=1 // pred_check_branch
      %134 = sbr.rel (0) target = $region49
    $region48: #{tpu_custom_call.1} parent=1 // pred_region
      _
    $region49: #{tpu_custom_call.1} parent=1 // pred_fallthru
      _
    // Predicated region
    $region50: #{tpu_custom_call.1} parent=1 // pred_check
      _
    $region51: #{tpu_custom_call.1} parent=1 // pred_check_branch
      %136 = sbr.rel (0) target = $region53
    $region52: #{tpu_custom_call.1} parent=1 // pred_region
      _
    $region53: #{tpu_custom_call.1} parent=1 // pred_fallthru
      _
    // Predicated region
    $region54: #{tpu_custom_call.1} parent=1 // pred_check
      _
    $region55: #{tpu_custom_call.1} parent=1 // pred_check_branch
      %138 = sbr.rel (0) target = $region57
    $region56: #{tpu_custom_call.1} parent=1 // pred_region
      _
    $region57: #{tpu_custom_call.1} parent=1 // pred_fallthru
      _
    // Predicated region
    $region58: #{tpu_custom_call.1} parent=1 // pred_check
      _
    $region59: #{tpu_custom_call.1} parent=1 // pred_check_branch
      %140 = sbr.rel (0) target = $region61
    $region60: #{tpu_custom_call.1} parent=1 // pred_region
      %142 = dma.done [#allocation3], 64
    $region61: #{tpu_custom_call.1} parent=1 // pred_fallthru
      _
    // Predicated region
    $region62: #{tpu_custom_call.1} parent=1 // pred_check
      _
    $region63: #{tpu_custom_call.1} parent=1 // pred_check_branch
      %144 = sbr.rel (0) target = $region65
    $region64: #{tpu_custom_call.1} parent=1 // pred_region
      %146 = dma.done [#allocation6], 512
    $region65: #{tpu_custom_call.1} parent=1 // pred_fallthru
      _
    // Predicated region
    $region66: #{tpu_custom_call.1} parent=1 // pred_check
      _
    $region67: #{tpu_custom_call.1} parent=1 // pred_check_branch
      %148 = sbr.rel (0) target = $region69
    $region68: #{tpu_custom_call.1} parent=1 // pred_region
      %150 = dma.done [#allocation6], 128
    $region69: #{tpu_custom_call.1} parent=1 // pred_fallthru
      _
    // Predicated region
    $region70: #{tpu_custom_call.1} parent=1 // pred_check
      _
    $region71: #{tpu_custom_call.1} parent=1 // pred_check_branch
      %152 = sbr.rel (0) target = $region73
    $region72: #{tpu_custom_call.1} parent=1 // pred_region
      %154 = dma.done [#allocation9], 1024
    $region73: #{tpu_custom_call.1} parent=1 // pred_fallthru
      _
    // Predicated region
    $region74: #{tpu_custom_call.1} parent=1 // pred_check
      _
    $region75: #{tpu_custom_call.1} parent=1 // pred_check_branch
      %156 = sbr.rel (0) target = $region77
    $region76: #{tpu_custom_call.1} parent=1 // pred_region
      %158 = dma.done [#allocation9], 1024
    $region77: #{tpu_custom_call.1} parent=1 // pred_fallthru
      _
    // Predicated region
    $region78: #{tpu_custom_call.1} parent=1 // pred_check
      _
    $region79: #{tpu_custom_call.1} parent=1 // pred_check_branch
      %160 = sbr.rel (0) target = $region81
    $region80: #{tpu_custom_call.1} parent=1 // pred_region
      %162 = dma.done [#allocation12], 1024
    $region81: #{tpu_custom_call.1} parent=1 // pred_fallthru
      _
    // Predicated region
    $region82: #{tpu_custom_call.1} parent=1 // pred_check
      _
    $region83: #{tpu_custom_call.1} parent=1 // pred_check_branch
      %164 = sbr.rel (0) target = $region85
    $region84: #{tpu_custom_call.1} parent=1 // pred_region
      %166 = dma.done [#allocation12], 1024
    $region85: #{tpu_custom_call.1} parent=1 // pred_fallthru
      _
    // Predicated region
    $region86: #{tpu_custom_call.1} parent=1 // pred_check
      _
    $region87: #{tpu_custom_call.1} parent=1 // pred_check_branch
      %168 = sbr.rel (0) target = $region89
    $region88: #{tpu_custom_call.1} parent=1 // pred_region
      %170 = dma.done [#allocation15], 1024
    $region89: #{tpu_custom_call.1} parent=1 // pred_fallthru
      _
    %v172 = vld [vmem:[#allocation2] sm:$0xf]
    %v173 = vld [vmem:[#allocation5] sm:$0xf]
    %v174 = vld [vmem:[#allocation5 + $0x4] sm:$0xf]
    %v175 = vld [vmem:[#allocation5 + $0x8] sm:$0xf]
    %v176 = vld [vmem:[#allocation5 + $0xc] sm:$0xf]
    %v177 = vld [vmem:[#allocation5 + $0x10] sm:$0xf]
    %v178 = vld [vmem:[#allocation5 + $0x14] sm:$0xf]
    %v179 = vld [vmem:[#allocation5 + $0x18] sm:$0xf]
    %v180 = vld [vmem:[#allocation5 + $0x1c] sm:$0xf]
    %v181 = vld [vmem:[#allocation8] sm:$0xf]
    %v182 = vld [vmem:[#allocation8 + $0x4] sm:$0xf]
    %v183 = vld [vmem:[#allocation8 + $0x8] sm:$0xf]
    %v184 = vld [vmem:[#allocation8 + $0xc] sm:$0xf]
    %v185 = vld [vmem:[#allocation8 + $0x10] sm:$0xf]
    %v186 = vld [vmem:[#allocation8 + $0x14] sm:$0xf]
    %v187 = vld [vmem:[#allocation8 + $0x18] sm:$0xf]
    %v188 = vld [vmem:[#allocation8 + $0x1c] sm:$0xf]
    %v189 = vld [vmem:[#allocation8 + $0x20] sm:$0xf]
    %v190 = vld [vmem:[#allocation8 + $0x24] sm:$0xf]
    %v191 = vld [vmem:[#allocation8 + $0x28] sm:$0xf]
    %v192 = vld [vmem:[#allocation8 + $0x2c] sm:$0xf]
    %v193 = vld [vmem:[#allocation8 + $0x30] sm:$0xf]
    %v194 = vld [vmem:[#allocation8 + $0x34] sm:$0xf]
    %v195 = vld [vmem:[#allocation8 + $0x38] sm:$0xf]
    %v196 = vld [vmem:[#allocation8 + $0x3c] sm:$0xf]
    %v213 = vunpack.c.l.b16 %v181
    %v214 = vunpack.c.l.b16 %v182
    %v215 = vunpack.c.l.b16 %v183
    %v216 = vunpack.c.l.b16 %v184
    %v217 = vunpack.c.l.b16 %v185
    %v218 = vunpack.c.l.b16 %v186
    %v219 = vunpack.c.l.b16 %v187
    %v220 = vunpack.c.l.b16 %v188
    %v221 = vunpack.c.l.b16 %v189
    %v222 = vunpack.c.l.b16 %v190
    %v223 = vunpack.c.l.b16 %v191
    %v224 = vunpack.c.l.b16 %v192
    %v225 = vunpack.c.l.b16 %v193
    %v226 = vunpack.c.l.b16 %v194
    %v227 = vunpack.c.l.b16 %v195
    %v228 = vunpack.c.l.b16 %v196
    %v229 = vpack.c.b16 %v214, %v213
    %v230 = vpack.c.b16 %v216, %v215
    %v231 = vpack.c.b16 %v218, %v217
    %v232 = vpack.c.b16 %v220, %v219
    %v233 = vpack.c.b16 %v222, %v221
    %v234 = vpack.c.b16 %v224, %v223
    %v235 = vpack.c.b16 %v226, %v225
    %v236 = vpack.c.b16 %v228, %v227
    %245 = vmatpush.bf16.msra.mxu0 %v236
    %246 = vmatpush.bf16.msra.mxu0 %v235
    %247 = vmatpush.bf16.msra.mxu0 %v234
    %248 = vmatpush.bf16.msra.mxu0 %v233
    %249 = vmatpush.bf16.msra.mxu0 %v232
    %250 = vmatpush.bf16.msra.mxu0 %v231
    %251 = vmatpush.bf16.msra.mxu0 %v230
    %252 = vmatpush.bf16.msra.mxu0 %v229
    %253 = vmatmul.bf16.gmra.mxu0 %v172
    %v254 = vpop.f32.mrf.mxu0
    %v255 = vadd.f32 0.0, %v254
    %v256 = vpop.f32.mrf.mxu0
    %257 = vdwg.mxu0
    %v258 = vld [vmem:[#allocation10] sm:$0xf]
    %v259 = vld [vmem:[#allocation10 + $0x4] sm:$0xf]
    %v260 = vld [vmem:[#allocation10 + $0x8] sm:$0xf]
    %v261 = vld [vmem:[#allocation10 + $0xc] sm:$0xf]
    %v262 = vld [vmem:[#allocation10 + $0x10] sm:$0xf]
    %v263 = vld [vmem:[#allocation10 + $0x14] sm:$0xf]
    %v264 = vld [vmem:[#allocation10 + $0x18] sm:$0xf]
    %v265 = vld [vmem:[#allocation10 + $0x1c] sm:$0xf]
    %v266 = vld [vmem:[#allocation10 + $0x20] sm:$0xf]
    %v267 = vld [vmem:[#allocation10 + $0x24] sm:$0xf]
    %v268 = vld [vmem:[#allocation10 + $0x28] sm:$0xf]
    %v269 = vld [vmem:[#allocation10 + $0x2c] sm:$0xf]
    %v270 = vld [vmem:[#allocation10 + $0x30] sm:$0xf]
    %v271 = vld [vmem:[#allocation10 + $0x34] sm:$0xf]
    %v272 = vld [vmem:[#allocation10 + $0x38] sm:$0xf]
    %v273 = vld [vmem:[#allocation10 + $0x3c] sm:$0xf]
    %v282 = vunpack.c.l.b16 %v173
    %v283 = vunpack.c.l.b16 %v174
    %v284 = vunpack.c.l.b16 %v175
    %v285 = vunpack.c.l.b16 %v176
    %v286 = vunpack.c.l.b16 %v177
    %v287 = vunpack.c.l.b16 %v178
    %v288 = vunpack.c.l.b16 %v179
    %v289 = vunpack.c.l.b16 %v180
    %v290 = vpack.c.b16 %v283, %v282
    %v291 = vpack.c.b16 %v285, %v284
    %v292 = vpack.c.b16 %v287, %v286
    %v293 = vpack.c.b16 %v289, %v288
    %v314 = vunpack.c.l.b16 %v258
    %v315 = vunpack.c.l.b16 %v259
    %v316 = vunpack.c.l.b16 %v260
    %v317 = vunpack.c.l.b16 %v261
    %v318 = vunpack.c.l.b16 %v262
    %v319 = vunpack.c.l.b16 %v263
    %v320 = vunpack.c.l.b16 %v264
    %v321 = vunpack.c.l.b16 %v265
    %v322 = vunpack.c.l.b16 %v266
    %v323 = vunpack.c.l.b16 %v267
    %v324 = vunpack.c.l.b16 %v268
    %v325 = vunpack.c.l.b16 %v269
    %v326 = vunpack.c.l.b16 %v270
    %v327 = vunpack.c.l.b16 %v271
    %v328 = vunpack.c.l.b16 %v272
    %v329 = vunpack.c.l.b16 %v273
    %v330 = vpack.c.b16 %v315, %v314
    %v331 = vpack.c.b16 %v317, %v316
    %v332 = vpack.c.b16 %v319, %v318
    %v333 = vpack.c.b16 %v321, %v320
    %v334 = vpack.c.b16 %v323, %v322
    %v335 = vpack.c.b16 %v325, %v324
    %v336 = vpack.c.b16 %v327, %v326
    %v337 = vpack.c.b16 %v329, %v328
    %346 = vmatpush.bf16.msra.mxu0 %v337
    %347 = vmatpush.bf16.msra.mxu0 %v336
    %348 = vmatpush.bf16.msra.mxu0 %v335
    %349 = vmatpush.bf16.msra.mxu0 %v334
    %350 = vmatpush.bf16.msra.mxu0 %v333
    %351 = vmatpush.bf16.msra.mxu0 %v332
    %352 = vmatpush.bf16.msra.mxu0 %v331
    %353 = vmatpush.bf16.msra.mxu0 %v330
    %354 = vmatmul.bf16.gmra.mxu0 %v290
    %v355 = vpop.f32.mrf.mxu0
    %v356 = vadd.f32 0.0, %v355
    %v357 = vpop.f32.mrf.mxu0
    %v358 = vadd.f32 0.0, %v357
    %359 = vmatmul.bf16.gmra.mxu0 %v291
    %v360 = vpop.f32.mrf.mxu0
    %v361 = vadd.f32 0.0, %v360
    %v362 = vpop.f32.mrf.mxu0
    %v363 = vadd.f32 0.0, %v362
    %364 = vmatmul.bf16.gmra.mxu0 %v292
    %v365 = vpop.f32.mrf.mxu0
    %v366 = vadd.f32 0.0, %v365
    %v367 = vpop.f32.mrf.mxu0
    %v368 = vadd.f32 0.0, %v367
    %369 = vmatmul.bf16.gmra.mxu0 %v293
    %v370 = vpop.f32.mrf.mxu0
    %v371 = vadd.f32 0.0, %v370
    %v372 = vpop.f32.mrf.mxu0
    %v373 = vadd.f32 0.0, %v372
    %374 = vdwg.mxu0
    %v375 = vld [vmem:[#allocation11] sm:$0xf]
    %v376 = vld [vmem:[#allocation11 + $0x4] sm:$0xf]
    %v377 = vld [vmem:[#allocation11 + $0x8] sm:$0xf]
    %v378 = vld [vmem:[#allocation11 + $0xc] sm:$0xf]
    %v379 = vld [vmem:[#allocation11 + $0x10] sm:$0xf]
    %v380 = vld [vmem:[#allocation11 + $0x14] sm:$0xf]
    %v381 = vld [vmem:[#allocation11 + $0x18] sm:$0xf]
    %v382 = vld [vmem:[#allocation11 + $0x1c] sm:$0xf]
    %v383 = vld [vmem:[#allocation11 + $0x20] sm:$0xf]
    %v384 = vld [vmem:[#allocation11 + $0x24] sm:$0xf]
    %v385 = vld [vmem:[#allocation11 + $0x28] sm:$0xf]
    %v386 = vld [vmem:[#allocation11 + $0x2c] sm:$0xf]
    %v387 = vld [vmem:[#allocation11 + $0x30] sm:$0xf]
    %v388 = vld [vmem:[#allocation11 + $0x34] sm:$0xf]
    %v389 = vld [vmem:[#allocation11 + $0x38] sm:$0xf]
    %v390 = vld [vmem:[#allocation11 + $0x3c] sm:$0xf]
    %v407 = vunpack.c.l.b16 %v375
    %v408 = vunpack.c.l.b16 %v376
    %v409 = vunpack.c.l.b16 %v377
    %v410 = vunpack.c.l.b16 %v378
    %v411 = vunpack.c.l.b16 %v379
    %v412 = vunpack.c.l.b16 %v380
    %v413 = vunpack.c.l.b16 %v381
    %v414 = vunpack.c.l.b16 %v382
    %v415 = vunpack.c.l.b16 %v383
    %v416 = vunpack.c.l.b16 %v384
    %v417 = vunpack.c.l.b16 %v385
    %v418 = vunpack.c.l.b16 %v386
    %v419 = vunpack.c.l.b16 %v387
    %v420 = vunpack.c.l.b16 %v388
    %v421 = vunpack.c.l.b16 %v389
    %v422 = vunpack.c.l.b16 %v390
    %v423 = vpack.c.b16 %v408, %v407
    %v424 = vpack.c.b16 %v410, %v409
    %v425 = vpack.c.b16 %v412, %v411
    %v426 = vpack.c.b16 %v414, %v413
    %v427 = vpack.c.b16 %v416, %v415
    %v428 = vpack.c.b16 %v418, %v417
    %v429 = vpack.c.b16 %v420, %v419
    %v430 = vpack.c.b16 %v422, %v421
    %439 = vmatpush.bf16.msra.mxu0 %v430
    %440 = vmatpush.bf16.msra.mxu0 %v429
    %441 = vmatpush.bf16.msra.mxu0 %v428
    %442 = vmatpush.bf16.msra.mxu0 %v427
    %443 = vmatpush.bf16.msra.mxu0 %v426
    %444 = vmatpush.bf16.msra.mxu0 %v425
    %445 = vmatpush.bf16.msra.mxu0 %v424
    %446 = vmatpush.bf16.msra.mxu0 %v423
    %447 = vmatmul.bf16.gmra.mxu0 %v290
    %v448 = vpop.f32.mrf.mxu0
    %v449 = vadd.f32 0.0, %v448
    %v450 = vpop.f32.mrf.mxu0
    %v451 = vadd.f32 0.0, %v450
    %452 = vmatmul.bf16.gmra.mxu0 %v291
    %v453 = vpop.f32.mrf.mxu0
    %v454 = vadd.f32 0.0, %v453
    %v455 = vpop.f32.mrf.mxu0
    %v456 = vadd.f32 0.0, %v455
    %457 = vmatmul.bf16.gmra.mxu0 %v292
    %v458 = vpop.f32.mrf.mxu0
    %v459 = vadd.f32 0.0, %v458
    %v460 = vpop.f32.mrf.mxu0
    %v461 = vadd.f32 0.0, %v460
    %462 = vmatmul.bf16.gmra.mxu0 %v293
    %v463 = vpop.f32.mrf.mxu0
    %v464 = vadd.f32 0.0, %v463
    %v465 = vpop.f32.mrf.mxu0
    %v466 = vadd.f32 0.0, %v465
    %467 = vdwg.mxu0
    %v468 = vpack.c.bf16 %v356, %v356
    %v469 = vpack.c.bf16 %v358, %v358
    %v470 = vpack.c.bf16 %v361, %v361
    %v471 = vpack.c.bf16 %v363, %v363
    %v472 = vpack.c.bf16 %v366, %v366
    %v473 = vpack.c.bf16 %v368, %v368
    %v474 = vpack.c.bf16 %v371, %v371
    %v475 = vpack.c.bf16 %v373, %v373
    %v476 = vpack.c.bf16 %v449, %v449
    %v477 = vpack.c.bf16 %v451, %v451
    %v478 = vpack.c.bf16 %v454, %v454
    %v479 = vpack.c.bf16 %v456, %v456
    %v480 = vpack.c.bf16 %v459, %v459
    %v481 = vpack.c.bf16 %v461, %v461
    %v482 = vpack.c.bf16 %v464, %v464
    %v483 = vpack.c.bf16 %v466, %v466
    %v484 = vld [vmem:[%s6] sm:$0xf]
    %v486 = vrot.slane %v255, 1
    %v487 = vrot.slane %v255, 2
    %v488 = vrot.slane %v255, 3
    %v489 = vrot.slane %v255, 4
    %v490 = vrot.slane %v255, 5
    %v491 = vrot.slane %v255, 6
    %v492 = vrot.slane %v255, 7
    %v493 = vperm.slane %v255, 0
    %v494 = vperm.slane %v486, 0
    %v495 = vperm.slane %v487, 0
    %v496 = vperm.slane %v488, 0
    %v497 = vperm.slane %v489, 0
    %v498 = vperm.slane %v490, 0
    %v499 = vperm.slane %v491, 0
    %v500 = vperm.slane %v492, 0
    %v509 = vmul.f32 %v493, %v484
    %v510 = vmul.f32 %v494, %v484
    %v511 = vmul.f32 %v495, %v484
    %v512 = vmul.f32 %v496, %v484
    %v513 = vmul.f32 %v497, %v484
    %v514 = vmul.f32 %v498, %v484
    %v515 = vmul.f32 %v499, %v484
    %v516 = vmul.f32 %v500, %v484
    %v517 = vpack.c.bf16 %v509, %v509
    %v518 = vpack.c.bf16 %v510, %v510
    %v519 = vpack.c.bf16 %v511, %v511
    %v520 = vpack.c.bf16 %v512, %v512
    %v521 = vpack.c.bf16 %v513, %v513
    %v522 = vpack.c.bf16 %v514, %v514
    %v523 = vpack.c.bf16 %v515, %v515
    %v524 = vpack.c.bf16 %v516, %v516
    %525 = vmatpush.bf16.xpose.msra.mxu0 0
    %526 = vmatpush.bf16.xpose.msra.mxu0 0
    %527 = vmatpush.bf16.xpose.msra.mxu0 0
    %528 = vmatpush.bf16.xpose.msra.mxu0 0
    %529 = vmatpush.bf16.xpose.msra.mxu0 0
    %530 = vmatpush.bf16.xpose.msra.mxu0 0
    %531 = vmatpush.bf16.xpose.msra.mxu0 0
    %532 = vmatpush.bf16.xpose.msra.mxu0 %v468
    %533 = vmatmul.bf16.gmra.mxu0 %v517
    %v534 = vpop.f32.mrf.mxu0
    %v535 = vadd.f32 0.0, %v534
    %v536 = vpop.f32.mrf.mxu0
    %537 = vdwg.mxu0
    %538 = vmatpush.bf16.xpose.msra.mxu0 0
    %539 = vmatpush.bf16.xpose.msra.mxu0 0
    %540 = vmatpush.bf16.xpose.msra.mxu0 0
    %541 = vmatpush.bf16.xpose.msra.mxu0 0
    %542 = vmatpush.bf16.xpose.msra.mxu0 0
    %543 = vmatpush.bf16.xpose.msra.mxu0 0
    %544 = vmatpush.bf16.xpose.msra.mxu0 0
    %545 = vmatpush.bf16.xpose.msra.mxu0 %v469
    %546 = vmatmul.bf16.gmra.mxu0 %v518
    %v547 = vpop.f32.mrf.mxu0
    %v548 = vadd.f32 0.0, %v547
    %v549 = vpop.f32.mrf.mxu0
    %550 = vdwg.mxu0
    %551 = vmatpush.bf16.xpose.msra.mxu0 0
    %552 = vmatpush.bf16.xpose.msra.mxu0 0
    %553 = vmatpush.bf16.xpose.msra.mxu0 0
    %554 = vmatpush.bf16.xpose.msra.mxu0 0
    %555 = vmatpush.bf16.xpose.msra.mxu0 0
    %556 = vmatpush.bf16.xpose.msra.mxu0 0
    %557 = vmatpush.bf16.xpose.msra.mxu0 0
    %558 = vmatpush.bf16.xpose.msra.mxu0 %v470
    %559 = vmatmul.bf16.gmra.mxu0 %v519
    %v560 = vpop.f32.mrf.mxu0
    %v561 = vadd.f32 0.0, %v560
    %v562 = vpop.f32.mrf.mxu0
    %563 = vdwg.mxu0
    %564 = vmatpush.bf16.xpose.msra.mxu0 0
    %565 = vmatpush.bf16.xpose.msra.mxu0 0
    %566 = vmatpush.bf16.xpose.msra.mxu0 0
    %567 = vmatpush.bf16.xpose.msra.mxu0 0
    %568 = vmatpush.bf16.xpose.msra.mxu0 0
    %569 = vmatpush.bf16.xpose.msra.mxu0 0
    %570 = vmatpush.bf16.xpose.msra.mxu0 0
    %571 = vmatpush.bf16.xpose.msra.mxu0 %v471
    %572 = vmatmul.bf16.gmra.mxu0 %v520
    %v573 = vpop.f32.mrf.mxu0
    %v574 = vadd.f32 0.0, %v573
    %v575 = vpop.f32.mrf.mxu0
    %576 = vdwg.mxu0
    %577 = vmatpush.bf16.xpose.msra.mxu0 0
    %578 = vmatpush.bf16.xpose.msra.mxu0 0
    %579 = vmatpush.bf16.xpose.msra.mxu0 0
    %580 = vmatpush.bf16.xpose.msra.mxu0 0
    %581 = vmatpush.bf16.xpose.msra.mxu0 0
    %582 = vmatpush.bf16.xpose.msra.mxu0 0
    %583 = vmatpush.bf16.xpose.msra.mxu0 0
    %584 = vmatpush.bf16.xpose.msra.mxu0 %v472
    %585 = vmatmul.bf16.gmra.mxu0 %v521
    %v586 = vpop.f32.mrf.mxu0
    %v587 = vadd.f32 0.0, %v586
    %v588 = vpop.f32.mrf.mxu0
    %589 = vdwg.mxu0
    %590 = vmatpush.bf16.xpose.msra.mxu0 0
    %591 = vmatpush.bf16.xpose.msra.mxu0 0
    %592 = vmatpush.bf16.xpose.msra.mxu0 0
    %593 = vmatpush.bf16.xpose.msra.mxu0 0
    %594 = vmatpush.bf16.xpose.msra.mxu0 0
    %595 = vmatpush.bf16.xpose.msra.mxu0 0
    %596 = vmatpush.bf16.xpose.msra.mxu0 0
    %597 = vmatpush.bf16.xpose.msra.mxu0 %v473
    %598 = vmatmul.bf16.gmra.mxu0 %v522
    %v599 = vpop.f32.mrf.mxu0
    %v600 = vadd.f32 0.0, %v599
    %v601 = vpop.f32.mrf.mxu0
    %602 = vdwg.mxu0
    %603 = vmatpush.bf16.xpose.msra.mxu0 0
    %604 = vmatpush.bf16.xpose.msra.mxu0 0
    %605 = vmatpush.bf16.xpose.msra.mxu0 0
    %606 = vmatpush.bf16.xpose.msra.mxu0 0
    %607 = vmatpush.bf16.xpose.msra.mxu0 0
    %608 = vmatpush.bf16.xpose.msra.mxu0 0
    %609 = vmatpush.bf16.xpose.msra.mxu0 0
    %610 = vmatpush.bf16.xpose.msra.mxu0 %v474
    %611 = vmatmul.bf16.gmra.mxu0 %v523
    %v612 = vpop.f32.mrf.mxu0
    %v613 = vadd.f32 0.0, %v612
    %v614 = vpop.f32.mrf.mxu0
    %615 = vdwg.mxu0
    %616 = vmatpush.bf16.xpose.msra.mxu0 0
    %617 = vmatpush.bf16.xpose.msra.mxu0 0
    %618 = vmatpush.bf16.xpose.msra.mxu0 0
    %619 = vmatpush.bf16.xpose.msra.mxu0 0
    %620 = vmatpush.bf16.xpose.msra.mxu0 0
    %621 = vmatpush.bf16.xpose.msra.mxu0 0
    %622 = vmatpush.bf16.xpose.msra.mxu0 0
    %623 = vmatpush.bf16.xpose.msra.mxu0 %v475
    %624 = vmatmul.bf16.gmra.mxu0 %v524
    %v625 = vpop.f32.mrf.mxu0
    %v626 = vadd.f32 0.0, %v625
    %v627 = vpop.f32.mrf.mxu0
    %628 = vdwg.mxu0
    %v629 = vld [vmem:[#allocation7] sm:$0x1]
    %v630 = vld [vmem:[#allocation7 + $0x1] sm:$0x1]
    %v631 = vld [vmem:[#allocation7 + $0x2] sm:$0x1]
    %v632 = vld [vmem:[#allocation7 + $0x3] sm:$0x1]
    %v633 = vld [vmem:[#allocation7 + $0x4] sm:$0x1]
    %v634 = vld [vmem:[#allocation7 + $0x5] sm:$0x1]
    %v635 = vld [vmem:[#allocation7 + $0x6] sm:$0x1]
    %v636 = vld [vmem:[#allocation7 + $0x7] sm:$0x1]
    %vm637 = vcmp.gt.f32.partialorder %v629, 0.5
    %vm638 = vcmp.gt.f32.partialorder %v630, 0.5
    %vm639 = vcmp.gt.f32.partialorder %v631, 0.5
    %vm640 = vcmp.gt.f32.partialorder %v632, 0.5
    %vm641 = vcmp.gt.f32.partialorder %v633, 0.5
    %vm642 = vcmp.gt.f32.partialorder %v634, 0.5
    %vm643 = vcmp.gt.f32.partialorder %v635, 0.5
    %vm644 = vcmp.gt.f32.partialorder %v636, 0.5
    %v645 = vsel %vm637, 1, 0
    %v646 = vsel %vm638, 1, 0
    %v647 = vsel %vm639, 1, 0
    %v648 = vsel %vm640, 1, 0
    %v649 = vsel %vm641, 1, 0
    %v650 = vsel %vm642, 1, 0
    %v651 = vsel %vm643, 1, 0
    %v652 = vsel %vm644, 1, 0
    %v653 = vperm.slane %v645, 0
    %v654 = vperm.slane %v646, 0
    %v655 = vperm.slane %v647, 0
    %v656 = vperm.slane %v648, 0
    %v657 = vperm.slane %v649, 0
    %v658 = vperm.slane %v650, 0
    %v659 = vperm.slane %v651, 0
    %v660 = vperm.slane %v652, 0
    %vm661 = vcmp.eq.s32.totalorder %v653, 1
    %vm662 = vcmp.eq.s32.totalorder %v654, 1
    %vm663 = vcmp.eq.s32.totalorder %v655, 1
    %vm664 = vcmp.eq.s32.totalorder %v656, 1
    %vm665 = vcmp.eq.s32.totalorder %v657, 1
    %vm666 = vcmp.eq.s32.totalorder %v658, 1
    %vm667 = vcmp.eq.s32.totalorder %v659, 1
    %vm668 = vcmp.eq.s32.totalorder %v660, 1
    %v669 = vsel %vm661, -inf, %v535
    %v670 = vsel %vm662, -inf, %v548
    %v671 = vsel %vm663, -inf, %v561
    %v672 = vsel %vm664, -inf, %v574
    %v673 = vsel %vm665, -inf, %v587
    %v674 = vsel %vm666, -inf, %v600
    %v675 = vsel %vm667, -inf, %v613
    %v676 = vsel %vm668, -inf, %v626
    %vm677 = vcmask 60416
    %v678 = vsel %vm677, %v669, -inf
    %679 = vmax.xlane.f32.xlu0 %v678
    %v680 = vpop.xlane.xlu0 %679
    %v681 = vsel %vm677, %v670, -inf
    %682 = vmax.xlane.f32.xlu0 %v681
    %v683 = vpop.xlane.xlu0 %682
    %v684 = vsel %vm677, %v671, -inf
    %685 = vmax.xlane.f32.xlu0 %v684
    %v686 = vpop.xlane.xlu0 %685
    %v687 = vsel %vm677, %v672, -inf
    %688 = vmax.xlane.f32.xlu0 %v687
    %v689 = vpop.xlane.xlu0 %688
    %v690 = vsel %vm677, %v673, -inf
    %691 = vmax.xlane.f32.xlu0 %v690
    %v692 = vpop.xlane.xlu0 %691
    %v693 = vsel %vm677, %v674, -inf
    %694 = vmax.xlane.f32.xlu0 %v693
    %v695 = vpop.xlane.xlu0 %694
    %v696 = vsel %vm677, %v675, -inf
    %697 = vmax.xlane.f32.xlu0 %v696
    %v698 = vpop.xlane.xlu0 %697
    %v699 = vsel %vm677, %v676, -inf
    %700 = vmax.xlane.f32.xlu0 %v699
    %v701 = vpop.xlane.xlu0 %700
    %v702 = vsub.f32 %v669, %v680
    %v703 = vsub.f32 %v670, %v683
    %v704 = vsub.f32 %v671, %v686
    %v705 = vsub.f32 %v672, %v689
    %v706 = vsub.f32 %v673, %v692
    %v707 = vsub.f32 %v674, %v695
    %v708 = vsub.f32 %v675, %v698
    %v709 = vsub.f32 %v676, %v701
    %v710 = vmul.f32 %v702, 1.442695
    %v711 = vpow.pop %v710
    %v712 = vmul.f32 %v703, 1.442695
    %v713 = vpow.pop %v712
    %v714 = vmul.f32 %v704, 1.442695
    %v715 = vpow.pop %v714
    %v716 = vmul.f32 %v705, 1.442695
    %v717 = vpow.pop %v716
    %v718 = vmul.f32 %v706, 1.442695
    %v719 = vpow.pop %v718
    %v720 = vmul.f32 %v707, 1.442695
    %v721 = vpow.pop %v720
    %v722 = vmul.f32 %v708, 1.442695
    %v723 = vpow.pop %v722
    %v724 = vmul.f32 %v709, 1.442695
    %v725 = vpow.pop %v724
    %v726 = vsel %vm677, %v711, 0.0
    %727 = vadd.xlane.f32.xlu0 %v726
    %v728 = vpop.xlane.xlu0 %727
    %v729 = vsel %vm677, %v713, 0.0
    %730 = vadd.xlane.f32.xlu0 %v729
    %v731 = vpop.xlane.xlu0 %730
    %v732 = vsel %vm677, %v715, 0.0
    %733 = vadd.xlane.f32.xlu0 %v732
    %v734 = vpop.xlane.xlu0 %733
    %v735 = vsel %vm677, %v717, 0.0
    %736 = vadd.xlane.f32.xlu0 %v735
    %v737 = vpop.xlane.xlu0 %736
    %v738 = vsel %vm677, %v719, 0.0
    %739 = vadd.xlane.f32.xlu0 %v738
    %v740 = vpop.xlane.xlu0 %739
    %v741 = vsel %vm677, %v721, 0.0
    %742 = vadd.xlane.f32.xlu0 %v741
    %v743 = vpop.xlane.xlu0 %742
    %v744 = vsel %vm677, %v723, 0.0
    %745 = vadd.xlane.f32.xlu0 %v744
    %v746 = vpop.xlane.xlu0 %745
    %v747 = vsel %vm677, %v725, 0.0
    %748 = vadd.xlane.f32.xlu0 %v747
    %v749 = vpop.xlane.xlu0 %748
    %v750 = vrcp.pop %v728
    %v751 = vrcp.pop %v731
    %v752 = vrcp.pop %v734
    %v753 = vrcp.pop %v737
    %v754 = vrcp.pop %v740
    %v755 = vrcp.pop %v743
    %v756 = vrcp.pop %v746
    %v757 = vrcp.pop %v749
    %v758 = vmul.f32 %v711, %v750
    %v759 = vmul.f32 %v713, %v751
    %v760 = vmul.f32 %v715, %v752
    %v761 = vmul.f32 %v717, %v753
    %v762 = vmul.f32 %v719, %v754
    %v763 = vmul.f32 %v721, %v755
    %v764 = vmul.f32 %v723, %v756
    %v765 = vmul.f32 %v725, %v757
    %v766 = vpack.c.bf16 %v758, %v758
    %v767 = vpack.c.bf16 %v759, %v759
    %v768 = vpack.c.bf16 %v760, %v760
    %v769 = vpack.c.bf16 %v761, %v761
    %v770 = vpack.c.bf16 %v762, %v762
    %v771 = vpack.c.bf16 %v763, %v763
    %v772 = vpack.c.bf16 %v764, %v764
    %v773 = vpack.c.bf16 %v765, %v765
    %vm774 = vcmask 64512
    %v776 = vsel %vm774, %v766, 0
    %vm778 = vcmask 1043456
    %v780 = vsel %vm778, %v476, 0
    %782 = vmatpush.bf16.msra.mxu0 0
    %783 = vmatpush.bf16.msra.mxu0 0
    %784 = vmatpush.bf16.msra.mxu0 0
    %785 = vmatpush.bf16.msra.mxu0 0
    %786 = vmatpush.bf16.msra.mxu0 0
    %787 = vmatpush.bf16.msra.mxu0 0
    %788 = vmatpush.bf16.msra.mxu0 0
    %789 = vmatpush.bf16.msra.mxu0 %v780
    %790 = vmatmul.bf16.gmra.mxu0 %v776
    %v791 = vpop.f32.mrf.mxu0
    %v792 = vadd.f32 0.0, %v791
    %v793 = vpop.f32.mrf.mxu0
    %794 = vdwg.mxu0
    %v796 = vsel %vm774, %v767, 0
    %v799 = vsel %vm778, %v477, 0
    %801 = vmatpush.bf16.msra.mxu0 0
    %802 = vmatpush.bf16.msra.mxu0 0
    %803 = vmatpush.bf16.msra.mxu0 0
    %804 = vmatpush.bf16.msra.mxu0 0
    %805 = vmatpush.bf16.msra.mxu0 0
    %806 = vmatpush.bf16.msra.mxu0 0
    %807 = vmatpush.bf16.msra.mxu0 0
    %808 = vmatpush.bf16.msra.mxu0 %v799
    %809 = vmatmul.bf16.gmra.mxu0 %v796
    %v810 = vpop.f32.mrf.mxu0
    %v811 = vadd.f32 0.0, %v810
    %v812 = vpop.f32.mrf.mxu0
    %813 = vdwg.mxu0
    %v815 = vsel %vm774, %v768, 0
    %v818 = vsel %vm778, %v478, 0
    %820 = vmatpush.bf16.msra.mxu0 0
    %821 = vmatpush.bf16.msra.mxu0 0
    %822 = vmatpush.bf16.msra.mxu0 0
    %823 = vmatpush.bf16.msra.mxu0 0
    %824 = vmatpush.bf16.msra.mxu0 0
    %825 = vmatpush.bf16.msra.mxu0 0
    %826 = vmatpush.bf16.msra.mxu0 0
    %827 = vmatpush.bf16.msra.mxu0 %v818
    %828 = vmatmul.bf16.gmra.mxu0 %v815
    %v829 = vpop.f32.mrf.mxu0
    %v830 = vadd.f32 0.0, %v829
    %v831 = vpop.f32.mrf.mxu0
    %832 = vdwg.mxu0
    %v834 = vsel %vm774, %v769, 0
    %v837 = vsel %vm778, %v479, 0
    %839 = vmatpush.bf16.msra.mxu0 0
    %840 = vmatpush.bf16.msra.mxu0 0
    %841 = vmatpush.bf16.msra.mxu0 0
    %842 = vmatpush.bf16.msra.mxu0 0
    %843 = vmatpush.bf16.msra.mxu0 0
    %844 = vmatpush.bf16.msra.mxu0 0
    %845 = vmatpush.bf16.msra.mxu0 0
    %846 = vmatpush.bf16.msra.mxu0 %v837
    %847 = vmatmul.bf16.gmra.mxu0 %v834
    %v848 = vpop.f32.mrf.mxu0
    %v849 = vadd.f32 0.0, %v848
    %v850 = vpop.f32.mrf.mxu0
    %851 = vdwg.mxu0
    %v853 = vsel %vm774, %v770, 0
    %v856 = vsel %vm778, %v480, 0
    %858 = vmatpush.bf16.msra.mxu0 0
    %859 = vmatpush.bf16.msra.mxu0 0
    %860 = vmatpush.bf16.msra.mxu0 0
    %861 = vmatpush.bf16.msra.mxu0 0
    %862 = vmatpush.bf16.msra.mxu0 0
    %863 = vmatpush.bf16.msra.mxu0 0
    %864 = vmatpush.bf16.msra.mxu0 0
    %865 = vmatpush.bf16.msra.mxu0 %v856
    %866 = vmatmul.bf16.gmra.mxu0 %v853
    %v867 = vpop.f32.mrf.mxu0
    %v868 = vadd.f32 0.0, %v867
    %v869 = vpop.f32.mrf.mxu0
    %870 = vdwg.mxu0
    %v872 = vsel %vm774, %v771, 0
    %v875 = vsel %vm778, %v481, 0
    %877 = vmatpush.bf16.msra.mxu0 0
    %878 = vmatpush.bf16.msra.mxu0 0
    %879 = vmatpush.bf16.msra.mxu0 0
    %880 = vmatpush.bf16.msra.mxu0 0
    %881 = vmatpush.bf16.msra.mxu0 0
    %882 = vmatpush.bf16.msra.mxu0 0
    %883 = vmatpush.bf16.msra.mxu0 0
    %884 = vmatpush.bf16.msra.mxu0 %v875
    %885 = vmatmul.bf16.gmra.mxu0 %v872
    %v886 = vpop.f32.mrf.mxu0
    %v887 = vadd.f32 0.0, %v886
    %v888 = vpop.f32.mrf.mxu0
    %889 = vdwg.mxu0
    %v891 = vsel %vm774, %v772, 0
    %v894 = vsel %vm778, %v482, 0
    %896 = vmatpush.bf16.msra.mxu0 0
    %897 = vmatpush.bf16.msra.mxu0 0
    %898 = vmatpush.bf16.msra.mxu0 0
    %899 = vmatpush.bf16.msra.mxu0 0
    %900 = vmatpush.bf16.msra.mxu0 0
    %901 = vmatpush.bf16.msra.mxu0 0
    %902 = vmatpush.bf16.msra.mxu0 0
    %903 = vmatpush.bf16.msra.mxu0 %v894
    %904 = vmatmul.bf16.gmra.mxu0 %v891
    %v905 = vpop.f32.mrf.mxu0
    %v906 = vadd.f32 0.0, %v905
    %v907 = vpop.f32.mrf.mxu0
    %908 = vdwg.mxu0
    %v910 = vsel %vm774, %v773, 0
    %v913 = vsel %vm778, %v483, 0
    %915 = vmatpush.bf16.msra.mxu0 0
    %916 = vmatpush.bf16.msra.mxu0 0
    %917 = vmatpush.bf16.msra.mxu0 0
    %918 = vmatpush.bf16.msra.mxu0 0
    %919 = vmatpush.bf16.msra.mxu0 0
    %920 = vmatpush.bf16.msra.mxu0 0
    %921 = vmatpush.bf16.msra.mxu0 0
    %922 = vmatpush.bf16.msra.mxu0 %v913
    %923 = vmatmul.bf16.gmra.mxu0 %v910
    %v924 = vpop.f32.mrf.mxu0
    %v925 = vadd.f32 0.0, %v924
    %v926 = vpop.f32.mrf.mxu0
    %927 = vdwg.mxu0
    %v928 = vmul.f32 %v792, %v484
    %v929 = vmul.f32 %v811, %v484
    %v930 = vmul.f32 %v830, %v484
    %v931 = vmul.f32 %v849, %v484
    %v932 = vmul.f32 %v868, %v484
    %v933 = vmul.f32 %v887, %v484
    %v934 = vmul.f32 %v906, %v484
    %v935 = vmul.f32 %v925, %v484
    %v936 = vsel %vm778, %v928, 0.0
    %v937 = vrot.slane %v936, 4
    %v938 = vadd.f32 %v936, %v937
    %v939 = vrot.slane %v938, 2
    %v940 = vadd.f32 %v938, %v939
    %v941 = vrot.slane %v940, 1
    %v942 = vadd.f32 %v940, %v941
    %v943 = vsel %vm778, %v929, 0.0
    %v944 = vrot.slane %v943, 4
    %v945 = vadd.f32 %v943, %v944
    %v946 = vrot.slane %v945, 2
    %v947 = vadd.f32 %v945, %v946
    %v948 = vrot.slane %v947, 1
    %v949 = vadd.f32 %v947, %v948
    %v950 = vsel %vm778, %v930, 0.0
    %v951 = vrot.slane %v950, 4
    %v952 = vadd.f32 %v950, %v951
    %v953 = vrot.slane %v952, 2
    %v954 = vadd.f32 %v952, %v953
    %v955 = vrot.slane %v954, 1
    %v956 = vadd.f32 %v954, %v955
    %v957 = vsel %vm778, %v931, 0.0
    %v958 = vrot.slane %v957, 4
    %v959 = vadd.f32 %v957, %v958
    %v960 = vrot.slane %v959, 2
    %v961 = vadd.f32 %v959, %v960
    %v962 = vrot.slane %v961, 1
    %v963 = vadd.f32 %v961, %v962
    %v964 = vsel %vm778, %v932, 0.0
    %v965 = vrot.slane %v964, 4
    %v966 = vadd.f32 %v964, %v965
    %v967 = vrot.slane %v966, 2
    %v968 = vadd.f32 %v966, %v967
    %v969 = vrot.slane %v968, 1
    %v970 = vadd.f32 %v968, %v969
    %v971 = vsel %vm778, %v933, 0.0
    %v972 = vrot.slane %v971, 4
    %v973 = vadd.f32 %v971, %v972
    %v974 = vrot.slane %v973, 2
    %v975 = vadd.f32 %v973, %v974
    %v976 = vrot.slane %v975, 1
    %v977 = vadd.f32 %v975, %v976
    %v978 = vsel %vm778, %v934, 0.0
    %v979 = vrot.slane %v978, 4
    %v980 = vadd.f32 %v978, %v979
    %v981 = vrot.slane %v980, 2
    %v982 = vadd.f32 %v980, %v981
    %v983 = vrot.slane %v982, 1
    %v984 = vadd.f32 %v982, %v983
    %v985 = vsel %vm778, %v935, 0.0
    %v986 = vrot.slane %v985, 4
    %v987 = vadd.f32 %v985, %v986
    %v988 = vrot.slane %v987, 2
    %v989 = vadd.f32 %v987, %v988
    %v990 = vrot.slane %v989, 1
    %v991 = vadd.f32 %v989, %v990
    %v992 = vld [vmem:[%s11] sm:$0x1]
    %v993 = vld [vmem:[%s12] sm:$0x1]
    %vm1002 = vcmask 1041409
    %v1003 = vsel %vm1002, %v949, %v942
    %vm1004 = vcmask 1042434
    %v1005 = vsel %vm1004, %v956, %v1003
    %vm1006 = vcmask 1043459
    %v1007 = vsel %vm1006, %v963, %v1005
    %vm1008 = vcmask 1044484
    %v1009 = vsel %vm1008, %v970, %v1007
    %vm1010 = vcmask 1045509
    %v1011 = vsel %vm1010, %v977, %v1009
    %vm1012 = vcmask 1046534
    %v1013 = vsel %vm1012, %v984, %v1011
    %vm1014 = vcmask 1047559
    %v1015 = vsel %vm1014, %v991, %v1013
    %1017 = vadd.xlane.f32.xlu0 %v1015
    %v1018 = vpop.xlane.xlu0 %1017
    %v1019 = vmul.f32 %v1018, 0.03125
    %v1021 = vrot.slane %v1019, 1
    %v1022 = vrot.slane %v1019, 2
    %v1023 = vrot.slane %v1019, 3
    %v1024 = vrot.slane %v1019, 4
    %v1025 = vrot.slane %v1019, 5
    %v1026 = vrot.slane %v1019, 6
    %v1027 = vrot.slane %v1019, 7
    %v1036 = vsub.f32 %v942, %v1019
    %v1037 = vsub.f32 %v949, %v1021
    %v1038 = vsub.f32 %v956, %v1022
    %v1039 = vsub.f32 %v963, %v1023
    %v1040 = vsub.f32 %v970, %v1024
    %v1041 = vsub.f32 %v977, %v1025
    %v1042 = vsub.f32 %v984, %v1026
    %v1043 = vsub.f32 %v991, %v1027
    %v1044 = vmul.f32 %v1036, %v1036
    %v1045 = vmul.f32 %v1037, %v1037
    %v1046 = vmul.f32 %v1038, %v1038
    %v1047 = vmul.f32 %v1039, %v1039
    %v1048 = vmul.f32 %v1040, %v1040
    %v1049 = vmul.f32 %v1041, %v1041
    %v1050 = vmul.f32 %v1042, %v1042
    %v1051 = vmul.f32 %v1043, %v1043
    %v1060 = vrot.slane %v1045, 7
    %v1061 = vsel %vm1002, %v1060, %v1044
    %v1062 = vrot.slane %v1046, 6
    %v1063 = vsel %vm1004, %v1062, %v1061
    %v1064 = vrot.slane %v1047, 5
    %v1065 = vsel %vm1006, %v1064, %v1063
    %v1066 = vrot.slane %v1048, 4
    %v1067 = vsel %vm1008, %v1066, %v1065
    %v1068 = vrot.slane %v1049, 3
    %v1069 = vsel %vm1010, %v1068, %v1067
    %v1070 = vrot.slane %v1050, 2
    %v1071 = vsel %vm1012, %v1070, %v1069
    %v1072 = vrot.slane %v1051, 1
    %v1073 = vsel %vm1014, %v1072, %v1071
    %1075 = vadd.xlane.f32.xlu0 %v1073
    %v1076 = vpop.xlane.xlu0 %1075
    %v1077 = vmul.f32 %v1019, %v1019
    %v1078 = vmul.f32 %v1077, 96.0
    %v1079 = vsub.f32 %v1076, %v1078
    %v1080 = vmul.f32 %v1079, 0.03125
    %v1081 = vadd.f32 %v1080, 1e-05
    %v1082 = vrsqrt.pop %v1081
    %v1083 = vmul.f32 %v1082, %v1081
    %v1084 = vmul.f32 %v1083, %v1082
    %v1085 = vmul.f32 0.5, %v1084
    %v1086 = vsub.f32 1.5, %v1085
    %v1087 = vmul.f32 %v1082, %v1086
    %vm1088 = vweird.f32 %v1081
    %vm1089 = vweird.f32 %v1082
    %vm1090 = vmor %vm1088, %vm1089
    %v1091 = vsel %vm1090, %v1082, %v1087
    %v1093 = vrot.slane %v1091, 1
    %v1094 = vrot.slane %v1091, 2
    %v1095 = vrot.slane %v1091, 3
    %v1096 = vrot.slane %v1091, 4
    %v1097 = vrot.slane %v1091, 5
    %v1098 = vrot.slane %v1091, 6
    %v1099 = vrot.slane %v1091, 7
    %v1108 = vmul.f32 %v1036, %v1091
    %v1109 = vmul.f32 %v1037, %v1093
    %v1110 = vmul.f32 %v1038, %v1094
    %v1111 = vmul.f32 %v1039, %v1095
    %v1112 = vmul.f32 %v1040, %v1096
    %v1113 = vmul.f32 %v1041, %v1097
    %v1114 = vmul.f32 %v1042, %v1098
    %v1115 = vmul.f32 %v1043, %v1099
    %v1117 = vperm.slane %v992, 0
    %v1119 = vmul.f32 %v1108, %v1117
    %v1120 = vmul.f32 %v1109, %v1117
    %v1121 = vmul.f32 %v1110, %v1117
    %v1122 = vmul.f32 %v1111, %v1117
    %v1123 = vmul.f32 %v1112, %v1117
    %v1124 = vmul.f32 %v1113, %v1117
    %v1125 = vmul.f32 %v1114, %v1117
    %v1126 = vmul.f32 %v1115, %v1117
    %v1128 = vperm.slane %v993, 0
    %v1130 = vadd.f32 %v1119, %v1128
    %v1131 = vadd.f32 %v1120, %v1128
    %v1132 = vadd.f32 %v1121, %v1128
    %v1133 = vadd.f32 %v1122, %v1128
    %v1134 = vadd.f32 %v1123, %v1128
    %v1135 = vadd.f32 %v1124, %v1128
    %v1136 = vadd.f32 %v1125, %v1128
    %v1137 = vadd.f32 %v1126, %v1128
    %v1138 = vpack.c.bf16 %v1130, %v1130
    %v1139 = vpack.c.bf16 %v1131, %v1131
    %v1140 = vpack.c.bf16 %v1132, %v1132
    %v1141 = vpack.c.bf16 %v1133, %v1133
    %v1142 = vpack.c.bf16 %v1134, %v1134
    %v1143 = vpack.c.bf16 %v1135, %v1135
    %v1144 = vpack.c.bf16 %v1136, %v1136
    %v1145 = vpack.c.bf16 %v1137, %v1137
    %v1146 = vld [vmem:[#allocation13] sm:$0xf]
    %v1147 = vld [vmem:[#allocation13 + $0x4] sm:$0xf]
    %v1148 = vld [vmem:[#allocation13 + $0x8] sm:$0xf]
    %v1149 = vld [vmem:[#allocation13 + $0xc] sm:$0xf]
    %v1150 = vld [vmem:[#allocation13 + $0x10] sm:$0xf]
    %v1151 = vld [vmem:[#allocation13 + $0x14] sm:$0xf]
    %v1152 = vld [vmem:[#allocation13 + $0x18] sm:$0xf]
    %v1153 = vld [vmem:[#allocation13 + $0x1c] sm:$0xf]
    %v1154 = vld [vmem:[#allocation13 + $0x20] sm:$0xf]
    %v1155 = vld [vmem:[#allocation13 + $0x24] sm:$0xf]
    %v1156 = vld [vmem:[#allocation13 + $0x28] sm:$0xf]
    %v1157 = vld [vmem:[#allocation13 + $0x2c] sm:$0xf]
    %v1158 = vld [vmem:[#allocation13 + $0x30] sm:$0xf]
    %v1159 = vld [vmem:[#allocation13 + $0x34] sm:$0xf]
    %v1160 = vld [vmem:[#allocation13 + $0x38] sm:$0xf]
    %v1161 = vld [vmem:[#allocation13 + $0x3c] sm:$0xf]
    %v1162 = vld [vmem:[%s8] sm:$0x1]
    %v1164 = vperm.slane %v1162, 0
    %v1174 = vunpack.c.l.b16 %v1138
    %v1175 = vunpack.c.l.b16 %v1139
    %v1176 = vunpack.c.l.b16 %v1140
    %v1177 = vunpack.c.l.b16 %v1141
    %v1178 = vunpack.c.l.b16 %v1142
    %v1179 = vunpack.c.l.b16 %v1143
    %v1180 = vunpack.c.l.b16 %v1144
    %v1181 = vunpack.c.l.b16 %v1145
    %v1182 = vrot.slane %v1175, 7
    %v1183 = vsel %vm1002, %v1182, %v1174
    %v1184 = vrot.slane %v1176, 6
    %v1185 = vsel %vm1004, %v1184, %v1183
    %v1186 = vrot.slane %v1177, 5
    %v1187 = vsel %vm1006, %v1186, %v1185
    %v1188 = vrot.slane %v1178, 4
    %v1189 = vsel %vm1008, %v1188, %v1187
    %v1190 = vrot.slane %v1179, 3
    %v1191 = vsel %vm1010, %v1190, %v1189
    %v1192 = vrot.slane %v1180, 2
    %v1193 = vsel %vm1012, %v1192, %v1191
    %v1194 = vrot.slane %v1181, 1
    %v1195 = vsel %vm1014, %v1194, %v1193
    %v1196 = vpack.c.b16 %v1195, %v1195
    %v1214 = vunpack.c.l.b16 %v1146
    %v1215 = vunpack.c.l.b16 %v1147
    %v1216 = vunpack.c.l.b16 %v1148
    %v1217 = vunpack.c.l.b16 %v1149
    %v1218 = vunpack.c.l.b16 %v1150
    %v1219 = vunpack.c.l.b16 %v1151
    %v1220 = vunpack.c.l.b16 %v1152
    %v1221 = vunpack.c.l.b16 %v1153
    %v1222 = vunpack.c.l.b16 %v1154
    %v1223 = vunpack.c.l.b16 %v1155
    %v1224 = vunpack.c.l.b16 %v1156
    %v1225 = vunpack.c.l.b16 %v1157
    %v1226 = vunpack.c.l.b16 %v1158
    %v1227 = vunpack.c.l.b16 %v1159
    %v1228 = vunpack.c.l.b16 %v1160
    %v1229 = vunpack.c.l.b16 %v1161
    %v1230 = vpack.c.b16 %v1215, %v1214
    %v1231 = vpack.c.b16 %v1217, %v1216
    %v1232 = vpack.c.b16 %v1219, %v1218
    %v1233 = vpack.c.b16 %v1221, %v1220
    %v1234 = vpack.c.b16 %v1223, %v1222
    %v1235 = vpack.c.b16 %v1225, %v1224
    %v1236 = vpack.c.b16 %v1227, %v1226
    %v1237 = vpack.c.b16 %v1229, %v1228
    %1246 = vmatpush.bf16.msra.mxu0 %v1237
    %1247 = vmatpush.bf16.msra.mxu0 %v1236
    %1248 = vmatpush.bf16.msra.mxu0 %v1235
    %1249 = vmatpush.bf16.msra.mxu0 %v1234
    %1250 = vmatpush.bf16.msra.mxu0 %v1233
    %1251 = vmatpush.bf16.msra.mxu0 %v1232
    %1252 = vmatpush.bf16.msra.mxu0 %v1231
    %1253 = vmatpush.bf16.msra.mxu0 %v1230
    %1254 = vmatmul.bf16.gmra.mxu0 %v1196
    %v1255 = vpop.f32.mrf.mxu0
    %v1256 = vadd.f32 %v1164, %v1255
    %v1257 = vpop.f32.mrf.mxu0
    %1258 = vdwg.mxu0
    %vm1259 = vcmp.ge.f32.partialorder %v1256, 0.0
    %v1260 = vld [vmem:[%s13] sm:$0x1]
    %v1262 = vperm.slane %v1260, 0
    %v1264 = vmul.f32 %v1262, %v1256
    %v1265 = vsel %vm1259, %v1256, %v1264
    %v1266 = vpack.c.bf16 %v1265, %v1265
    %v1267 = vld [vmem:[#allocation14] sm:$0xf]
    %v1268 = vld [vmem:[#allocation14 + $0x4] sm:$0xf]
    %v1269 = vld [vmem:[#allocation14 + $0x8] sm:$0xf]
    %v1270 = vld [vmem:[#allocation14 + $0xc] sm:$0xf]
    %v1271 = vld [vmem:[#allocation14 + $0x10] sm:$0xf]
    %v1272 = vld [vmem:[#allocation14 + $0x14] sm:$0xf]
    %v1273 = vld [vmem:[#allocation14 + $0x18] sm:$0xf]
    %v1274 = vld [vmem:[#allocation14 + $0x1c] sm:$0xf]
    %v1275 = vld [vmem:[#allocation14 + $0x20] sm:$0xf]
    %v1276 = vld [vmem:[#allocation14 + $0x24] sm:$0xf]
    %v1277 = vld [vmem:[#allocation14 + $0x28] sm:$0xf]
    %v1278 = vld [vmem:[#allocation14 + $0x2c] sm:$0xf]
    %v1279 = vld [vmem:[#allocation14 + $0x30] sm:$0xf]
    %v1280 = vld [vmem:[#allocation14 + $0x34] sm:$0xf]
    %v1281 = vld [vmem:[#allocation14 + $0x38] sm:$0xf]
    %v1282 = vld [vmem:[#allocation14 + $0x3c] sm:$0xf]
    %v1283 = vld [vmem:[%s10] sm:$0x1]
    %v1285 = vperm.slane %v1283, 0
    %v1303 = vunpack.c.l.b16 %v1267
    %v1304 = vunpack.c.l.b16 %v1268
    %v1305 = vunpack.c.l.b16 %v1269
    %v1306 = vunpack.c.l.b16 %v1270
    %v1307 = vunpack.c.l.b16 %v1271
    %v1308 = vunpack.c.l.b16 %v1272
    %v1309 = vunpack.c.l.b16 %v1273
    %v1310 = vunpack.c.l.b16 %v1274
    %v1311 = vunpack.c.l.b16 %v1275
    %v1312 = vunpack.c.l.b16 %v1276
    %v1313 = vunpack.c.l.b16 %v1277
    %v1314 = vunpack.c.l.b16 %v1278
    %v1315 = vunpack.c.l.b16 %v1279
    %v1316 = vunpack.c.l.b16 %v1280
    %v1317 = vunpack.c.l.b16 %v1281
    %v1318 = vunpack.c.l.b16 %v1282
    %v1319 = vpack.c.b16 %v1304, %v1303
    %v1320 = vpack.c.b16 %v1306, %v1305
    %v1321 = vpack.c.b16 %v1308, %v1307
    %v1322 = vpack.c.b16 %v1310, %v1309
    %v1323 = vpack.c.b16 %v1312, %v1311
    %v1324 = vpack.c.b16 %v1314, %v1313
    %v1325 = vpack.c.b16 %v1316, %v1315
    %v1326 = vpack.c.b16 %v1318, %v1317
    %1335 = vmatpush.bf16.msra.mxu0 %v1326
    %1336 = vmatpush.bf16.msra.mxu0 %v1325
    %1337 = vmatpush.bf16.msra.mxu0 %v1324
    %1338 = vmatpush.bf16.msra.mxu0 %v1323
    %1339 = vmatpush.bf16.msra.mxu0 %v1322
    %1340 = vmatpush.bf16.msra.mxu0 %v1321
    %1341 = vmatpush.bf16.msra.mxu0 %v1320
    %1342 = vmatpush.bf16.msra.mxu0 %v1319
    %1343 = vmatmul.bf16.gmra.mxu0 %v1266
    %v1344 = vpop.f32.mrf.mxu0
    %v1345 = vadd.f32 %v1285, %v1344
    %v1346 = vpop.f32.mrf.mxu0
    %1347 = vdwg.mxu0
    %v1356 = vrot.slane %v1131, 7
    %v1357 = vsel %vm1002, %v1356, %v1130
    %v1358 = vrot.slane %v1132, 6
    %v1359 = vsel %vm1004, %v1358, %v1357
    %v1360 = vrot.slane %v1133, 5
    %v1361 = vsel %vm1006, %v1360, %v1359
    %v1362 = vrot.slane %v1134, 4
    %v1363 = vsel %vm1008, %v1362, %v1361
    %v1364 = vrot.slane %v1135, 3
    %v1365 = vsel %vm1010, %v1364, %v1363
    %v1366 = vrot.slane %v1136, 2
    %v1367 = vsel %vm1012, %v1366, %v1365
    %v1368 = vrot.slane %v1137, 1
    %v1369 = vsel %vm1014, %v1368, %v1367
    %v1371 = vadd.f32 %v1345, %v1369
    %1372 = vadd.xlane.f32.xlu0 %v1371
    %v1373 = vpop.xlane.xlu0 %1372
    %v1374 = vmul.f32 %v1373, 0.03125
    %v1375 = vsub.f32 %v1371, %v1374
    %v1376 = vmul.f32 %v1375, %v1375
    %1377 = vadd.xlane.f32.xlu0 %v1376
    %v1378 = vpop.xlane.xlu0 %1377
    %v1379 = vmul.f32 %v1374, %v1374
    %v1380 = vmul.f32 %v1379, 96.0
    %v1381 = vsub.f32 %v1378, %v1380
    %v1382 = vmul.f32 %v1381, 0.03125
    %v1383 = vadd.f32 %v1382, 1e-05
    %v1384 = vrsqrt.pop %v1383
    %v1385 = vmul.f32 %v1384, %v1383
    %v1386 = vmul.f32 %v1385, %v1384
    %v1387 = vmul.f32 0.5, %v1386
    %v1388 = vsub.f32 1.5, %v1387
    %v1389 = vmul.f32 %v1384, %v1388
    %vm1390 = vweird.f32 %v1383
    %vm1391 = vweird.f32 %v1384
    %vm1392 = vmor %vm1390, %vm1391
    %v1393 = vsel %vm1392, %v1384, %v1389
    %v1394 = vmul.f32 %v1375, %v1393
    %v1395 = vmul.f32 %v1394, %v1117
    %v1396 = vadd.f32 %v1395, %v1128
    %1397 = vst [vmem:[#allocation16] sm:$0xff] %v1396
    // Predicated region
    $region90: #{tpu_custom_call.1} parent=1 // pred_check
      _
    $region91: #{tpu_custom_call.1} parent=1 // pred_check_branch
      %1399 = sbr.rel (0) target = $region93
    $region92: #{tpu_custom_call.1} parent=1 // pred_region
      %1401 = vsyncadd [#allocation4], 0
      %s1403 = sshll.u32 [#allocation16], 4
      %s1404 = int_to_ptr.vmem [resolvable:$true] %s1403
      %s1405 = sshll.u32 %s14, 4
      %s1406 = int_to_ptr.hbm [resolvable:$true] %s1405
      %1408 = dma.vmem_to_hbm [thread:$0]  %s1404, 128, %s1406, [#allocation4]
    $region93: #{tpu_custom_call.1} parent=1 // pred_fallthru
      _
    // Predicated region
    $region94: #{tpu_custom_call.1} parent=1 // pred_check
      _
    $region95: #{tpu_custom_call.1} parent=1 // pred_check_branch
      %1410 = sbr.rel (0) target = $region97
    $region96: #{tpu_custom_call.1} parent=1 // pred_region
      %1412 = dma.done [#allocation4], 128
    $region97: #{tpu_custom_call.1} parent=1 // pred_fallthru
      _
    %1413 = vsyncpa [#allocation3], 1
    %1414 = vsyncpa [#allocation6], 1
    %1415 = vsyncpa [#allocation9], 1
    %1416 = vsyncpa [#allocation12], 1
    %1417 = vsyncpa [#allocation15], 1
    %1418 = vsyncpa [#allocation4], 1

// kernel: tpu_custom_call.1
$region0: #{tpu_custom_call.1}
  #allocation0 [shape = 'u32[]', space=smem, size = 0x4, offset = 0x4, fixed_abs, tag = 'smem constant byte address 0x4 - core index']
  #allocation1 [shape = 'u32[72,128]{1,0:T(1,128)}', space=vmem, size = 0x9000, scoped, tag = 'internal scratch']
  %s0 = inlined_call_operand.hbm [shape: bf16[8,128], index: 0, kind: input, shape index: {}]
  %s1 = inlined_call_operand.hbm [shape: bf16[8,8,128], index: 1, kind: input, shape index: {}]
  %s2 = inlined_call_operand.hbm [shape: f32[8,1,8], index: 2, kind: input, shape index: {}]
  %s3 = inlined_call_operand.hbm [shape: bf16[128,128], index: 3, kind: input, shape index: {}]
  %s4 = inlined_call_operand.hbm [shape: bf16[128,128], index: 4, kind: input, shape index: {}]
  %s5 = inlined_call_operand.hbm [shape: bf16[128,128], index: 5, kind: input, shape index: {}]
  %s6 = inlined_call_operand.vmem [shape: f32[4,128], index: 6, kind: input, shape index: {}]
  %s7 = inlined_call_operand.hbm [shape: bf16[128,128], index: 7, kind: input, shape index: {}]
  %s8 = inlined_call_operand.vmem [shape: f32[1,128], index: 8, kind: input, shape index: {}]
  %s9 = inlined_call_operand.hbm [shape: bf16[128,128], index: 9, kind: input, shape index: {}]
  %s10 = inlined_call_operand.vmem [shape: f32[1,128], index: 10, kind: input, shape index: {}]
  %s11 = inlined_call_operand.vmem [shape: f32[1,128], index: 11, kind: input, shape index: {}]
  %s12 = inlined_call_operand.vmem [shape: f32[1,128], index: 12, kind: input, shape index: {}]
  %s13 = inlined_call_operand.vmem [shape: f32[1,128], index: 13, kind: input, shape index: {}]
  %s14 = inlined_call_operand.hbm [shape: f32[8,128], index: 14, kind: output, shape index: {}]
  %s15 = sld [smem:[#allocation0]]
  $region98: #{tpu_custom_call.1} parent=0
    _
  %s17 = ssub.s32 1, %s15
  %s18 = scalar_select 0, %s17, %s15
  $region1: #{tpu_custom_call.1} parent=0
    #allocation2 [shape = 'u8[2048]{0}', space=vmem, size = 0x800, scoped, tag = 'input window, operand 0, single buffered']
    #allocation3 [shape = 's32[1]{0}', space=sflag, size = 0x4, scoped, tag = 'scoped memory for tpu_custom_call.1']
    #allocation4 [shape = 's32[1]{0}', space=sflag, size = 0x4, scoped, tag = 'scoped memory for tpu_custom_call.1']
    #allocation5 [shape = 'u8[16384]{0}', space=vmem, size = 0x4000, scoped, tag = 'input window, operand 1, single buffered']
    #allocation6 [shape = 's32[1]{0}', space=sflag, size = 0x4, scoped, tag = 'scoped memory for tpu_custom_call.1']
    #allocation7 [shape = 'u8[4096]{0}', space=vmem, size = 0x1000, scoped, tag = 'input window, operand 2, single buffered']
    #allocation8 [shape = 'u8[32768]{0}', space=vmem, size = 0x8000, scoped, tag = 'input window, operand 3, single buffered']
    #allocation9 [shape = 's32[1]{0}', space=sflag, size = 0x4, scoped, tag = 'scoped memory for tpu_custom_call.1']
    #allocation10 [shape = 'u8[32768]{0}', space=vmem, size = 0x8000, scoped, tag = 'input window, operand 4, single buffered']
    #allocation11 [shape = 'u8[32768]{0}', space=vmem, size = 0x8000, scoped, tag = 'input window, operand 5, single buffered']
    #allocation12 [shape = 's32[1]{0}', space=sflag, size = 0x4, scoped, tag = 'scoped memory for tpu_custom_call.1']
    #allocation13 [shape = 'u8[32768]{0}', space=vmem, size = 0x8000, scoped, tag = 'input window, operand 7, single buffered']
    #allocation14 [shape = 'u8[32768]{0}', space=vmem, size = 0x8000, scoped, tag = 'input window, operand 9, single buffered']
    #allocation15 [shape = 's32[1]{0}', space=sflag, size = 0x4, scoped, tag = 'scoped memory for tpu_custom_call.1']
    #allocation16 [shape = 'u8[4096]{0}', space=vmem, size = 0x1000, scoped, tag = 'output window, operand 0, single buffered']
    %19 = vsyncpa [#allocation3], 0
    %20 = vsyncpa [#allocation6], 0
    %21 = vsyncpa [#allocation9], 0
    %22 = vsyncpa [#allocation12], 0
    %23 = vsyncpa [#allocation15], 0
    %24 = vsyncpa [#allocation4], 0
    // Predicated region
    $region2: #{tpu_custom_call.1} parent=1 // pred_check
      _
    $region3: #{tpu_custom_call.1} parent=1 // pred_check_branch
      %26 = sbr.rel (0) target = $region5
    $region4: #{tpu_custom_call.1} parent=1 // pred_region
      %28 = vsyncadd [#allocation3], 0
      %s30 = sshll.u32 %s0, 4
      %s31 = int_to_ptr.hbm [resolvable:$true] %s30
      %s32 = sshll.u32 [#allocation2], 4
      %s33 = int_to_ptr.vmem [resolvable:$true] %s32
      %35 = dma.hbm_to_vmem [thread:$0]  %s31, 64, %s33, [#allocation3]
    $region5: #{tpu_custom_call.1} parent=1 // pred_fallthru
      _
    // Predicated region
    $region6: #{tpu_custom_call.1} parent=1 // pred_check
      _
    $region7: #{tpu_custom_call.1} parent=1 // pred_check_branch
      %37 = sbr.rel (0) target = $region9
    $region8: #{tpu_custom_call.1} parent=1 // pred_region
      %39 = vsyncadd [#allocation6], 0
      %s40 = sshll.u32 %s1, 4
      %s41 = int_to_ptr.hbm [resolvable:$true] %s40
      %s42 = sshll.u32 [#allocation5], 4
      %s43 = int_to_ptr.vmem [resolvable:$true] %s42
      %48 = dma.hbm_to_vmem [thread:$0]  %s41, 512, %s43, [#allocation6], 64, 64, 4
    $region9: #{tpu_custom_call.1} parent=1 // pred_fallthru
      _
    // Predicated region
    $region10: #{tpu_custom_call.1} parent=1 // pred_check
      _
    $region11: #{tpu_custom_call.1} parent=1 // pred_check_branch
      %50 = sbr.rel (0) target = $region13
    $region12: #{tpu_custom_call.1} parent=1 // pred_region
      %52 = vsyncadd [#allocation6], 0
      %s53 = sshll.u32 %s2, 4
      %s54 = int_to_ptr.hbm [resolvable:$true] %s53
      %s55 = sshll.u32 [#allocation7], 4
      %s56 = int_to_ptr.vmem [resolvable:$true] %s55
      %61 = dma.hbm_to_vmem [thread:$0]  %s54, 128, %s56, [#allocation6], 16, 16, 1
    $region13: #{tpu_custom_call.1} parent=1 // pred_fallthru
      _
    // Predicated region
    $region14: #{tpu_custom_call.1} parent=1 // pred_check
      _
    $region15: #{tpu_custom_call.1} parent=1 // pred_check_branch
      %63 = sbr.rel (0) target = $region17
    $region16: #{tpu_custom_call.1} parent=1 // pred_region
      %65 = vsyncadd [#allocation9], 0
      %s66 = sshll.u32 %s3, 4
      %s67 = int_to_ptr.hbm [resolvable:$true] %s66
      %s68 = sshll.u32 [#allocation8], 4
      %s69 = int_to_ptr.vmem [resolvable:$true] %s68
      %74 = dma.hbm_to_vmem [thread:$0]  %s67, 1024, %s69, [#allocation9], 64, 64, 4
    $region17: #{tpu_custom_call.1} parent=1 // pred_fallthru
      _
    // Predicated region
    $region18: #{tpu_custom_call.1} parent=1 // pred_check
      _
    $region19: #{tpu_custom_call.1} parent=1 // pred_check_branch
      %76 = sbr.rel (0) target = $region21
    $region20: #{tpu_custom_call.1} parent=1 // pred_region
      %78 = vsyncadd [#allocation9], 0
      %s79 = sshll.u32 %s4, 4
      %s80 = int_to_ptr.hbm [resolvable:$true] %s79
      %s81 = sshll.u32 [#allocation10], 4
      %s82 = int_to_ptr.vmem [resolvable:$true] %s81
      %87 = dma.hbm_to_vmem [thread:$0]  %s80, 1024, %s82, [#allocation9], 64, 64, 4
    $region21: #{tpu_custom_call.1} parent=1 // pred_fallthru
      _
    // Predicated region
    $region22: #{tpu_custom_call.1} parent=1 // pred_check
      _
    $region23: #{tpu_custom_call.1} parent=1 // pred_check_branch
      %89 = sbr.rel (0) target = $region25
    $region24: #{tpu_custom_call.1} parent=1 // pred_region
      %91 = vsyncadd [#allocation12], 0
      %s92 = sshll.u32 %s5, 4
      %s93 = int_to_ptr.hbm [resolvable:$true] %s92
      %s94 = sshll.u32 [#allocation11], 4
      %s95 = int_to_ptr.vmem [resolvable:$true] %s94
      %100 = dma.hbm_to_vmem [thread:$0]  %s93, 1024, %s95, [#allocation12], 64, 64, 4
    $region25: #{tpu_custom_call.1} parent=1 // pred_fallthru
      _
    // Predicated region
    $region26: #{tpu_custom_call.1} parent=1 // pred_check
      _
    $region27: #{tpu_custom_call.1} parent=1 // pred_check_branch
      %102 = sbr.rel (0) target = $region29
    $region28: #{tpu_custom_call.1} parent=1 // pred_region
      _
    $region29: #{tpu_custom_call.1} parent=1 // pred_fallthru
      _
    // Predicated region
    $region30: #{tpu_custom_call.1} parent=1 // pred_check
      _
    $region31: #{tpu_custom_call.1} parent=1 // pred_check_branch
      %104 = sbr.rel (0) target = $region33
    $region32: #{tpu_custom_call.1} parent=1 // pred_region
      %106 = vsyncadd [#allocation12], 0
      %s107 = sshll.u32 %s7, 4
      %s108 = int_to_ptr.hbm [resolvable:$true] %s107
      %s109 = sshll.u32 [#allocation13], 4
      %s110 = int_to_ptr.vmem [resolvable:$true] %s109
      %115 = dma.hbm_to_vmem [thread:$0]  %s108, 1024, %s110, [#allocation12], 64, 64, 4
    $region33: #{tpu_custom_call.1} parent=1 // pred_fallthru
      _
    // Predicated region
    $region34: #{tpu_custom_call.1} parent=1 // pred_check
      _
    $region35: #{tpu_custom_call.1} parent=1 // pred_check_branch
      %117 = sbr.rel (0) target = $region37
    $region36: #{tpu_custom_call.1} parent=1 // pred_region
      _
    $region37: #{tpu_custom_call.1} parent=1 // pred_fallthru
      _
    // Predicated region
    $region38: #{tpu_custom_call.1} parent=1 // pred_check
      _
    $region39: #{tpu_custom_call.1} parent=1 // pred_check_branch
      %119 = sbr.rel (0) target = $region41
    $region40: #{tpu_custom_call.1} parent=1 // pred_region
      %121 = vsyncadd [#allocation15], 0
      %s122 = sshll.u32 %s9, 4
      %s123 = int_to_ptr.hbm [resolvable:$true] %s122
      %s124 = sshll.u32 [#allocation14], 4
      %s125 = int_to_ptr.vmem [resolvable:$true] %s124
      %130 = dma.hbm_to_vmem [thread:$0]  %s123, 1024, %s125, [#allocation15], 64, 64, 4
    $region41: #{tpu_custom_call.1} parent=1 // pred_fallthru
      _
    // Predicated region
    $region42: #{tpu_custom_call.1} parent=1 // pred_check
      _
    $region43: #{tpu_custom_call.1} parent=1 // pred_check_branch
      %132 = sbr.rel (0) target = $region45
    $region44: #{tpu_custom_call.1} parent=1 // pred_region
      _
    $region45: #{tpu_custom_call.1} parent=1 // pred_fallthru
      _
    // Predicated region
    $region46: #{tpu_custom_call.1} parent=1 // pred_check
      _
    $region47: #{tpu_custom_call.1} parent=1 // pred_check_branch
      %134 = sbr.rel (0) target = $region49
    $region48: #{tpu_custom_call.1} parent=1 // pred_region
      _
    $region49: #{tpu_custom_call.1} parent=1 // pred_fallthru
      _
    // Predicated region
    $region50: #{tpu_custom_call.1} parent=1 // pred_check
      _
    $region51: #{tpu_custom_call.1} parent=1 // pred_check_branch
      %136 = sbr.rel (0) target = $region53
    $region52: #{tpu_custom_call.1} parent=1 // pred_region
      _
    $region53: #{tpu_custom_call.1} parent=1 // pred_fallthru
      _
    // Predicated region
    $region54: #{tpu_custom_call.1} parent=1 // pred_check
      _
    $region55: #{tpu_custom_call.1} parent=1 // pred_check_branch
      %138 = sbr.rel (0) target = $region57
    $region56: #{tpu_custom_call.1} parent=1 // pred_region
      _
    $region57: #{tpu_custom_call.1} parent=1 // pred_fallthru
      _
    // Predicated region
    $region58: #{tpu_custom_call.1} parent=1 // pred_check
      _
    $region59: #{tpu_custom_call.1} parent=1 // pred_check_branch
      %140 = sbr.rel (0) target = $region61
    $region60: #{tpu_custom_call.1} parent=1 // pred_region
      %142 = dma.done [#allocation3], 64
    $region61: #{tpu_custom_call.1} parent=1 // pred_fallthru
      _
    // Predicated region
    $region62: #{tpu_custom_call.1} parent=1 // pred_check
      _
    $region63: #{tpu_custom_call.1} parent=1 // pred_check_branch
      %144 = sbr.rel (0) target = $region65
    $region64: #{tpu_custom_call.1} parent=1 // pred_region
      %146 = dma.done [#allocation6], 512
    $region65: #{tpu_custom_call.1} parent=1 // pred_fallthru
      _
    // Predicated region
    $region66: #{tpu_custom_call.1} parent=1 // pred_check
      _
    $region67: #{tpu_custom_call.1} parent=1 // pred_check_branch
      %148 = sbr.rel (0) target = $region69
    $region68: #{tpu_custom_call.1} parent=1 // pred_region
      %150 = dma.done [#allocation6], 128
    $region69: #{tpu_custom_call.1} parent=1 // pred_fallthru
      _
    // Predicated region
    $region70: #{tpu_custom_call.1} parent=1 // pred_check
      _
    $region71: #{tpu_custom_call.1} parent=1 // pred_check_branch
      %152 = sbr.rel (0) target = $region73
    $region72: #{tpu_custom_call.1} parent=1 // pred_region
      %154 = dma.done [#allocation9], 1024
    $region73: #{tpu_custom_call.1} parent=1 // pred_fallthru
      _
    // Predicated region
    $region74: #{tpu_custom_call.1} parent=1 // pred_check
      _
    $region75: #{tpu_custom_call.1} parent=1 // pred_check_branch
      %156 = sbr.rel (0) target = $region77
    $region76: #{tpu_custom_call.1} parent=1 // pred_region
      %158 = dma.done [#allocation9], 1024
    $region77: #{tpu_custom_call.1} parent=1 // pred_fallthru
      _
    // Predicated region
    $region78: #{tpu_custom_call.1} parent=1 // pred_check
      _
    $region79: #{tpu_custom_call.1} parent=1 // pred_check_branch
      %160 = sbr.rel (0) target = $region81
    $region80: #{tpu_custom_call.1} parent=1 // pred_region
      %162 = dma.done [#allocation12], 1024
    $region81: #{tpu_custom_call.1} parent=1 // pred_fallthru
      _
    // Predicated region
    $region82: #{tpu_custom_call.1} parent=1 // pred_check
      _
    $region83: #{tpu_custom_call.1} parent=1 // pred_check_branch
      %164 = sbr.rel (0) target = $region85
    $region84: #{tpu_custom_call.1} parent=1 // pred_region
      %166 = dma.done [#allocation12], 1024
    $region85: #{tpu_custom_call.1} parent=1 // pred_fallthru
      _
    // Predicated region
    $region86: #{tpu_custom_call.1} parent=1 // pred_check
      _
    $region87: #{tpu_custom_call.1} parent=1 // pred_check_branch
      %168 = sbr.rel (0) target = $region89
    $region88: #{tpu_custom_call.1} parent=1 // pred_region
      %170 = dma.done [#allocation15], 1024
    $region89: #{tpu_custom_call.1} parent=1 // pred_fallthru
      _
    %v172 = vld [vmem:[#allocation2] sm:$0xf]
    %v173 = vld [vmem:[#allocation5] sm:$0xf]
    %v174 = vld [vmem:[#allocation5 + $0x4] sm:$0xf]
    %v175 = vld [vmem:[#allocation5 + $0x8] sm:$0xf]
    %v176 = vld [vmem:[#allocation5 + $0xc] sm:$0xf]
    %v177 = vld [vmem:[#allocation5 + $0x10] sm:$0xf]
    %v178 = vld [vmem:[#allocation5 + $0x14] sm:$0xf]
    %v179 = vld [vmem:[#allocation5 + $0x18] sm:$0xf]
    %v180 = vld [vmem:[#allocation5 + $0x1c] sm:$0xf]
    %v181 = vld [vmem:[#allocation8] sm:$0xf]
    %v182 = vld [vmem:[#allocation8 + $0x4] sm:$0xf]
    %v183 = vld [vmem:[#allocation8 + $0x8] sm:$0xf]
    %v184 = vld [vmem:[#allocation8 + $0xc] sm:$0xf]
    %v185 = vld [vmem:[#allocation8 + $0x10] sm:$0xf]
    %v186 = vld [vmem:[#allocation8 + $0x14] sm:$0xf]
    %v187 = vld [vmem:[#allocation8 + $0x18] sm:$0xf]
    %v188 = vld [vmem:[#allocation8 + $0x1c] sm:$0xf]
    %v189 = vld [vmem:[#allocation8 + $0x20] sm:$0xf]
    %v190 = vld [vmem:[#allocation8 + $0x24] sm:$0xf]
    %v191 = vld [vmem:[#allocation8 + $0x28] sm:$0xf]
    %v192 = vld [vmem:[#allocation8 + $0x2c] sm:$0xf]
    %v193 = vld [vmem:[#allocation8 + $0x30] sm:$0xf]
    %v194 = vld [vmem:[#allocation8 + $0x34] sm:$0xf]
    %v195 = vld [vmem:[#allocation8 + $0x38] sm:$0xf]
    %v196 = vld [vmem:[#allocation8 + $0x3c] sm:$0xf]
    %v213 = vunpack.c.l.b16 %v181
    %v214 = vunpack.c.l.b16 %v182
    %v215 = vunpack.c.l.b16 %v183
    %v216 = vunpack.c.l.b16 %v184
    %v217 = vunpack.c.l.b16 %v185
    %v218 = vunpack.c.l.b16 %v186
    %v219 = vunpack.c.l.b16 %v187
    %v220 = vunpack.c.l.b16 %v188
    %v221 = vunpack.c.l.b16 %v189
    %v222 = vunpack.c.l.b16 %v190
    %v223 = vunpack.c.l.b16 %v191
    %v224 = vunpack.c.l.b16 %v192
    %v225 = vunpack.c.l.b16 %v193
    %v226 = vunpack.c.l.b16 %v194
    %v227 = vunpack.c.l.b16 %v195
    %v228 = vunpack.c.l.b16 %v196
    %v229 = vpack.c.b16 %v214, %v213
    %v230 = vpack.c.b16 %v216, %v215
    %v231 = vpack.c.b16 %v218, %v217
    %v232 = vpack.c.b16 %v220, %v219
    %v233 = vpack.c.b16 %v222, %v221
    %v234 = vpack.c.b16 %v224, %v223
    %v235 = vpack.c.b16 %v226, %v225
    %v236 = vpack.c.b16 %v228, %v227
    %245 = vmatpush.bf16.msra.mxu0 %v236
    %246 = vmatpush.bf16.msra.mxu0 %v235
    %247 = vmatpush.bf16.msra.mxu0 %v234
    %248 = vmatpush.bf16.msra.mxu0 %v233
    %249 = vmatpush.bf16.msra.mxu0 %v232
    %250 = vmatpush.bf16.msra.mxu0 %v231
    %251 = vmatpush.bf16.msra.mxu0 %v230
    %252 = vmatpush.bf16.msra.mxu0 %v229
    %253 = vmatmul.bf16.gmra.mxu0 %v172
    %v254 = vpop.f32.mrf.mxu0
    %v255 = vadd.f32 0.0, %v254
    %v256 = vpop.f32.mrf.mxu0
    %257 = vdwg.mxu0
    %v258 = vld [vmem:[#allocation10] sm:$0xf]
    %v259 = vld [vmem:[#allocation10 + $0x4] sm:$0xf]
    %v260 = vld [vmem:[#allocation10 + $0x8] sm:$0xf]
    %v261 = vld [vmem:[#allocation10 + $0xc] sm:$0xf]
    %v262 = vld [vmem:[#allocation10 + $0x10] sm:$0xf]
    %v263 = vld [vmem:[#allocation10 + $0x14] sm:$0xf]
    %v264 = vld [vmem:[#allocation10 + $0x18] sm:$0xf]
    %v265 = vld [vmem:[#allocation10 + $0x1c] sm:$0xf]
    %v266 = vld [vmem:[#allocation10 + $0x20] sm:$0xf]
    %v267 = vld [vmem:[#allocation10 + $0x24] sm:$0xf]
    %v268 = vld [vmem:[#allocation10 + $0x28] sm:$0xf]
    %v269 = vld [vmem:[#allocation10 + $0x2c] sm:$0xf]
    %v270 = vld [vmem:[#allocation10 + $0x30] sm:$0xf]
    %v271 = vld [vmem:[#allocation10 + $0x34] sm:$0xf]
    %v272 = vld [vmem:[#allocation10 + $0x38] sm:$0xf]
    %v273 = vld [vmem:[#allocation10 + $0x3c] sm:$0xf]
    %v282 = vunpack.c.l.b16 %v173
    %v283 = vunpack.c.l.b16 %v174
    %v284 = vunpack.c.l.b16 %v175
    %v285 = vunpack.c.l.b16 %v176
    %v286 = vunpack.c.l.b16 %v177
    %v287 = vunpack.c.l.b16 %v178
    %v288 = vunpack.c.l.b16 %v179
    %v289 = vunpack.c.l.b16 %v180
    %v290 = vpack.c.b16 %v283, %v282
    %v291 = vpack.c.b16 %v285, %v284
    %v292 = vpack.c.b16 %v287, %v286
    %v293 = vpack.c.b16 %v289, %v288
    %v314 = vunpack.c.l.b16 %v258
    %v315 = vunpack.c.l.b16 %v259
    %v316 = vunpack.c.l.b16 %v260
    %v317 = vunpack.c.l.b16 %v261
    %v318 = vunpack.c.l.b16 %v262
    %v319 = vunpack.c.l.b16 %v263
    %v320 = vunpack.c.l.b16 %v264
    %v321 = vunpack.c.l.b16 %v265
    %v322 = vunpack.c.l.b16 %v266
    %v323 = vunpack.c.l.b16 %v267
    %v324 = vunpack.c.l.b16 %v268
    %v325 = vunpack.c.l.b16 %v269
    %v326 = vunpack.c.l.b16 %v270
    %v327 = vunpack.c.l.b16 %v271
    %v328 = vunpack.c.l.b16 %v272
    %v329 = vunpack.c.l.b16 %v273
    %v330 = vpack.c.b16 %v315, %v314
    %v331 = vpack.c.b16 %v317, %v316
    %v332 = vpack.c.b16 %v319, %v318
    %v333 = vpack.c.b16 %v321, %v320
    %v334 = vpack.c.b16 %v323, %v322
    %v335 = vpack.c.b16 %v325, %v324
    %v336 = vpack.c.b16 %v327, %v326
    %v337 = vpack.c.b16 %v329, %v328
    %346 = vmatpush.bf16.msra.mxu0 %v337
    %347 = vmatpush.bf16.msra.mxu0 %v336
    %348 = vmatpush.bf16.msra.mxu0 %v335
    %349 = vmatpush.bf16.msra.mxu0 %v334
    %350 = vmatpush.bf16.msra.mxu0 %v333
    %351 = vmatpush.bf16.msra.mxu0 %v332
    %352 = vmatpush.bf16.msra.mxu0 %v331
    %353 = vmatpush.bf16.msra.mxu0 %v330
    %354 = vmatmul.bf16.gmra.mxu0 %v290
    %v355 = vpop.f32.mrf.mxu0
    %v356 = vadd.f32 0.0, %v355
    %v357 = vpop.f32.mrf.mxu0
    %v358 = vadd.f32 0.0, %v357
    %359 = vmatmul.bf16.gmra.mxu0 %v291
    %v360 = vpop.f32.mrf.mxu0
    %v361 = vadd.f32 0.0, %v360
    %v362 = vpop.f32.mrf.mxu0
    %v363 = vadd.f32 0.0, %v362
    %364 = vmatmul.bf16.gmra.mxu0 %v292
    %v365 = vpop.f32.mrf.mxu0
    %v366 = vadd.f32 0.0, %v365
    %v367 = vpop.f32.mrf.mxu0
    %v368 = vadd.f32 0.0, %v367
    %369 = vmatmul.bf16.gmra.mxu0 %v293
    %v370 = vpop.f32.mrf.mxu0
    %v371 = vadd.f32 0.0, %v370
    %v372 = vpop.f32.mrf.mxu0
    %v373 = vadd.f32 0.0, %v372
    %374 = vdwg.mxu0
    %v375 = vld [vmem:[#allocation11] sm:$0xf]
    %v376 = vld [vmem:[#allocation11 + $0x4] sm:$0xf]
    %v377 = vld [vmem:[#allocation11 + $0x8] sm:$0xf]
    %v378 = vld [vmem:[#allocation11 + $0xc] sm:$0xf]
    %v379 = vld [vmem:[#allocation11 + $0x10] sm:$0xf]
    %v380 = vld [vmem:[#allocation11 + $0x14] sm:$0xf]
    %v381 = vld [vmem:[#allocation11 + $0x18] sm:$0xf]
    %v382 = vld [vmem:[#allocation11 + $0x1c] sm:$0xf]
    %v383 = vld [vmem:[#allocation11 + $0x20] sm:$0xf]
    %v384 = vld [vmem:[#allocation11 + $0x24] sm:$0xf]
    %v385 = vld [vmem:[#allocation11 + $0x28] sm:$0xf]
    %v386 = vld [vmem:[#allocation11 + $0x2c] sm:$0xf]
    %v387 = vld [vmem:[#allocation11 + $0x30] sm:$0xf]
    %v388 = vld [vmem:[#allocation11 + $0x34] sm:$0xf]
    %v389 = vld [vmem:[#allocation11 + $0x38] sm:$0xf]
    %v390 = vld [vmem:[#allocation11 + $0x3c] sm:$0xf]
    %v407 = vunpack.c.l.b16 %v375
    %v408 = vunpack.c.l.b16 %v376
    %v409 = vunpack.c.l.b16 %v377
    %v410 = vunpack.c.l.b16 %v378
    %v411 = vunpack.c.l.b16 %v379
    %v412 = vunpack.c.l.b16 %v380
    %v413 = vunpack.c.l.b16 %v381
    %v414 = vunpack.c.l.b16 %v382
    %v415 = vunpack.c.l.b16 %v383
    %v416 = vunpack.c.l.b16 %v384
    %v417 = vunpack.c.l.b16 %v385
    %v418 = vunpack.c.l.b16 %v386
    %v419 = vunpack.c.l.b16 %v387
    %v420 = vunpack.c.l.b16 %v388
    %v421 = vunpack.c.l.b16 %v389
    %v422 = vunpack.c.l.b16 %v390
    %v423 = vpack.c.b16 %v408, %v407
    %v424 = vpack.c.b16 %v410, %v409
    %v425 = vpack.c.b16 %v412, %v411
    %v426 = vpack.c.b16 %v414, %v413
    %v427 = vpack.c.b16 %v416, %v415
    %v428 = vpack.c.b16 %v418, %v417
    %v429 = vpack.c.b16 %v420, %v419
    %v430 = vpack.c.b16 %v422, %v421
    %439 = vmatpush.bf16.msra.mxu0 %v430
    %440 = vmatpush.bf16.msra.mxu0 %v429
    %441 = vmatpush.bf16.msra.mxu0 %v428
    %442 = vmatpush.bf16.msra.mxu0 %v427
    %443 = vmatpush.bf16.msra.mxu0 %v426
    %444 = vmatpush.bf16.msra.mxu0 %v425
    %445 = vmatpush.bf16.msra.mxu0 %v424
    %446 = vmatpush.bf16.msra.mxu0 %v423
    %447 = vmatmul.bf16.gmra.mxu0 %v290
    %v448 = vpop.f32.mrf.mxu0
    %v449 = vadd.f32 0.0, %v448
    %v450 = vpop.f32.mrf.mxu0
    %v451 = vadd.f32 0.0, %v450
    %452 = vmatmul.bf16.gmra.mxu0 %v291
    %v453 = vpop.f32.mrf.mxu0
    %v454 = vadd.f32 0.0, %v453
    %v455 = vpop.f32.mrf.mxu0
    %v456 = vadd.f32 0.0, %v455
    %457 = vmatmul.bf16.gmra.mxu0 %v292
    %v458 = vpop.f32.mrf.mxu0
    %v459 = vadd.f32 0.0, %v458
    %v460 = vpop.f32.mrf.mxu0
    %v461 = vadd.f32 0.0, %v460
    %462 = vmatmul.bf16.gmra.mxu0 %v293
    %v463 = vpop.f32.mrf.mxu0
    %v464 = vadd.f32 0.0, %v463
    %v465 = vpop.f32.mrf.mxu0
    %v466 = vadd.f32 0.0, %v465
    %467 = vdwg.mxu0
    %v468 = vpack.c.bf16 %v356, %v356
    %v469 = vpack.c.bf16 %v358, %v358
    %v470 = vpack.c.bf16 %v361, %v361
    %v471 = vpack.c.bf16 %v363, %v363
    %v472 = vpack.c.bf16 %v366, %v366
    %v473 = vpack.c.bf16 %v368, %v368
    %v474 = vpack.c.bf16 %v371, %v371
    %v475 = vpack.c.bf16 %v373, %v373
    %v476 = vpack.c.bf16 %v449, %v449
    %v477 = vpack.c.bf16 %v451, %v451
    %v478 = vpack.c.bf16 %v454, %v454
    %v479 = vpack.c.bf16 %v456, %v456
    %v480 = vpack.c.bf16 %v459, %v459
    %v481 = vpack.c.bf16 %v461, %v461
    %v482 = vpack.c.bf16 %v464, %v464
    %v483 = vpack.c.bf16 %v466, %v466
    %v484 = vld [vmem:[%s6] sm:$0xf]
    %v486 = vrot.slane %v255, 1
    %v487 = vrot.slane %v255, 2
    %v488 = vrot.slane %v255, 3
    %v489 = vrot.slane %v255, 4
    %v490 = vrot.slane %v255, 5
    %v491 = vrot.slane %v255, 6
    %v492 = vrot.slane %v255, 7
    %v493 = vperm.slane %v255, 0
    %v494 = vperm.slane %v486, 0
    %v495 = vperm.slane %v487, 0
    %v496 = vperm.slane %v488, 0
    %v497 = vperm.slane %v489, 0
    %v498 = vperm.slane %v490, 0
    %v499 = vperm.slane %v491, 0
    %v500 = vperm.slane %v492, 0
    %v509 = vmul.f32 %v493, %v484
    %v510 = vmul.f32 %v494, %v484
    %v511 = vmul.f32 %v495, %v484
    %v512 = vmul.f32 %v496, %v484
    %v513 = vmul.f32 %v497, %v484
    %v514 = vmul.f32 %v498, %v484
    %v515 = vmul.f32 %v499, %v484
    %v516 = vmul.f32 %v500, %v484
    %v517 = vpack.c.bf16 %v509, %v509
    %v518 = vpack.c.bf16 %v510, %v510
    %v519 = vpack.c.bf16 %v511, %v511
    %v520 = vpack.c.bf16 %v512, %v512
    %v521 = vpack.c.bf16 %v513, %v513
    %v522 = vpack.c.bf16 %v514, %v514
    %v523 = vpack.c.bf16 %v515, %v515
    %v524 = vpack.c.bf16 %v516, %v516
    %525 = vmatpush.bf16.xpose.msra.mxu0 0
    %526 = vmatpush.bf16.xpose.msra.mxu0 0
    %527 = vmatpush.bf16.xpose.msra.mxu0 0
    %528 = vmatpush.bf16.xpose.msra.mxu0 0
    %529 = vmatpush.bf16.xpose.msra.mxu0 0
    %530 = vmatpush.bf16.xpose.msra.mxu0 0
    %531 = vmatpush.bf16.xpose.msra.mxu0 0
    %532 = vmatpush.bf16.xpose.msra.mxu0 %v468
    %533 = vmatmul.bf16.gmra.mxu0 %v517
    %v534 = vpop.f32.mrf.mxu0
    %v535 = vadd.f32 0.0, %v534
    %v536 = vpop.f32.mrf.mxu0
    %537 = vdwg.mxu0
    %538 = vmatpush.bf16.xpose.msra.mxu0 0
    %539 = vmatpush.bf16.xpose.msra.mxu0 0
    %540 = vmatpush.bf16.xpose.msra.mxu0 0
    %541 = vmatpush.bf16.xpose.msra.mxu0 0
    %542 = vmatpush.bf16.xpose.msra.mxu0 0
    %543 = vmatpush.bf16.xpose.msra.mxu0 0
    %544 = vmatpush.bf16.xpose.msra.mxu0 0
    %545 = vmatpush.bf16.xpose.msra.mxu0 %v469
    %546 = vmatmul.bf16.gmra.mxu0 %v518
    %v547 = vpop.f32.mrf.mxu0
    %v548 = vadd.f32 0.0, %v547
    %v549 = vpop.f32.mrf.mxu0
    %550 = vdwg.mxu0
    %551 = vmatpush.bf16.xpose.msra.mxu0 0
    %552 = vmatpush.bf16.xpose.msra.mxu0 0
    %553 = vmatpush.bf16.xpose.msra.mxu0 0
    %554 = vmatpush.bf16.xpose.msra.mxu0 0
    %555 = vmatpush.bf16.xpose.msra.mxu0 0
    %556 = vmatpush.bf16.xpose.msra.mxu0 0
    %557 = vmatpush.bf16.xpose.msra.mxu0 0
    %558 = vmatpush.bf16.xpose.msra.mxu0 %v470
    %559 = vmatmul.bf16.gmra.mxu0 %v519
    %v560 = vpop.f32.mrf.mxu0
    %v561 = vadd.f32 0.0, %v560
    %v562 = vpop.f32.mrf.mxu0
    %563 = vdwg.mxu0
    %564 = vmatpush.bf16.xpose.msra.mxu0 0
    %565 = vmatpush.bf16.xpose.msra.mxu0 0
    %566 = vmatpush.bf16.xpose.msra.mxu0 0
    %567 = vmatpush.bf16.xpose.msra.mxu0 0
    %568 = vmatpush.bf16.xpose.msra.mxu0 0
    %569 = vmatpush.bf16.xpose.msra.mxu0 0
    %570 = vmatpush.bf16.xpose.msra.mxu0 0
    %571 = vmatpush.bf16.xpose.msra.mxu0 %v471
    %572 = vmatmul.bf16.gmra.mxu0 %v520
    %v573 = vpop.f32.mrf.mxu0
    %v574 = vadd.f32 0.0, %v573
    %v575 = vpop.f32.mrf.mxu0
    %576 = vdwg.mxu0
    %577 = vmatpush.bf16.xpose.msra.mxu0 0
    %578 = vmatpush.bf16.xpose.msra.mxu0 0
    %579 = vmatpush.bf16.xpose.msra.mxu0 0
    %580 = vmatpush.bf16.xpose.msra.mxu0 0
    %581 = vmatpush.bf16.xpose.msra.mxu0 0
    %582 = vmatpush.bf16.xpose.msra.mxu0 0
    %583 = vmatpush.bf16.xpose.msra.mxu0 0
    %584 = vmatpush.bf16.xpose.msra.mxu0 %v472
    %585 = vmatmul.bf16.gmra.mxu0 %v521
    %v586 = vpop.f32.mrf.mxu0
    %v587 = vadd.f32 0.0, %v586
    %v588 = vpop.f32.mrf.mxu0
    %589 = vdwg.mxu0
    %590 = vmatpush.bf16.xpose.msra.mxu0 0
    %591 = vmatpush.bf16.xpose.msra.mxu0 0
    %592 = vmatpush.bf16.xpose.msra.mxu0 0
    %593 = vmatpush.bf16.xpose.msra.mxu0 0
    %594 = vmatpush.bf16.xpose.msra.mxu0 0
    %595 = vmatpush.bf16.xpose.msra.mxu0 0
    %596 = vmatpush.bf16.xpose.msra.mxu0 0
    %597 = vmatpush.bf16.xpose.msra.mxu0 %v473
    %598 = vmatmul.bf16.gmra.mxu0 %v522
    %v599 = vpop.f32.mrf.mxu0
    %v600 = vadd.f32 0.0, %v599
    %v601 = vpop.f32.mrf.mxu0
    %602 = vdwg.mxu0
    %603 = vmatpush.bf16.xpose.msra.mxu0 0
    %604 = vmatpush.bf16.xpose.msra.mxu0 0
    %605 = vmatpush.bf16.xpose.msra.mxu0 0
    %606 = vmatpush.bf16.xpose.msra.mxu0 0
    %607 = vmatpush.bf16.xpose.msra.mxu0 0
    %608 = vmatpush.bf16.xpose.msra.mxu0 0
    %609 = vmatpush.bf16.xpose.msra.mxu0 0
    %610 = vmatpush.bf16.xpose.msra.mxu0 %v474
    %611 = vmatmul.bf16.gmra.mxu0 %v523
    %v612 = vpop.f32.mrf.mxu0
    %v613 = vadd.f32 0.0, %v612
    %v614 = vpop.f32.mrf.mxu0
    %615 = vdwg.mxu0
    %616 = vmatpush.bf16.xpose.msra.mxu0 0
    %617 = vmatpush.bf16.xpose.msra.mxu0 0
    %618 = vmatpush.bf16.xpose.msra.mxu0 0
    %619 = vmatpush.bf16.xpose.msra.mxu0 0
    %620 = vmatpush.bf16.xpose.msra.mxu0 0
    %621 = vmatpush.bf16.xpose.msra.mxu0 0
    %622 = vmatpush.bf16.xpose.msra.mxu0 0
    %623 = vmatpush.bf16.xpose.msra.mxu0 %v475
    %624 = vmatmul.bf16.gmra.mxu0 %v524
    %v625 = vpop.f32.mrf.mxu0
    %v626 = vadd.f32 0.0, %v625
    %v627 = vpop.f32.mrf.mxu0
    %628 = vdwg.mxu0
    %v629 = vld [vmem:[#allocation7] sm:$0x1]
    %v630 = vld [vmem:[#allocation7 + $0x1] sm:$0x1]
    %v631 = vld [vmem:[#allocation7 + $0x2] sm:$0x1]
    %v632 = vld [vmem:[#allocation7 + $0x3] sm:$0x1]
    %v633 = vld [vmem:[#allocation7 + $0x4] sm:$0x1]
    %v634 = vld [vmem:[#allocation7 + $0x5] sm:$0x1]
    %v635 = vld [vmem:[#allocation7 + $0x6] sm:$0x1]
    %v636 = vld [vmem:[#allocation7 + $0x7] sm:$0x1]
    %vm637 = vcmp.gt.f32.partialorder %v629, 0.5
    %vm638 = vcmp.gt.f32.partialorder %v630, 0.5
    %vm639 = vcmp.gt.f32.partialorder %v631, 0.5
    %vm640 = vcmp.gt.f32.partialorder %v632, 0.5
    %vm641 = vcmp.gt.f32.partialorder %v633, 0.5
    %vm642 = vcmp.gt.f32.partialorder %v634, 0.5
    %vm643 = vcmp.gt.f32.partialorder %v635, 0.5
    %vm644 = vcmp.gt.f32.partialorder %v636, 0.5
    %v645 = vsel %vm637, 1, 0
    %v646 = vsel %vm638, 1, 0
    %v647 = vsel %vm639, 1, 0
    %v648 = vsel %vm640, 1, 0
    %v649 = vsel %vm641, 1, 0
    %v650 = vsel %vm642, 1, 0
    %v651 = vsel %vm643, 1, 0
    %v652 = vsel %vm644, 1, 0
    %v653 = vperm.slane %v645, 0
    %v654 = vperm.slane %v646, 0
    %v655 = vperm.slane %v647, 0
    %v656 = vperm.slane %v648, 0
    %v657 = vperm.slane %v649, 0
    %v658 = vperm.slane %v650, 0
    %v659 = vperm.slane %v651, 0
    %v660 = vperm.slane %v652, 0
    %vm661 = vcmp.eq.s32.totalorder %v653, 1
    %vm662 = vcmp.eq.s32.totalorder %v654, 1
    %vm663 = vcmp.eq.s32.totalorder %v655, 1
    %vm664 = vcmp.eq.s32.totalorder %v656, 1
    %vm665 = vcmp.eq.s32.totalorder %v657, 1
    %vm666 = vcmp.eq.s32.totalorder %v658, 1
    %vm667 = vcmp.eq.s32.totalorder %v659, 1
    %vm668 = vcmp.eq.s32.totalorder %v660, 1
    %v669 = vsel %vm661, -inf, %v535
    %v670 = vsel %vm662, -inf, %v548
    %v671 = vsel %vm663, -inf, %v561
    %v672 = vsel %vm664, -inf, %v574
    %v673 = vsel %vm665, -inf, %v587
    %v674 = vsel %vm666, -inf, %v600
    %v675 = vsel %vm667, -inf, %v613
    %v676 = vsel %vm668, -inf, %v626
    %vm677 = vcmask 60416
    %v678 = vsel %vm677, %v669, -inf
    %679 = vmax.xlane.f32.xlu0 %v678
    %v680 = vpop.xlane.xlu0 %679
    %v681 = vsel %vm677, %v670, -inf
    %682 = vmax.xlane.f32.xlu0 %v681
    %v683 = vpop.xlane.xlu0 %682
    %v684 = vsel %vm677, %v671, -inf
    %685 = vmax.xlane.f32.xlu0 %v684
    %v686 = vpop.xlane.xlu0 %685
    %v687 = vsel %vm677, %v672, -inf
    %688 = vmax.xlane.f32.xlu0 %v687
    %v689 = vpop.xlane.xlu0 %688
    %v690 = vsel %vm677, %v673, -inf
    %691 = vmax.xlane.f32.xlu0 %v690
    %v692 = vpop.xlane.xlu0 %691
    %v693 = vsel %vm677, %v674, -inf
    %694 = vmax.xlane.f32.xlu0 %v693
    %v695 = vpop.xlane.xlu0 %694
    %v696 = vsel %vm677, %v675, -inf
    %697 = vmax.xlane.f32.xlu0 %v696
    %v698 = vpop.xlane.xlu0 %697
    %v699 = vsel %vm677, %v676, -inf
    %700 = vmax.xlane.f32.xlu0 %v699
    %v701 = vpop.xlane.xlu0 %700
    %v702 = vsub.f32 %v669, %v680
    %v703 = vsub.f32 %v670, %v683
    %v704 = vsub.f32 %v671, %v686
    %v705 = vsub.f32 %v672, %v689
    %v706 = vsub.f32 %v673, %v692
    %v707 = vsub.f32 %v674, %v695
    %v708 = vsub.f32 %v675, %v698
    %v709 = vsub.f32 %v676, %v701
    %v710 = vmul.f32 %v702, 1.442695
    %v711 = vpow.pop %v710
    %v712 = vmul.f32 %v703, 1.442695
    %v713 = vpow.pop %v712
    %v714 = vmul.f32 %v704, 1.442695
    %v715 = vpow.pop %v714
    %v716 = vmul.f32 %v705, 1.442695
    %v717 = vpow.pop %v716
    %v718 = vmul.f32 %v706, 1.442695
    %v719 = vpow.pop %v718
    %v720 = vmul.f32 %v707, 1.442695
    %v721 = vpow.pop %v720
    %v722 = vmul.f32 %v708, 1.442695
    %v723 = vpow.pop %v722
    %v724 = vmul.f32 %v709, 1.442695
    %v725 = vpow.pop %v724
    %v726 = vsel %vm677, %v711, 0.0
    %727 = vadd.xlane.f32.xlu0 %v726
    %v728 = vpop.xlane.xlu0 %727
    %v729 = vsel %vm677, %v713, 0.0
    %730 = vadd.xlane.f32.xlu0 %v729
    %v731 = vpop.xlane.xlu0 %730
    %v732 = vsel %vm677, %v715, 0.0
    %733 = vadd.xlane.f32.xlu0 %v732
    %v734 = vpop.xlane.xlu0 %733
    %v735 = vsel %vm677, %v717, 0.0
    %736 = vadd.xlane.f32.xlu0 %v735
    %v737 = vpop.xlane.xlu0 %736
    %v738 = vsel %vm677, %v719, 0.0
    %739 = vadd.xlane.f32.xlu0 %v738
    %v740 = vpop.xlane.xlu0 %739
    %v741 = vsel %vm677, %v721, 0.0
    %742 = vadd.xlane.f32.xlu0 %v741
    %v743 = vpop.xlane.xlu0 %742
    %v744 = vsel %vm677, %v723, 0.0
    %745 = vadd.xlane.f32.xlu0 %v744
    %v746 = vpop.xlane.xlu0 %745
    %v747 = vsel %vm677, %v725, 0.0
    %748 = vadd.xlane.f32.xlu0 %v747
    %v749 = vpop.xlane.xlu0 %748
    %v750 = vrcp.pop %v728
    %v751 = vrcp.pop %v731
    %v752 = vrcp.pop %v734
    %v753 = vrcp.pop %v737
    %v754 = vrcp.pop %v740
    %v755 = vrcp.pop %v743
    %v756 = vrcp.pop %v746
    %v757 = vrcp.pop %v749
    %v758 = vmul.f32 %v711, %v750
    %v759 = vmul.f32 %v713, %v751
    %v760 = vmul.f32 %v715, %v752
    %v761 = vmul.f32 %v717, %v753
    %v762 = vmul.f32 %v719, %v754
    %v763 = vmul.f32 %v721, %v755
    %v764 = vmul.f32 %v723, %v756
    %v765 = vmul.f32 %v725, %v757
    %v766 = vpack.c.bf16 %v758, %v758
    %v767 = vpack.c.bf16 %v759, %v759
    %v768 = vpack.c.bf16 %v760, %v760
    %v769 = vpack.c.bf16 %v761, %v761
    %v770 = vpack.c.bf16 %v762, %v762
    %v771 = vpack.c.bf16 %v763, %v763
    %v772 = vpack.c.bf16 %v764, %v764
    %v773 = vpack.c.bf16 %v765, %v765
    %vm774 = vcmask 64512
    %v776 = vsel %vm774, %v766, 0
    %vm778 = vcmask 1043456
    %v780 = vsel %vm778, %v476, 0
    %782 = vmatpush.bf16.msra.mxu0 0
    %783 = vmatpush.bf16.msra.mxu0 0
    %784 = vmatpush.bf16.msra.mxu0 0
    %785 = vmatpush.bf16.msra.mxu0 0
    %786 = vmatpush.bf16.msra.mxu0 0
    %787 = vmatpush.bf16.msra.mxu0 0
    %788 = vmatpush.bf16.msra.mxu0 0
    %789 = vmatpush.bf16.msra.mxu0 %v780
    %790 = vmatmul.bf16.gmra.mxu0 %v776
    %v791 = vpop.f32.mrf.mxu0
    %v792 = vadd.f32 0.0, %v791
    %v793 = vpop.f32.mrf.mxu0
    %794 = vdwg.mxu0
    %v796 = vsel %vm774, %v767, 0
    %v799 = vsel %vm778, %v477, 0
    %801 = vmatpush.bf16.msra.mxu0 0
    %802 = vmatpush.bf16.msra.mxu0 0
    %803 = vmatpush.bf16.msra.mxu0 0
    %804 = vmatpush.bf16.msra.mxu0 0
    %805 = vmatpush.bf16.msra.mxu0 0
    %806 = vmatpush.bf16.msra.mxu0 0
    %807 = vmatpush.bf16.msra.mxu0 0
    %808 = vmatpush.bf16.msra.mxu0 %v799
    %809 = vmatmul.bf16.gmra.mxu0 %v796
    %v810 = vpop.f32.mrf.mxu0
    %v811 = vadd.f32 0.0, %v810
    %v812 = vpop.f32.mrf.mxu0
    %813 = vdwg.mxu0
    %v815 = vsel %vm774, %v768, 0
    %v818 = vsel %vm778, %v478, 0
    %820 = vmatpush.bf16.msra.mxu0 0
    %821 = vmatpush.bf16.msra.mxu0 0
    %822 = vmatpush.bf16.msra.mxu0 0
    %823 = vmatpush.bf16.msra.mxu0 0
    %824 = vmatpush.bf16.msra.mxu0 0
    %825 = vmatpush.bf16.msra.mxu0 0
    %826 = vmatpush.bf16.msra.mxu0 0
    %827 = vmatpush.bf16.msra.mxu0 %v818
    %828 = vmatmul.bf16.gmra.mxu0 %v815
    %v829 = vpop.f32.mrf.mxu0
    %v830 = vadd.f32 0.0, %v829
    %v831 = vpop.f32.mrf.mxu0
    %832 = vdwg.mxu0
    %v834 = vsel %vm774, %v769, 0
    %v837 = vsel %vm778, %v479, 0
    %839 = vmatpush.bf16.msra.mxu0 0
    %840 = vmatpush.bf16.msra.mxu0 0
    %841 = vmatpush.bf16.msra.mxu0 0
    %842 = vmatpush.bf16.msra.mxu0 0
    %843 = vmatpush.bf16.msra.mxu0 0
    %844 = vmatpush.bf16.msra.mxu0 0
    %845 = vmatpush.bf16.msra.mxu0 0
    %846 = vmatpush.bf16.msra.mxu0 %v837
    %847 = vmatmul.bf16.gmra.mxu0 %v834
    %v848 = vpop.f32.mrf.mxu0
    %v849 = vadd.f32 0.0, %v848
    %v850 = vpop.f32.mrf.mxu0
    %851 = vdwg.mxu0
    %v853 = vsel %vm774, %v770, 0
    %v856 = vsel %vm778, %v480, 0
    %858 = vmatpush.bf16.msra.mxu0 0
    %859 = vmatpush.bf16.msra.mxu0 0
    %860 = vmatpush.bf16.msra.mxu0 0
    %861 = vmatpush.bf16.msra.mxu0 0
    %862 = vmatpush.bf16.msra.mxu0 0
    %863 = vmatpush.bf16.msra.mxu0 0
    %864 = vmatpush.bf16.msra.mxu0 0
    %865 = vmatpush.bf16.msra.mxu0 %v856
    %866 = vmatmul.bf16.gmra.mxu0 %v853
    %v867 = vpop.f32.mrf.mxu0
    %v868 = vadd.f32 0.0, %v867
    %v869 = vpop.f32.mrf.mxu0
    %870 = vdwg.mxu0
    %v872 = vsel %vm774, %v771, 0
    %v875 = vsel %vm778, %v481, 0
    %877 = vmatpush.bf16.msra.mxu0 0
    %878 = vmatpush.bf16.msra.mxu0 0
    %879 = vmatpush.bf16.msra.mxu0 0
    %880 = vmatpush.bf16.msra.mxu0 0
    %881 = vmatpush.bf16.msra.mxu0 0
    %882 = vmatpush.bf16.msra.mxu0 0
    %883 = vmatpush.bf16.msra.mxu0 0
    %884 = vmatpush.bf16.msra.mxu0 %v875
    %885 = vmatmul.bf16.gmra.mxu0 %v872
    %v886 = vpop.f32.mrf.mxu0
    %v887 = vadd.f32 0.0, %v886
    %v888 = vpop.f32.mrf.mxu0
    %889 = vdwg.mxu0
    %v891 = vsel %vm774, %v772, 0
    %v894 = vsel %vm778, %v482, 0
    %896 = vmatpush.bf16.msra.mxu0 0
    %897 = vmatpush.bf16.msra.mxu0 0
    %898 = vmatpush.bf16.msra.mxu0 0
    %899 = vmatpush.bf16.msra.mxu0 0
    %900 = vmatpush.bf16.msra.mxu0 0
    %901 = vmatpush.bf16.msra.mxu0 0
    %902 = vmatpush.bf16.msra.mxu0 0
    %903 = vmatpush.bf16.msra.mxu0 %v894
    %904 = vmatmul.bf16.gmra.mxu0 %v891
    %v905 = vpop.f32.mrf.mxu0
    %v906 = vadd.f32 0.0, %v905
    %v907 = vpop.f32.mrf.mxu0
    %908 = vdwg.mxu0
    %v910 = vsel %vm774, %v773, 0
    %v913 = vsel %vm778, %v483, 0
    %915 = vmatpush.bf16.msra.mxu0 0
    %916 = vmatpush.bf16.msra.mxu0 0
    %917 = vmatpush.bf16.msra.mxu0 0
    %918 = vmatpush.bf16.msra.mxu0 0
    %919 = vmatpush.bf16.msra.mxu0 0
    %920 = vmatpush.bf16.msra.mxu0 0
    %921 = vmatpush.bf16.msra.mxu0 0
    %922 = vmatpush.bf16.msra.mxu0 %v913
    %923 = vmatmul.bf16.gmra.mxu0 %v910
    %v924 = vpop.f32.mrf.mxu0
    %v925 = vadd.f32 0.0, %v924
    %v926 = vpop.f32.mrf.mxu0
    %927 = vdwg.mxu0
    %v928 = vmul.f32 %v792, %v484
    %v929 = vmul.f32 %v811, %v484
    %v930 = vmul.f32 %v830, %v484
    %v931 = vmul.f32 %v849, %v484
    %v932 = vmul.f32 %v868, %v484
    %v933 = vmul.f32 %v887, %v484
    %v934 = vmul.f32 %v906, %v484
    %v935 = vmul.f32 %v925, %v484
    %v936 = vsel %vm778, %v928, 0.0
    %v937 = vrot.slane %v936, 4
    %v938 = vadd.f32 %v936, %v937
    %v939 = vrot.slane %v938, 2
    %v940 = vadd.f32 %v938, %v939
    %v941 = vrot.slane %v940, 1
    %v942 = vadd.f32 %v940, %v941
    %v943 = vsel %vm778, %v929, 0.0
    %v944 = vrot.slane %v943, 4
    %v945 = vadd.f32 %v943, %v944
    %v946 = vrot.slane %v945, 2
    %v947 = vadd.f32 %v945, %v946
    %v948 = vrot.slane %v947, 1
    %v949 = vadd.f32 %v947, %v948
    %v950 = vsel %vm778, %v930, 0.0
    %v951 = vrot.slane %v950, 4
    %v952 = vadd.f32 %v950, %v951
    %v953 = vrot.slane %v952, 2
    %v954 = vadd.f32 %v952, %v953
    %v955 = vrot.slane %v954, 1
    %v956 = vadd.f32 %v954, %v955
    %v957 = vsel %vm778, %v931, 0.0
    %v958 = vrot.slane %v957, 4
    %v959 = vadd.f32 %v957, %v958
    %v960 = vrot.slane %v959, 2
    %v961 = vadd.f32 %v959, %v960
    %v962 = vrot.slane %v961, 1
    %v963 = vadd.f32 %v961, %v962
    %v964 = vsel %vm778, %v932, 0.0
    %v965 = vrot.slane %v964, 4
    %v966 = vadd.f32 %v964, %v965
    %v967 = vrot.slane %v966, 2
    %v968 = vadd.f32 %v966, %v967
    %v969 = vrot.slane %v968, 1
    %v970 = vadd.f32 %v968, %v969
    %v971 = vsel %vm778, %v933, 0.0
    %v972 = vrot.slane %v971, 4
    %v973 = vadd.f32 %v971, %v972
    %v974 = vrot.slane %v973, 2
    %v975 = vadd.f32 %v973, %v974
    %v976 = vrot.slane %v975, 1
    %v977 = vadd.f32 %v975, %v976
    %v978 = vsel %vm778, %v934, 0.0
    %v979 = vrot.slane %v978, 4
    %v980 = vadd.f32 %v978, %v979
    %v981 = vrot.slane %v980, 2
    %v982 = vadd.f32 %v980, %v981
    %v983 = vrot.slane %v982, 1
    %v984 = vadd.f32 %v982, %v983
    %v985 = vsel %vm778, %v935, 0.0
    %v986 = vrot.slane %v985, 4
    %v987 = vadd.f32 %v985, %v986
    %v988 = vrot.slane %v987, 2
    %v989 = vadd.f32 %v987, %v988
    %v990 = vrot.slane %v989, 1
    %v991 = vadd.f32 %v989, %v990
    %v992 = vld [vmem:[%s11] sm:$0x1]
    %v993 = vld [vmem:[%s12] sm:$0x1]
    %vm1002 = vcmask 1041409
    %v1003 = vsel %vm1002, %v949, %v942
    %vm1004 = vcmask 1042434
    %v1005 = vsel %vm1004, %v956, %v1003
    %vm1006 = vcmask 1043459
    %v1007 = vsel %vm1006, %v963, %v1005
    %vm1008 = vcmask 1044484
    %v1009 = vsel %vm1008, %v970, %v1007
    %vm1010 = vcmask 1045509
    %v1011 = vsel %vm1010, %v977, %v1009
    %vm1012 = vcmask 1046534
    %v1013 = vsel %vm1012, %v984, %v1011
    %vm1014 = vcmask 1047559
    %v1015 = vsel %vm1014, %v991, %v1013
    %1017 = vadd.xlane.f32.xlu0 %v1015
    %v1018 = vpop.xlane.xlu0 %1017
    %v1019 = vmul.f32 %v1018, 0.03125
    %v1021 = vrot.slane %v1019, 1
    %v1022 = vrot.slane %v1019, 2
    %v1023 = vrot.slane %v1019, 3
    %v1024 = vrot.slane %v1019, 4
    %v1025 = vrot.slane %v1019, 5
    %v1026 = vrot.slane %v1019, 6
    %v1027 = vrot.slane %v1019, 7
    %v1036 = vsub.f32 %v942, %v1019
    %v1037 = vsub.f32 %v949, %v1021
    %v1038 = vsub.f32 %v956, %v1022
    %v1039 = vsub.f32 %v963, %v1023
    %v1040 = vsub.f32 %v970, %v1024
    %v1041 = vsub.f32 %v977, %v1025
    %v1042 = vsub.f32 %v984, %v1026
    %v1043 = vsub.f32 %v991, %v1027
    %v1044 = vmul.f32 %v1036, %v1036
    %v1045 = vmul.f32 %v1037, %v1037
    %v1046 = vmul.f32 %v1038, %v1038
    %v1047 = vmul.f32 %v1039, %v1039
    %v1048 = vmul.f32 %v1040, %v1040
    %v1049 = vmul.f32 %v1041, %v1041
    %v1050 = vmul.f32 %v1042, %v1042
    %v1051 = vmul.f32 %v1043, %v1043
    %v1060 = vrot.slane %v1045, 7
    %v1061 = vsel %vm1002, %v1060, %v1044
    %v1062 = vrot.slane %v1046, 6
    %v1063 = vsel %vm1004, %v1062, %v1061
    %v1064 = vrot.slane %v1047, 5
    %v1065 = vsel %vm1006, %v1064, %v1063
    %v1066 = vrot.slane %v1048, 4
    %v1067 = vsel %vm1008, %v1066, %v1065
    %v1068 = vrot.slane %v1049, 3
    %v1069 = vsel %vm1010, %v1068, %v1067
    %v1070 = vrot.slane %v1050, 2
    %v1071 = vsel %vm1012, %v1070, %v1069
    %v1072 = vrot.slane %v1051, 1
    %v1073 = vsel %vm1014, %v1072, %v1071
    %1075 = vadd.xlane.f32.xlu0 %v1073
    %v1076 = vpop.xlane.xlu0 %1075
    %v1077 = vmul.f32 %v1019, %v1019
    %v1078 = vmul.f32 %v1077, 96.0
    %v1079 = vsub.f32 %v1076, %v1078
    %v1080 = vmul.f32 %v1079, 0.03125
    %v1081 = vadd.f32 %v1080, 1e-05
    %v1082 = vrsqrt.pop %v1081
    %v1083 = vmul.f32 %v1082, %v1081
    %v1084 = vmul.f32 %v1083, %v1082
    %v1085 = vmul.f32 0.5, %v1084
    %v1086 = vsub.f32 1.5, %v1085
    %v1087 = vmul.f32 %v1082, %v1086
    %vm1088 = vweird.f32 %v1081
    %vm1089 = vweird.f32 %v1082
    %vm1090 = vmor %vm1088, %vm1089
    %v1091 = vsel %vm1090, %v1082, %v1087
    %v1093 = vrot.slane %v1091, 1
    %v1094 = vrot.slane %v1091, 2
    %v1095 = vrot.slane %v1091, 3
    %v1096 = vrot.slane %v1091, 4
    %v1097 = vrot.slane %v1091, 5
    %v1098 = vrot.slane %v1091, 6
    %v1099 = vrot.slane %v1091, 7
    %v1108 = vmul.f32 %v1036, %v1091
    %v1109 = vmul.f32 %v1037, %v1093
    %v1110 = vmul.f32 %v1038, %v1094
    %v1111 = vmul.f32 %v1039, %v1095
    %v1112 = vmul.f32 %v1040, %v1096
    %v1113 = vmul.f32 %v1041, %v1097
    %v1114 = vmul.f32 %v1042, %v1098
    %v1115 = vmul.f32 %v1043, %v1099
    %v1117 = vperm.slane %v992, 0
    %v1119 = vmul.f32 %v1108, %v1117
    %v1120 = vmul.f32 %v1109, %v1117
    %v1121 = vmul.f32 %v1110, %v1117
    %v1122 = vmul.f32 %v1111, %v1117
    %v1123 = vmul.f32 %v1112, %v1117
    %v1124 = vmul.f32 %v1113, %v1117
    %v1125 = vmul.f32 %v1114, %v1117
    %v1126 = vmul.f32 %v1115, %v1117
    %v1128 = vperm.slane %v993, 0
    %v1130 = vadd.f32 %v1119, %v1128
    %v1131 = vadd.f32 %v1120, %v1128
    %v1132 = vadd.f32 %v1121, %v1128
    %v1133 = vadd.f32 %v1122, %v1128
    %v1134 = vadd.f32 %v1123, %v1128
    %v1135 = vadd.f32 %v1124, %v1128
    %v1136 = vadd.f32 %v1125, %v1128
    %v1137 = vadd.f32 %v1126, %v1128
    %v1138 = vpack.c.bf16 %v1130, %v1130
    %v1139 = vpack.c.bf16 %v1131, %v1131
    %v1140 = vpack.c.bf16 %v1132, %v1132
    %v1141 = vpack.c.bf16 %v1133, %v1133
    %v1142 = vpack.c.bf16 %v1134, %v1134
    %v1143 = vpack.c.bf16 %v1135, %v1135
    %v1144 = vpack.c.bf16 %v1136, %v1136
    %v1145 = vpack.c.bf16 %v1137, %v1137
    %v1146 = vld [vmem:[#allocation13] sm:$0xf]
    %v1147 = vld [vmem:[#allocation13 + $0x4] sm:$0xf]
    %v1148 = vld [vmem:[#allocation13 + $0x8] sm:$0xf]
    %v1149 = vld [vmem:[#allocation13 + $0xc] sm:$0xf]
    %v1150 = vld [vmem:[#allocation13 + $0x10] sm:$0xf]
    %v1151 = vld [vmem:[#allocation13 + $0x14] sm:$0xf]
    %v1152 = vld [vmem:[#allocation13 + $0x18] sm:$0xf]
    %v1153 = vld [vmem:[#allocation13 + $0x1c] sm:$0xf]
    %v1154 = vld [vmem:[#allocation13 + $0x20] sm:$0xf]
    %v1155 = vld [vmem:[#allocation13 + $0x24] sm:$0xf]
    %v1156 = vld [vmem:[#allocation13 + $0x28] sm:$0xf]
    %v1157 = vld [vmem:[#allocation13 + $0x2c] sm:$0xf]
    %v1158 = vld [vmem:[#allocation13 + $0x30] sm:$0xf]
    %v1159 = vld [vmem:[#allocation13 + $0x34] sm:$0xf]
    %v1160 = vld [vmem:[#allocation13 + $0x38] sm:$0xf]
    %v1161 = vld [vmem:[#allocation13 + $0x3c] sm:$0xf]
    %v1162 = vld [vmem:[%s8] sm:$0x1]
    %v1164 = vperm.slane %v1162, 0
    %v1174 = vunpack.c.l.b16 %v1138
    %v1175 = vunpack.c.l.b16 %v1139
    %v1176 = vunpack.c.l.b16 %v1140
    %v1177 = vunpack.c.l.b16 %v1141
    %v1178 = vunpack.c.l.b16 %v1142
    %v1179 = vunpack.c.l.b16 %v1143
    %v1180 = vunpack.c.l.b16 %v1144
    %v1181 = vunpack.c.l.b16 %v1145
    %v1182 = vrot.slane %v1175, 7
    %v1183 = vsel %vm1002, %v1182, %v1174
    %v1184 = vrot.slane %v1176, 6
    %v1185 = vsel %vm1004, %v1184, %v1183
    %v1186 = vrot.slane %v1177, 5
    %v1187 = vsel %vm1006, %v1186, %v1185
    %v1188 = vrot.slane %v1178, 4
    %v1189 = vsel %vm1008, %v1188, %v1187
    %v1190 = vrot.slane %v1179, 3
    %v1191 = vsel %vm1010, %v1190, %v1189
    %v1192 = vrot.slane %v1180, 2
    %v1193 = vsel %vm1012, %v1192, %v1191
    %v1194 = vrot.slane %v1181, 1
    %v1195 = vsel %vm1014, %v1194, %v1193
    %v1196 = vpack.c.b16 %v1195, %v1195
    %v1214 = vunpack.c.l.b16 %v1146
    %v1215 = vunpack.c.l.b16 %v1147
    %v1216 = vunpack.c.l.b16 %v1148
    %v1217 = vunpack.c.l.b16 %v1149
    %v1218 = vunpack.c.l.b16 %v1150
    %v1219 = vunpack.c.l.b16 %v1151
    %v1220 = vunpack.c.l.b16 %v1152
    %v1221 = vunpack.c.l.b16 %v1153
    %v1222 = vunpack.c.l.b16 %v1154
    %v1223 = vunpack.c.l.b16 %v1155
    %v1224 = vunpack.c.l.b16 %v1156
    %v1225 = vunpack.c.l.b16 %v1157
    %v1226 = vunpack.c.l.b16 %v1158
    %v1227 = vunpack.c.l.b16 %v1159
    %v1228 = vunpack.c.l.b16 %v1160
    %v1229 = vunpack.c.l.b16 %v1161
    %v1230 = vpack.c.b16 %v1215, %v1214
    %v1231 = vpack.c.b16 %v1217, %v1216
    %v1232 = vpack.c.b16 %v1219, %v1218
    %v1233 = vpack.c.b16 %v1221, %v1220
    %v1234 = vpack.c.b16 %v1223, %v1222
    %v1235 = vpack.c.b16 %v1225, %v1224
    %v1236 = vpack.c.b16 %v1227, %v1226
    %v1237 = vpack.c.b16 %v1229, %v1228
    %1246 = vmatpush.bf16.msra.mxu0 %v1237
    %1247 = vmatpush.bf16.msra.mxu0 %v1236
    %1248 = vmatpush.bf16.msra.mxu0 %v1235
    %1249 = vmatpush.bf16.msra.mxu0 %v1234
    %1250 = vmatpush.bf16.msra.mxu0 %v1233
    %1251 = vmatpush.bf16.msra.mxu0 %v1232
    %1252 = vmatpush.bf16.msra.mxu0 %v1231
    %1253 = vmatpush.bf16.msra.mxu0 %v1230
    %1254 = vmatmul.bf16.gmra.mxu0 %v1196
    %v1255 = vpop.f32.mrf.mxu0
    %v1256 = vadd.f32 %v1164, %v1255
    %v1257 = vpop.f32.mrf.mxu0
    %1258 = vdwg.mxu0
    %vm1259 = vcmp.ge.f32.partialorder %v1256, 0.0
    %v1260 = vld [vmem:[%s13] sm:$0x1]
    %v1262 = vperm.slane %v1260, 0
    %v1264 = vmul.f32 %v1262, %v1256
    %v1265 = vsel %vm1259, %v1256, %v1264
    %v1266 = vpack.c.bf16 %v1265, %v1265
    %v1267 = vld [vmem:[#allocation14] sm:$0xf]
    %v1268 = vld [vmem:[#allocation14 + $0x4] sm:$0xf]
    %v1269 = vld [vmem:[#allocation14 + $0x8] sm:$0xf]
    %v1270 = vld [vmem:[#allocation14 + $0xc] sm:$0xf]
    %v1271 = vld [vmem:[#allocation14 + $0x10] sm:$0xf]
    %v1272 = vld [vmem:[#allocation14 + $0x14] sm:$0xf]
    %v1273 = vld [vmem:[#allocation14 + $0x18] sm:$0xf]
    %v1274 = vld [vmem:[#allocation14 + $0x1c] sm:$0xf]
    %v1275 = vld [vmem:[#allocation14 + $0x20] sm:$0xf]
    %v1276 = vld [vmem:[#allocation14 + $0x24] sm:$0xf]
    %v1277 = vld [vmem:[#allocation14 + $0x28] sm:$0xf]
    %v1278 = vld [vmem:[#allocation14 + $0x2c] sm:$0xf]
    %v1279 = vld [vmem:[#allocation14 + $0x30] sm:$0xf]
    %v1280 = vld [vmem:[#allocation14 + $0x34] sm:$0xf]
    %v1281 = vld [vmem:[#allocation14 + $0x38] sm:$0xf]
    %v1282 = vld [vmem:[#allocation14 + $0x3c] sm:$0xf]
    %v1283 = vld [vmem:[%s10] sm:$0x1]
    %v1285 = vperm.slane %v1283, 0
    %v1303 = vunpack.c.l.b16 %v1267
    %v1304 = vunpack.c.l.b16 %v1268
    %v1305 = vunpack.c.l.b16 %v1269
    %v1306 = vunpack.c.l.b16 %v1270
    %v1307 = vunpack.c.l.b16 %v1271
    %v1308 = vunpack.c.l.b16 %v1272
    %v1309 = vunpack.c.l.b16 %v1273
    %v1310 = vunpack.c.l.b16 %v1274
    %v1311 = vunpack.c.l.b16 %v1275
    %v1312 = vunpack.c.l.b16 %v1276
    %v1313 = vunpack.c.l.b16 %v1277
    %v1314 = vunpack.c.l.b16 %v1278
    %v1315 = vunpack.c.l.b16 %v1279
    %v1316 = vunpack.c.l.b16 %v1280
    %v1317 = vunpack.c.l.b16 %v1281
    %v1318 = vunpack.c.l.b16 %v1282
    %v1319 = vpack.c.b16 %v1304, %v1303
    %v1320 = vpack.c.b16 %v1306, %v1305
    %v1321 = vpack.c.b16 %v1308, %v1307
    %v1322 = vpack.c.b16 %v1310, %v1309
    %v1323 = vpack.c.b16 %v1312, %v1311
    %v1324 = vpack.c.b16 %v1314, %v1313
    %v1325 = vpack.c.b16 %v1316, %v1315
    %v1326 = vpack.c.b16 %v1318, %v1317
    %1335 = vmatpush.bf16.msra.mxu0 %v1326
    %1336 = vmatpush.bf16.msra.mxu0 %v1325
    %1337 = vmatpush.bf16.msra.mxu0 %v1324
    %1338 = vmatpush.bf16.msra.mxu0 %v1323
    %1339 = vmatpush.bf16.msra.mxu0 %v1322
    %1340 = vmatpush.bf16.msra.mxu0 %v1321
    %1341 = vmatpush.bf16.msra.mxu0 %v1320
    %1342 = vmatpush.bf16.msra.mxu0 %v1319
    %1343 = vmatmul.bf16.gmra.mxu0 %v1266
    %v1344 = vpop.f32.mrf.mxu0
    %v1345 = vadd.f32 %v1285, %v1344
    %v1346 = vpop.f32.mrf.mxu0
    %1347 = vdwg.mxu0
    %v1356 = vrot.slane %v1131, 7
    %v1357 = vsel %vm1002, %v1356, %v1130
    %v1358 = vrot.slane %v1132, 6
    %v1359 = vsel %vm1004, %v1358, %v1357
    %v1360 = vrot.slane %v1133, 5
    %v1361 = vsel %vm1006, %v1360, %v1359
    %v1362 = vrot.slane %v1134, 4
    %v1363 = vsel %vm1008, %v1362, %v1361
    %v1364 = vrot.slane %v1135, 3
    %v1365 = vsel %vm1010, %v1364, %v1363
    %v1366 = vrot.slane %v1136, 2
    %v1367 = vsel %vm1012, %v1366, %v1365
    %v1368 = vrot.slane %v1137, 1
    %v1369 = vsel %vm1014, %v1368, %v1367
    %v1371 = vadd.f32 %v1345, %v1369
    %1372 = vadd.xlane.f32.xlu0 %v1371
    %v1373 = vpop.xlane.xlu0 %1372
    %v1374 = vmul.f32 %v1373, 0.03125
    %v1375 = vsub.f32 %v1371, %v1374
    %v1376 = vmul.f32 %v1375, %v1375
    %1377 = vadd.xlane.f32.xlu0 %v1376
    %v1378 = vpop.xlane.xlu0 %1377
    %v1379 = vmul.f32 %v1374, %v1374
    %v1380 = vmul.f32 %v1379, 96.0
    %v1381 = vsub.f32 %v1378, %v1380
    %v1382 = vmul.f32 %v1381, 0.03125
    %v1383 = vadd.f32 %v1382, 1e-05
    %v1384 = vrsqrt.pop %v1383
    %v1385 = vmul.f32 %v1384, %v1383
    %v1386 = vmul.f32 %v1385, %v1384
    %v1387 = vmul.f32 0.5, %v1386
    %v1388 = vsub.f32 1.5, %v1387
    %v1389 = vmul.f32 %v1384, %v1388
    %vm1390 = vweird.f32 %v1383
    %vm1391 = vweird.f32 %v1384
    %vm1392 = vmor %vm1390, %vm1391
    %v1393 = vsel %vm1392, %v1384, %v1389
    %v1394 = vmul.f32 %v1375, %v1393
    %v1395 = vmul.f32 %v1394, %v1117
    %v1396 = vadd.f32 %v1395, %v1128
    %1397 = vst [vmem:[#allocation16] sm:$0xff] %v1396
    // Predicated region
    $region90: #{tpu_custom_call.1} parent=1 // pred_check
      _
    $region91: #{tpu_custom_call.1} parent=1 // pred_check_branch
      %1399 = sbr.rel (0) target = $region93
    $region92: #{tpu_custom_call.1} parent=1 // pred_region
      %1401 = vsyncadd [#allocation4], 0
      %s1403 = sshll.u32 [#allocation16], 4
      %s1404 = int_to_ptr.vmem [resolvable:$true] %s1403
      %s1405 = sshll.u32 %s14, 4
      %s1406 = int_to_ptr.hbm [resolvable:$true] %s1405
      %1408 = dma.vmem_to_hbm [thread:$0]  %s1404, 128, %s1406, [#allocation4]
    $region93: #{tpu_custom_call.1} parent=1 // pred_fallthru
      _
    // Predicated region
    $region94: #{tpu_custom_call.1} parent=1 // pred_check
      _
    $region95: #{tpu_custom_call.1} parent=1 // pred_check_branch
      %1410 = sbr.rel (0) target = $region97
    $region96: #{tpu_custom_call.1} parent=1 // pred_region
      %1412 = dma.done [#allocation4], 128
    $region97: #{tpu_custom_call.1} parent=1 // pred_fallthru
      _
    %1413 = vsyncpa [#allocation3], 1
    %1414 = vsyncpa [#allocation6], 1
    %1415 = vsyncpa [#allocation9], 1
    %1416 = vsyncpa [#allocation12], 1
    %1417 = vsyncpa [#allocation15], 1
    %1418 = vsyncpa [#allocation4], 1

</llo_original>
